<compile_context>
chip_gen: v5e
topology: v5e:2x2
jax: 0.10.0
libtpu: 0.0.40
codegen_flags: <defaults>
</compile_context>

<pallas_src>
import functools

import jax
import jax.numpy as jnp
from jax.experimental import pallas as pl
from jax.experimental.pallas import tpu as pltpu

N_CHANNELS_OUT = 8
LEAKY_SLOPE = 0.01  # F.leaky_relu default negative_slope


def _round_up(x, m):
    return (x + m - 1) // m * m


def _leaky(v):
    return jnp.where(v >= 0, v, LEAKY_SLOPE * v)


# ------------------------------ fused kernel -------------------------------

def _cnn_small_kernel(p1_ref, w1_ref, w2_ref, b2_ref, wfc1_ref, bfc1_ref,
                      wfc2_ref, bfc2_ref, sp1_ref, sp2_ref, o_ref, *,
                      OW1, PH1, PW1, OW2, PH2, PW2, KH2, KW2, C1, C2):
    # ---- conv1: one big im2col GEMM (bf16 x bf16 -> f32 on the MXU) + leaky ----
    h1 = jnp.dot(p1_ref[0], w1_ref[...], preferred_element_type=jnp.float32)  # (M1p, C1)
    h1 = _leaky(h1)

    sp1 = sp1_ref[...]   # (2*PW1, OW1) 0/1 selector: rows [0:PW1] even cols, [PW1:] odd
    sp2 = sp2_ref[...]   # (2*PW2, OW2)

    # ---- 2x2 max-pool of conv1, one pooled row at a time (stays in vregs/VMEM) ----
    pool1_rows = []
    for ph in range(PH1):
        ra = h1[(2 * ph) * OW1:(2 * ph) * OW1 + OW1, :]            # (OW1, C1)
        rb = h1[(2 * ph + 1) * OW1:(2 * ph + 1) * OW1 + OW1, :]    # (OW1, C1)
        m = jnp.maximum(ra, rb)                                    # pool over H
        sel = jnp.dot(sp1, m, preferred_element_type=jnp.float32)  # (2*PW1, C1)
        pool1_rows.append(jnp.maximum(sel[:PW1, :], sel[PW1:, :])) # pool over W -> (PW1, C1)

    # ---- conv2 fully in-kernel (accumulate over the KH2 x KW2 taps) + leaky + pool ----
    b2 = b2_ref[...]                                               # (1, C2) f32
    pooled2_rows = []
    for h2 in range(PH2):
        halves = []
        for dh in range(2):
            oh2 = 2 * h2 + dh
            acc = jnp.zeros((OW2, C2), jnp.float32)
            for kh in range(KH2):
                for kw in range(KW2):
                    a = pool1_rows[oh2 + kh][kw:kw + OW2, :].astype(jnp.bfloat16)
                    acc = acc + jnp.dot(a, w2_ref[kh, kw],
                                        preferred_element_type=jnp.float32)
            acc = _leaky(acc + b2)                                 # (OW2, C2)
            sel = jnp.dot(sp2, acc, preferred_element_type=jnp.float32)   # (2*PW2, C2)
            halves.append(jnp.maximum(sel[:PW2, :], sel[PW2:, :]))        # (PW2, C2)
        pooled2_rows.append(jnp.maximum(halves[0], halves[1]))

    # ---- fc1 (+ leaky): contraction over (h2, w2, c) as PH2*PW2 tiny GEMMs ----
    acc1 = bfc1_ref[...]                                           # (1, F1) f32
    for h2 in range(PH2):
        for w2 in range(PW2):
            v = pooled2_rows[h2][w2:w2 + 1, :].astype(jnp.bfloat16)      # (1, C2)
            acc1 = acc1 + jnp.dot(v, wfc1_ref[h2 * PW2 + w2],
                                  preferred_element_type=jnp.float32)
    z = _leaky(acc1)

    # ---- fc2: lane-dense (128-padded) output row -- the only HBM store ----
    out = jnp.dot(z.astype(jnp.bfloat16), wfc2_ref[...],
                  preferred_element_type=jnp.float32) + bfc2_ref[...]
    o_ref[0] = out


# ------------------------------ host wrapper --------------------------------

def _pool_select_matrix(n_out, n_in):
    """(2*n_out, n_in) 0/1 matrix: rows [0:n_out] select even columns 0,2,...,
    rows [n_out:] select odd columns 1,3,...  (floor-mode 2x2 pooling along W)."""
    r = jnp.arange(2 * n_out)
    tgt = jnp.where(r < n_out, 2 * r, 2 * (r - n_out) + 1)
    return (jnp.arange(n_in)[None, :] == tgt[:, None]).astype(jnp.float32)


def cnn_small_forward(params, x):
    """x: (N, Cin, H, W) float32 (PyTorch NCHW). Returns (N, n_classes) float32."""
    N, Cin, H, W = x.shape
    g1_w = params["g1_w"]                         # (C1, Cin, KH1, KW1), bias=False
    c1_w, c1_b = params["c1_w"], params["c1_b"]   # (C2, C1, 3, 3), (C2,)
    fc1_w, fc1_b = params["fc1_w"], params["fc1_b"]
    fc2_w, fc2_b = params["fc2_w"], params["fc2_b"]

    C1, _, KH1, KW1 = g1_w.shape
    C2, _, KH2, KW2 = c1_w.shape
    OH1, OW1 = H - KH1 + 1, W - KW1 + 1
    PH1, PW1 = OH1 // 2, OW1 // 2
    OH2, OW2 = PH1 - KH2 + 1, PW1 - KW2 + 1
    PH2, PW2 = OH2 // 2, OW2 // 2
    F1 = fc1_w.shape[0]
    NC = fc2_w.shape[0]
    assert fc1_w.shape[1] == C2 * PH2 * PW2, "LazyLinear in_features mismatch"

    M1, K1 = OH1 * OW1, KH1 * KW1 * Cin
    M1p, K1p = _round_up(M1, 8), _round_up(K1, 128)
    F2p = _round_up(NC, 128)

    # TODO(synk): conv1's patch extraction (im2col) still happens outside the kernel as a
    # compact fused slice/stack; everything downstream of it runs inside one pallas_call.
    # Dropout / Dropout2d are eval-mode identity.
    x_nhwc = jnp.transpose(x, (0, 2, 3, 1)).astype(jnp.float32)
    xw = jnp.stack([x_nhwc[:, :, kw:kw + OW1, :] for kw in range(KW1)], axis=3)
    patches = jnp.stack([xw[:, kh:kh + OH1] for kh in range(KH1)], axis=3)
    patches = patches.reshape(N, M1, K1)          # K ordered (kh, kw, ci), ci fastest
    patches = jnp.pad(patches, ((0, 0), (0, M1p - M1), (0, K1p - K1))).astype(jnp.bfloat16)

    # Weight packing: bf16 MXU operands, f32 biases; fc1 columns permuted so the kernel
    # consumes the pooled map in (h2, w2, c) order (matches PyTorch's NCHW flatten).
    w1 = jnp.transpose(g1_w, (2, 3, 1, 0)).reshape(K1, C1)
    w1 = jnp.pad(w1, ((0, K1p - K1), (0, 0))).astype(jnp.bfloat16)         # (K1p, C1)
    w2 = jnp.transpose(c1_w, (2, 3, 1, 0)).astype(jnp.bfloat16)            # (KH2, KW2, C1, C2)
    b2 = c1_b.reshape(1, C2).astype(jnp.float32)
    wfc1 = (fc1_w.T.reshape(C2, PH2, PW2, F1)
            .transpose(1, 2, 0, 3).reshape(PH2 * PW2, C2, F1)).astype(jnp.bfloat16)
    bfc1 = fc1_b.reshape(1, F1).astype(jnp.float32)
    wfc2 = jnp.pad(fc2_w.T, ((0, 0), (0, F2p - NC))).astype(jnp.bfloat16)  # (F1, F2p)
    bfc2 = jnp.pad(fc2_b, (0, F2p - NC)).reshape(1, F2p).astype(jnp.float32)

    sp1 = _pool_select_matrix(PW1, OW1)
    sp2 = _pool_select_matrix(PW2, OW2)

    kernel = functools.partial(
        _cnn_small_kernel, OW1=OW1, PH1=PH1, PW1=PW1, OW2=OW2, PH2=PH2, PW2=PW2,
        KH2=KH2, KW2=KW2, C1=C1, C2=C2)

    flops_per_img = (2 * M1 * K1p * C1
                     + 2 * PH2 * 2 * KH2 * KW2 * OW2 * C1 * C2
                     + PH1 * 2 * 2 * PW1 * OW1 * C1
                     + PH2 * 2 * 2 * 2 * PW2 * OW2 * C2
                     + 2 * PH2 * PW2 * C2 * F1
                     + 2 * F1 * F2p)
    bytes_accessed = (patches.size * 2 + w1.size * 2 + w2.size * 2 + wfc1.size * 2
                      + wfc2.size * 2
                      + (b2.size + bfc1.size + bfc2.size + sp1.size + sp2.size) * 4
                      + N * F2p * 4)

    out = pl.pallas_call(
        kernel,
        out_shape=jax.ShapeDtypeStruct((N, 1, F2p), jnp.float32),
        grid=(N,),
        in_specs=[
            pl.BlockSpec((1, M1p, K1p), lambda n: (n, 0, 0)),        # conv1 patches
            pl.BlockSpec((K1p, C1), lambda n: (0, 0)),               # conv1 weight
            pl.BlockSpec((KH2, KW2, C1, C2), lambda n: (0, 0, 0, 0)),  # conv2 weight
            pl.BlockSpec((1, C2), lambda n: (0, 0)),                 # conv2 bias
            pl.BlockSpec((PH2 * PW2, C2, F1), lambda n: (0, 0, 0)),  # fc1 weight
            pl.BlockSpec((1, F1), lambda n: (0, 0)),                 # fc1 bias
            pl.BlockSpec((F1, F2p), lambda n: (0, 0)),               # fc2 weight (padded)
            pl.BlockSpec((1, F2p), lambda n: (0, 0)),                # fc2 bias   (padded)
            pl.BlockSpec((2 * PW1, OW1), lambda n: (0, 0)),          # pool1 selector
            pl.BlockSpec((2 * PW2, OW2), lambda n: (0, 0)),          # pool2 selector
        ],
        out_specs=pl.BlockSpec((1, 1, F2p), lambda n: (n, 0, 0)),
        compiler_params=pltpu.CompilerParams(
            dimension_semantics=("parallel",)),
        cost_estimate=pl.CostEstimate(
            flops=int(N * flops_per_img), transcendentals=0,
            bytes_accessed=int(bytes_accessed)),
    )(patches, w1, w2, b2, wfc1, bfc1, wfc2, bfc2, sp1, sp2)

    return out[:, 0, :NC]


# ------------------------------ parameter init ------------------------------

def init_params(key, n_channels=3, kernel_size=10, n_classes=10, in_hw=(32, 32)):
    H, W = in_hw
    h1, w1 = (H - kernel_size + 1) // 2, (W - kernel_size + 1) // 2
    h2, w2 = (h1 - 3 + 1) // 2, (w1 - 3 + 1) // 2
    fc1_in = 2 * N_CHANNELS_OUT * h2 * w2                          # LazyLinear in_features

    keys = jax.random.split(key, 7)

    def uni(k, shape, fan_in):
        bound = 1.0 / float(fan_in) ** 0.5
        return jax.random.uniform(k, shape, jnp.float32, -bound, bound)

    return {
        "g1_w": uni(keys[0], (N_CHANNELS_OUT, n_channels, kernel_size, kernel_size),
                    n_channels * kernel_size * kernel_size),
        "c1_w": uni(keys[1], (2 * N_CHANNELS_OUT, N_CHANNELS_OUT, 3, 3), N_CHANNELS_OUT * 9),
        "c1_b": uni(keys[2], (2 * N_CHANNELS_OUT,), N_CHANNELS_OUT * 9),
        "fc1_w": uni(keys[3], (64, fc1_in), fc1_in),
        "fc1_b": uni(keys[4], (64,), fc1_in),
        "fc2_w": uni(keys[5], (n_classes, 64), 64),
        "fc2_b": uni(keys[6], (n_classes,), 64),
    }


if __name__ == "__main__":
    key = jax.random.PRNGKey(0)
    xkey, pkey = jax.random.split(key)
    # kernel_size=10 (module default) needs a spatial size with room for two convs + pools.
    x = jax.random.normal(xkey, (2, 3, 32, 32), jnp.float32)
    params = init_params(pkey, n_channels=3, kernel_size=10, n_classes=10, in_hw=(32, 32))

    out = jax.jit(cnn_small_forward)(params, x)
    out = jax.block_until_ready(out)
    assert out.shape == (2, 10), out.shape
    assert out.dtype == jnp.float32
    assert bool(jnp.isfinite(out).all())
    print("KERNEL_OK")
</pallas_src>

<mosaic_0001>
module attributes {stable_mosaic.version = 11 : i64} {
  func.func @_cnn_small_kernel(%arg0: i32, %arg1: memref<1x536x384xbf16, #tpu.memory_space<vmem>>, %arg2: memref<384x8xbf16, #tpu.memory_space<vmem>>, %arg3: memref<3x3x8x16xbf16, #tpu.memory_space<vmem>>, %arg4: memref<1x16xf32, #tpu.memory_space<vmem>>, %arg5: memref<16x16x64xbf16, #tpu.memory_space<vmem>>, %arg6: memref<1x64xf32, #tpu.memory_space<vmem>>, %arg7: memref<64x128xbf16, #tpu.memory_space<vmem>>, %arg8: memref<1x128xf32, #tpu.memory_space<vmem>>, %arg9: memref<22x23xf32, #tpu.memory_space<vmem>>, %arg10: memref<8x9xf32, #tpu.memory_space<vmem>>, %arg11: memref<1x1x128xf32, #tpu.memory_space<vmem>>) attributes {dimension_semantics = [#tpu.dimension_semantics<parallel>], iteration_bounds = array<i64: 2>, scalar_prefetch = 0 : i64, scratch_operands = 0 : i64, tpu.core_type = #tpu.core_type<tc>, window_params = [{transform_indices = @transform_0, window_bounds = array<i64: 1, 536, 384>}, {pipeline_mode = #tpu.pipeline_mode<synchronous>, transform_indices = @transform_1, window_bounds = array<i64: 384, 8>}, {pipeline_mode = #tpu.pipeline_mode<synchronous>, transform_indices = @transform_2, window_bounds = array<i64: 3, 3, 8, 16>}, {pipeline_mode = #tpu.pipeline_mode<synchronous>, transform_indices = @transform_3, window_bounds = array<i64: 1, 16>}, {pipeline_mode = #tpu.pipeline_mode<synchronous>, transform_indices = @transform_4, window_bounds = array<i64: 16, 16, 64>}, {pipeline_mode = #tpu.pipeline_mode<synchronous>, transform_indices = @transform_5, window_bounds = array<i64: 1, 64>}, {pipeline_mode = #tpu.pipeline_mode<synchronous>, transform_indices = @transform_6, window_bounds = array<i64: 64, 128>}, {pipeline_mode = #tpu.pipeline_mode<synchronous>, transform_indices = @transform_7, window_bounds = array<i64: 1, 128>}, {pipeline_mode = #tpu.pipeline_mode<synchronous>, transform_indices = @transform_8, window_bounds = array<i64: 22, 23>}, {pipeline_mode = #tpu.pipeline_mode<synchronous>, transform_indices = @transform_9, window_bounds = array<i64: 8, 9>}, {transform_indices = @transform_10, window_bounds = array<i64: 1, 1, 128>}]} {
    %c0 = arith.constant 0 : index
    %c0_0 = arith.constant 0 : index
    %c0_1 = arith.constant 0 : index
    %0 = vector.load %arg1[%c0, %c0_0, %c0_1] : memref<1x536x384xbf16, #tpu.memory_space<vmem>>, vector<1x536x384xbf16>
    %1 = vector.shape_cast %0 : vector<1x536x384xbf16> to vector<536x384xbf16>
    %c0_2 = arith.constant 0 : index
    %c0_3 = arith.constant 0 : index
    %2 = vector.load %arg2[%c0_2, %c0_3] : memref<384x8xbf16, #tpu.memory_space<vmem>>, vector<384x8xbf16>
    %cst = arith.constant dense<0.000000e+00> : vector<536x8xf32>
    %3 = tpu.matmul %1, %2, %cst {dimension_numbers = #tpu.dot_dimension_numbers<[1], [0], [0], [1], [0, 0, 1, 1], [], []>} : vector<536x384xbf16>, vector<384x8xbf16>, vector<536x8xf32> -> vector<536x8xf32>
    %cst_4 = arith.constant 0.000000e+00 : f32
    %4 = vector.broadcast %cst_4 : f32 to vector<536x8xf32>
    %5 = arith.cmpf oge, %3, %4 : vector<536x8xf32>
    %cst_5 = arith.constant 0.00999999977 : f32
    %6 = vector.broadcast %cst_5 : f32 to vector<536x8xf32>
    %7 = arith.mulf %6, %3 : vector<536x8xf32>
    %8 = arith.select %5, %3, %7 : vector<536x8xi1>, vector<536x8xf32>
    %c0_6 = arith.constant 0 : index
    %c0_7 = arith.constant 0 : index
    %9 = vector.load %arg9[%c0_6, %c0_7] : memref<22x23xf32, #tpu.memory_space<vmem>>, vector<22x23xf32>
    %c0_8 = arith.constant 0 : index
    %c0_9 = arith.constant 0 : index
    %10 = vector.load %arg10[%c0_8, %c0_9] : memref<8x9xf32, #tpu.memory_space<vmem>>, vector<8x9xf32>
    %11 = vector.extract_strided_slice %8 {offsets = [0, 0], sizes = [23, 8], strides = [1, 1]} : vector<536x8xf32> to vector<23x8xf32>
    %12 = vector.extract_strided_slice %8 {offsets = [23, 0], sizes = [23, 8], strides = [1, 1]} : vector<536x8xf32> to vector<23x8xf32>
    %13 = arith.maximumf %11, %12 : vector<23x8xf32>
    %cst_10 = arith.constant dense<0.000000e+00> : vector<22x8xf32>
    %14 = tpu.matmul %9, %13, %cst_10 {dimension_numbers = #tpu.dot_dimension_numbers<[1], [0], [0], [1], [0, 0, 1, 1], [], []>} : vector<22x23xf32>, vector<23x8xf32>, vector<22x8xf32> -> vector<22x8xf32>
    %15 = vector.extract_strided_slice %14 {offsets = [0, 0], sizes = [11, 8], strides = [1, 1]} : vector<22x8xf32> to vector<11x8xf32>
    %16 = vector.extract_strided_slice %14 {offsets = [11, 0], sizes = [11, 8], strides = [1, 1]} : vector<22x8xf32> to vector<11x8xf32>
    %17 = arith.maximumf %15, %16 : vector<11x8xf32>
    %18 = vector.extract_strided_slice %8 {offsets = [46, 0], sizes = [23, 8], strides = [1, 1]} : vector<536x8xf32> to vector<23x8xf32>
    %19 = vector.extract_strided_slice %8 {offsets = [69, 0], sizes = [23, 8], strides = [1, 1]} : vector<536x8xf32> to vector<23x8xf32>
    %20 = arith.maximumf %18, %19 : vector<23x8xf32>
    %cst_11 = arith.constant dense<0.000000e+00> : vector<22x8xf32>
    %21 = tpu.matmul %9, %20, %cst_11 {dimension_numbers = #tpu.dot_dimension_numbers<[1], [0], [0], [1], [0, 0, 1, 1], [], []>} : vector<22x23xf32>, vector<23x8xf32>, vector<22x8xf32> -> vector<22x8xf32>
    %22 = vector.extract_strided_slice %21 {offsets = [0, 0], sizes = [11, 8], strides = [1, 1]} : vector<22x8xf32> to vector<11x8xf32>
    %23 = vector.extract_strided_slice %21 {offsets = [11, 0], sizes = [11, 8], strides = [1, 1]} : vector<22x8xf32> to vector<11x8xf32>
    %24 = arith.maximumf %22, %23 : vector<11x8xf32>
    %25 = vector.extract_strided_slice %8 {offsets = [92, 0], sizes = [23, 8], strides = [1, 1]} : vector<536x8xf32> to vector<23x8xf32>
    %26 = vector.extract_strided_slice %8 {offsets = [115, 0], sizes = [23, 8], strides = [1, 1]} : vector<536x8xf32> to vector<23x8xf32>
    %27 = arith.maximumf %25, %26 : vector<23x8xf32>
    %cst_12 = arith.constant dense<0.000000e+00> : vector<22x8xf32>
    %28 = tpu.matmul %9, %27, %cst_12 {dimension_numbers = #tpu.dot_dimension_numbers<[1], [0], [0], [1], [0, 0, 1, 1], [], []>} : vector<22x23xf32>, vector<23x8xf32>, vector<22x8xf32> -> vector<22x8xf32>
    %29 = vector.extract_strided_slice %28 {offsets = [0, 0], sizes = [11, 8], strides = [1, 1]} : vector<22x8xf32> to vector<11x8xf32>
    %30 = vector.extract_strided_slice %28 {offsets = [11, 0], sizes = [11, 8], strides = [1, 1]} : vector<22x8xf32> to vector<11x8xf32>
    %31 = arith.maximumf %29, %30 : vector<11x8xf32>
    %32 = vector.extract_strided_slice %8 {offsets = [138, 0], sizes = [23, 8], strides = [1, 1]} : vector<536x8xf32> to vector<23x8xf32>
    %33 = vector.extract_strided_slice %8 {offsets = [161, 0], sizes = [23, 8], strides = [1, 1]} : vector<536x8xf32> to vector<23x8xf32>
    %34 = arith.maximumf %32, %33 : vector<23x8xf32>
    %cst_13 = arith.constant dense<0.000000e+00> : vector<22x8xf32>
    %35 = tpu.matmul %9, %34, %cst_13 {dimension_numbers = #tpu.dot_dimension_numbers<[1], [0], [0], [1], [0, 0, 1, 1], [], []>} : vector<22x23xf32>, vector<23x8xf32>, vector<22x8xf32> -> vector<22x8xf32>
    %36 = vector.extract_strided_slice %35 {offsets = [0, 0], sizes = [11, 8], strides = [1, 1]} : vector<22x8xf32> to vector<11x8xf32>
    %37 = vector.extract_strided_slice %35 {offsets = [11, 0], sizes = [11, 8], strides = [1, 1]} : vector<22x8xf32> to vector<11x8xf32>
    %38 = arith.maximumf %36, %37 : vector<11x8xf32>
    %39 = vector.extract_strided_slice %8 {offsets = [184, 0], sizes = [23, 8], strides = [1, 1]} : vector<536x8xf32> to vector<23x8xf32>
    %40 = vector.extract_strided_slice %8 {offsets = [207, 0], sizes = [23, 8], strides = [1, 1]} : vector<536x8xf32> to vector<23x8xf32>
    %41 = arith.maximumf %39, %40 : vector<23x8xf32>
    %cst_14 = arith.constant dense<0.000000e+00> : vector<22x8xf32>
    %42 = tpu.matmul %9, %41, %cst_14 {dimension_numbers = #tpu.dot_dimension_numbers<[1], [0], [0], [1], [0, 0, 1, 1], [], []>} : vector<22x23xf32>, vector<23x8xf32>, vector<22x8xf32> -> vector<22x8xf32>
    %43 = vector.extract_strided_slice %42 {offsets = [0, 0], sizes = [11, 8], strides = [1, 1]} : vector<22x8xf32> to vector<11x8xf32>
    %44 = vector.extract_strided_slice %42 {offsets = [11, 0], sizes = [11, 8], strides = [1, 1]} : vector<22x8xf32> to vector<11x8xf32>
    %45 = arith.maximumf %43, %44 : vector<11x8xf32>
    %46 = vector.extract_strided_slice %8 {offsets = [230, 0], sizes = [23, 8], strides = [1, 1]} : vector<536x8xf32> to vector<23x8xf32>
    %47 = vector.extract_strided_slice %8 {offsets = [253, 0], sizes = [23, 8], strides = [1, 1]} : vector<536x8xf32> to vector<23x8xf32>
    %48 = arith.maximumf %46, %47 : vector<23x8xf32>
    %cst_15 = arith.constant dense<0.000000e+00> : vector<22x8xf32>
    %49 = tpu.matmul %9, %48, %cst_15 {dimension_numbers = #tpu.dot_dimension_numbers<[1], [0], [0], [1], [0, 0, 1, 1], [], []>} : vector<22x23xf32>, vector<23x8xf32>, vector<22x8xf32> -> vector<22x8xf32>
    %50 = vector.extract_strided_slice %49 {offsets = [0, 0], sizes = [11, 8], strides = [1, 1]} : vector<22x8xf32> to vector<11x8xf32>
    %51 = vector.extract_strided_slice %49 {offsets = [11, 0], sizes = [11, 8], strides = [1, 1]} : vector<22x8xf32> to vector<11x8xf32>
    %52 = arith.maximumf %50, %51 : vector<11x8xf32>
    %53 = vector.extract_strided_slice %8 {offsets = [276, 0], sizes = [23, 8], strides = [1, 1]} : vector<536x8xf32> to vector<23x8xf32>
    %54 = vector.extract_strided_slice %8 {offsets = [299, 0], sizes = [23, 8], strides = [1, 1]} : vector<536x8xf32> to vector<23x8xf32>
    %55 = arith.maximumf %53, %54 : vector<23x8xf32>
    %cst_16 = arith.constant dense<0.000000e+00> : vector<22x8xf32>
    %56 = tpu.matmul %9, %55, %cst_16 {dimension_numbers = #tpu.dot_dimension_numbers<[1], [0], [0], [1], [0, 0, 1, 1], [], []>} : vector<22x23xf32>, vector<23x8xf32>, vector<22x8xf32> -> vector<22x8xf32>
    %57 = vector.extract_strided_slice %56 {offsets = [0, 0], sizes = [11, 8], strides = [1, 1]} : vector<22x8xf32> to vector<11x8xf32>
    %58 = vector.extract_strided_slice %56 {offsets = [11, 0], sizes = [11, 8], strides = [1, 1]} : vector<22x8xf32> to vector<11x8xf32>
    %59 = arith.maximumf %57, %58 : vector<11x8xf32>
    %60 = vector.extract_strided_slice %8 {offsets = [322, 0], sizes = [23, 8], strides = [1, 1]} : vector<536x8xf32> to vector<23x8xf32>
    %61 = vector.extract_strided_slice %8 {offsets = [345, 0], sizes = [23, 8], strides = [1, 1]} : vector<536x8xf32> to vector<23x8xf32>
    %62 = arith.maximumf %60, %61 : vector<23x8xf32>
    %cst_17 = arith.constant dense<0.000000e+00> : vector<22x8xf32>
    %63 = tpu.matmul %9, %62, %cst_17 {dimension_numbers = #tpu.dot_dimension_numbers<[1], [0], [0], [1], [0, 0, 1, 1], [], []>} : vector<22x23xf32>, vector<23x8xf32>, vector<22x8xf32> -> vector<22x8xf32>
    %64 = vector.extract_strided_slice %63 {offsets = [0, 0], sizes = [11, 8], strides = [1, 1]} : vector<22x8xf32> to vector<11x8xf32>
    %65 = vector.extract_strided_slice %63 {offsets = [11, 0], sizes = [11, 8], strides = [1, 1]} : vector<22x8xf32> to vector<11x8xf32>
    %66 = arith.maximumf %64, %65 : vector<11x8xf32>
    %67 = vector.extract_strided_slice %8 {offsets = [368, 0], sizes = [23, 8], strides = [1, 1]} : vector<536x8xf32> to vector<23x8xf32>
    %68 = vector.extract_strided_slice %8 {offsets = [391, 0], sizes = [23, 8], strides = [1, 1]} : vector<536x8xf32> to vector<23x8xf32>
    %69 = arith.maximumf %67, %68 : vector<23x8xf32>
    %cst_18 = arith.constant dense<0.000000e+00> : vector<22x8xf32>
    %70 = tpu.matmul %9, %69, %cst_18 {dimension_numbers = #tpu.dot_dimension_numbers<[1], [0], [0], [1], [0, 0, 1, 1], [], []>} : vector<22x23xf32>, vector<23x8xf32>, vector<22x8xf32> -> vector<22x8xf32>
    %71 = vector.extract_strided_slice %70 {offsets = [0, 0], sizes = [11, 8], strides = [1, 1]} : vector<22x8xf32> to vector<11x8xf32>
    %72 = vector.extract_strided_slice %70 {offsets = [11, 0], sizes = [11, 8], strides = [1, 1]} : vector<22x8xf32> to vector<11x8xf32>
    %73 = arith.maximumf %71, %72 : vector<11x8xf32>
    %74 = vector.extract_strided_slice %8 {offsets = [414, 0], sizes = [23, 8], strides = [1, 1]} : vector<536x8xf32> to vector<23x8xf32>
    %75 = vector.extract_strided_slice %8 {offsets = [437, 0], sizes = [23, 8], strides = [1, 1]} : vector<536x8xf32> to vector<23x8xf32>
    %76 = arith.maximumf %74, %75 : vector<23x8xf32>
    %cst_19 = arith.constant dense<0.000000e+00> : vector<22x8xf32>
    %77 = tpu.matmul %9, %76, %cst_19 {dimension_numbers = #tpu.dot_dimension_numbers<[1], [0], [0], [1], [0, 0, 1, 1], [], []>} : vector<22x23xf32>, vector<23x8xf32>, vector<22x8xf32> -> vector<22x8xf32>
    %78 = vector.extract_strided_slice %77 {offsets = [0, 0], sizes = [11, 8], strides = [1, 1]} : vector<22x8xf32> to vector<11x8xf32>
    %79 = vector.extract_strided_slice %77 {offsets = [11, 0], sizes = [11, 8], strides = [1, 1]} : vector<22x8xf32> to vector<11x8xf32>
    %80 = arith.maximumf %78, %79 : vector<11x8xf32>
    %c0_20 = arith.constant 0 : index
    %c0_21 = arith.constant 0 : index
    %81 = vector.load %arg4[%c0_20, %c0_21] : memref<1x16xf32, #tpu.memory_space<vmem>>, vector<1x16xf32>
    %cst_22 = arith.constant 0.000000e+00 : f32
    %82 = vector.broadcast %cst_22 : f32 to vector<9x16xf32>
    %83 = vector.extract_strided_slice %17 {offsets = [0, 0], sizes = [9, 8], strides = [1, 1]} : vector<11x8xf32> to vector<9x8xf32>
    %84 = arith.truncf %83 : vector<9x8xf32> to vector<9x8xbf16>
    %c0_23 = arith.constant 0 : index
    %c0_24 = arith.constant 0 : index
    %c0_25 = arith.constant 0 : index
    %c0_26 = arith.constant 0 : index
    %85 = vector.load %arg3[%c0_23, %c0_24, %c0_25, %c0_26] : memref<3x3x8x16xbf16, #tpu.memory_space<vmem>>, vector<1x1x8x16xbf16>
    %86 = vector.shape_cast %85 : vector<1x1x8x16xbf16> to vector<8x16xbf16>
    %cst_27 = arith.constant dense<0.000000e+00> : vector<9x16xf32>
    %87 = tpu.matmul %84, %86, %cst_27 {dimension_numbers = #tpu.dot_dimension_numbers<[1], [0], [0], [1], [0, 0, 1, 1], [], []>} : vector<9x8xbf16>, vector<8x16xbf16>, vector<9x16xf32> -> vector<9x16xf32>
    %88 = arith.addf %82, %87 : vector<9x16xf32>
    %89 = vector.extract_strided_slice %17 {offsets = [1, 0], sizes = [9, 8], strides = [1, 1]} : vector<11x8xf32> to vector<9x8xf32>
    %90 = arith.truncf %89 : vector<9x8xf32> to vector<9x8xbf16>
    %c0_28 = arith.constant 0 : index
    %c1 = arith.constant 1 : index
    %c0_29 = arith.constant 0 : index
    %c0_30 = arith.constant 0 : index
    %91 = vector.load %arg3[%c0_28, %c1, %c0_29, %c0_30] : memref<3x3x8x16xbf16, #tpu.memory_space<vmem>>, vector<1x1x8x16xbf16>
    %92 = vector.shape_cast %91 : vector<1x1x8x16xbf16> to vector<8x16xbf16>
    %cst_31 = arith.constant dense<0.000000e+00> : vector<9x16xf32>
    %93 = tpu.matmul %90, %92, %cst_31 {dimension_numbers = #tpu.dot_dimension_numbers<[1], [0], [0], [1], [0, 0, 1, 1], [], []>} : vector<9x8xbf16>, vector<8x16xbf16>, vector<9x16xf32> -> vector<9x16xf32>
    %94 = arith.addf %88, %93 : vector<9x16xf32>
    %95 = vector.extract_strided_slice %17 {offsets = [2, 0], sizes = [9, 8], strides = [1, 1]} : vector<11x8xf32> to vector<9x8xf32>
    %96 = arith.truncf %95 : vector<9x8xf32> to vector<9x8xbf16>
    %c0_32 = arith.constant 0 : index
    %c2 = arith.constant 2 : index
    %c0_33 = arith.constant 0 : index
    %c0_34 = arith.constant 0 : index
    %97 = vector.load %arg3[%c0_32, %c2, %c0_33, %c0_34] : memref<3x3x8x16xbf16, #tpu.memory_space<vmem>>, vector<1x1x8x16xbf16>
    %98 = vector.shape_cast %97 : vector<1x1x8x16xbf16> to vector<8x16xbf16>
    %cst_35 = arith.constant dense<0.000000e+00> : vector<9x16xf32>
    %99 = tpu.matmul %96, %98, %cst_35 {dimension_numbers = #tpu.dot_dimension_numbers<[1], [0], [0], [1], [0, 0, 1, 1], [], []>} : vector<9x8xbf16>, vector<8x16xbf16>, vector<9x16xf32> -> vector<9x16xf32>
    %100 = arith.addf %94, %99 : vector<9x16xf32>
    %101 = vector.extract_strided_slice %24 {offsets = [0, 0], sizes = [9, 8], strides = [1, 1]} : vector<11x8xf32> to vector<9x8xf32>
    %102 = arith.truncf %101 : vector<9x8xf32> to vector<9x8xbf16>
    %c1_36 = arith.constant 1 : index
    %c0_37 = arith.constant 0 : index
    %c0_38 = arith.constant 0 : index
    %c0_39 = arith.constant 0 : index
    %103 = vector.load %arg3[%c1_36, %c0_37, %c0_38, %c0_39] : memref<3x3x8x16xbf16, #tpu.memory_space<vmem>>, vector<1x1x8x16xbf16>
    %104 = vector.shape_cast %103 : vector<1x1x8x16xbf16> to vector<8x16xbf16>
    %cst_40 = arith.constant dense<0.000000e+00> : vector<9x16xf32>
    %105 = tpu.matmul %102, %104, %cst_40 {dimension_numbers = #tpu.dot_dimension_numbers<[1], [0], [0], [1], [0, 0, 1, 1], [], []>} : vector<9x8xbf16>, vector<8x16xbf16>, vector<9x16xf32> -> vector<9x16xf32>
    %106 = arith.addf %100, %105 : vector<9x16xf32>
    %107 = vector.extract_strided_slice %24 {offsets = [1, 0], sizes = [9, 8], strides = [1, 1]} : vector<11x8xf32> to vector<9x8xf32>
    %108 = arith.truncf %107 : vector<9x8xf32> to vector<9x8xbf16>
    %c1_41 = arith.constant 1 : index
    %c1_42 = arith.constant 1 : index
    %c0_43 = arith.constant 0 : index
    %c0_44 = arith.constant 0 : index
    %109 = vector.load %arg3[%c1_41, %c1_42, %c0_43, %c0_44] : memref<3x3x8x16xbf16, #tpu.memory_space<vmem>>, vector<1x1x8x16xbf16>
    %110 = vector.shape_cast %109 : vector<1x1x8x16xbf16> to vector<8x16xbf16>
    %cst_45 = arith.constant dense<0.000000e+00> : vector<9x16xf32>
    %111 = tpu.matmul %108, %110, %cst_45 {dimension_numbers = #tpu.dot_dimension_numbers<[1], [0], [0], [1], [0, 0, 1, 1], [], []>} : vector<9x8xbf16>, vector<8x16xbf16>, vector<9x16xf32> -> vector<9x16xf32>
    %112 = arith.addf %106, %111 : vector<9x16xf32>
    %113 = vector.extract_strided_slice %24 {offsets = [2, 0], sizes = [9, 8], strides = [1, 1]} : vector<11x8xf32> to vector<9x8xf32>
    %114 = arith.truncf %113 : vector<9x8xf32> to vector<9x8xbf16>
    %c1_46 = arith.constant 1 : index
    %c2_47 = arith.constant 2 : index
    %c0_48 = arith.constant 0 : index
    %c0_49 = arith.constant 0 : index
    %115 = vector.load %arg3[%c1_46, %c2_47, %c0_48, %c0_49] : memref<3x3x8x16xbf16, #tpu.memory_space<vmem>>, vector<1x1x8x16xbf16>
    %116 = vector.shape_cast %115 : vector<1x1x8x16xbf16> to vector<8x16xbf16>
    %cst_50 = arith.constant dense<0.000000e+00> : vector<9x16xf32>
    %117 = tpu.matmul %114, %116, %cst_50 {dimension_numbers = #tpu.dot_dimension_numbers<[1], [0], [0], [1], [0, 0, 1, 1], [], []>} : vector<9x8xbf16>, vector<8x16xbf16>, vector<9x16xf32> -> vector<9x16xf32>
    %118 = arith.addf %112, %117 : vector<9x16xf32>
    %119 = vector.extract_strided_slice %31 {offsets = [0, 0], sizes = [9, 8], strides = [1, 1]} : vector<11x8xf32> to vector<9x8xf32>
    %120 = arith.truncf %119 : vector<9x8xf32> to vector<9x8xbf16>
    %c2_51 = arith.constant 2 : index
    %c0_52 = arith.constant 0 : index
    %c0_53 = arith.constant 0 : index
    %c0_54 = arith.constant 0 : index
    %121 = vector.load %arg3[%c2_51, %c0_52, %c0_53, %c0_54] : memref<3x3x8x16xbf16, #tpu.memory_space<vmem>>, vector<1x1x8x16xbf16>
    %122 = vector.shape_cast %121 : vector<1x1x8x16xbf16> to vector<8x16xbf16>
    %cst_55 = arith.constant dense<0.000000e+00> : vector<9x16xf32>
    %123 = tpu.matmul %120, %122, %cst_55 {dimension_numbers = #tpu.dot_dimension_numbers<[1], [0], [0], [1], [0, 0, 1, 1], [], []>} : vector<9x8xbf16>, vector<8x16xbf16>, vector<9x16xf32> -> vector<9x16xf32>
    %124 = arith.addf %118, %123 : vector<9x16xf32>
    %125 = vector.extract_strided_slice %31 {offsets = [1, 0], sizes = [9, 8], strides = [1, 1]} : vector<11x8xf32> to vector<9x8xf32>
    %126 = arith.truncf %125 : vector<9x8xf32> to vector<9x8xbf16>
    %c2_56 = arith.constant 2 : index
    %c1_57 = arith.constant 1 : index
    %c0_58 = arith.constant 0 : index
    %c0_59 = arith.constant 0 : index
    %127 = vector.load %arg3[%c2_56, %c1_57, %c0_58, %c0_59] : memref<3x3x8x16xbf16, #tpu.memory_space<vmem>>, vector<1x1x8x16xbf16>
    %128 = vector.shape_cast %127 : vector<1x1x8x16xbf16> to vector<8x16xbf16>
    %cst_60 = arith.constant dense<0.000000e+00> : vector<9x16xf32>
    %129 = tpu.matmul %126, %128, %cst_60 {dimension_numbers = #tpu.dot_dimension_numbers<[1], [0], [0], [1], [0, 0, 1, 1], [], []>} : vector<9x8xbf16>, vector<8x16xbf16>, vector<9x16xf32> -> vector<9x16xf32>
    %130 = arith.addf %124, %129 : vector<9x16xf32>
    %131 = vector.extract_strided_slice %31 {offsets = [2, 0], sizes = [9, 8], strides = [1, 1]} : vector<11x8xf32> to vector<9x8xf32>
    %132 = arith.truncf %131 : vector<9x8xf32> to vector<9x8xbf16>
    %c2_61 = arith.constant 2 : index
    %c2_62 = arith.constant 2 : index
    %c0_63 = arith.constant 0 : index
    %c0_64 = arith.constant 0 : index
    %133 = vector.load %arg3[%c2_61, %c2_62, %c0_63, %c0_64] : memref<3x3x8x16xbf16, #tpu.memory_space<vmem>>, vector<1x1x8x16xbf16>
    %134 = vector.shape_cast %133 : vector<1x1x8x16xbf16> to vector<8x16xbf16>
    %cst_65 = arith.constant dense<0.000000e+00> : vector<9x16xf32>
    %135 = tpu.matmul %132, %134, %cst_65 {dimension_numbers = #tpu.dot_dimension_numbers<[1], [0], [0], [1], [0, 0, 1, 1], [], []>} : vector<9x8xbf16>, vector<8x16xbf16>, vector<9x16xf32> -> vector<9x16xf32>
    %136 = arith.addf %130, %135 : vector<9x16xf32>
    %137 = vector.broadcast %81 : vector<1x16xf32> to vector<9x16xf32>
    %138 = arith.addf %136, %137 : vector<9x16xf32>
    %cst_66 = arith.constant 0.000000e+00 : f32
    %139 = vector.broadcast %cst_66 : f32 to vector<9x16xf32>
    %140 = arith.cmpf oge, %138, %139 : vector<9x16xf32>
    %cst_67 = arith.constant 0.00999999977 : f32
    %141 = vector.broadcast %cst_67 : f32 to vector<9x16xf32>
    %142 = arith.mulf %141, %138 : vector<9x16xf32>
    %143 = arith.select %140, %138, %142 : vector<9x16xi1>, vector<9x16xf32>
    %cst_68 = arith.constant dense<0.000000e+00> : vector<8x16xf32>
    %144 = tpu.matmul %10, %143, %cst_68 {dimension_numbers = #tpu.dot_dimension_numbers<[1], [0], [0], [1], [0, 0, 1, 1], [], []>} : vector<8x9xf32>, vector<9x16xf32>, vector<8x16xf32> -> vector<8x16xf32>
    %145 = vector.extract_strided_slice %144 {offsets = [0, 0], sizes = [4, 16], strides = [1, 1]} : vector<8x16xf32> to vector<4x16xf32>
    %146 = vector.extract_strided_slice %144 {offsets = [4, 0], sizes = [4, 16], strides = [1, 1]} : vector<8x16xf32> to vector<4x16xf32>
    %147 = arith.maximumf %145, %146 : vector<4x16xf32>
    %cst_69 = arith.constant 0.000000e+00 : f32
    %148 = vector.broadcast %cst_69 : f32 to vector<9x16xf32>
    %149 = vector.extract_strided_slice %24 {offsets = [0, 0], sizes = [9, 8], strides = [1, 1]} : vector<11x8xf32> to vector<9x8xf32>
    %150 = arith.truncf %149 : vector<9x8xf32> to vector<9x8xbf16>
    %c0_70 = arith.constant 0 : index
    %c0_71 = arith.constant 0 : index
    %c0_72 = arith.constant 0 : index
    %c0_73 = arith.constant 0 : index
    %151 = vector.load %arg3[%c0_70, %c0_71, %c0_72, %c0_73] : memref<3x3x8x16xbf16, #tpu.memory_space<vmem>>, vector<1x1x8x16xbf16>
    %152 = vector.shape_cast %151 : vector<1x1x8x16xbf16> to vector<8x16xbf16>
    %cst_74 = arith.constant dense<0.000000e+00> : vector<9x16xf32>
    %153 = tpu.matmul %150, %152, %cst_74 {dimension_numbers = #tpu.dot_dimension_numbers<[1], [0], [0], [1], [0, 0, 1, 1], [], []>} : vector<9x8xbf16>, vector<8x16xbf16>, vector<9x16xf32> -> vector<9x16xf32>
    %154 = arith.addf %148, %153 : vector<9x16xf32>
    %155 = vector.extract_strided_slice %24 {offsets = [1, 0], sizes = [9, 8], strides = [1, 1]} : vector<11x8xf32> to vector<9x8xf32>
    %156 = arith.truncf %155 : vector<9x8xf32> to vector<9x8xbf16>
    %c0_75 = arith.constant 0 : index
    %c1_76 = arith.constant 1 : index
    %c0_77 = arith.constant 0 : index
    %c0_78 = arith.constant 0 : index
    %157 = vector.load %arg3[%c0_75, %c1_76, %c0_77, %c0_78] : memref<3x3x8x16xbf16, #tpu.memory_space<vmem>>, vector<1x1x8x16xbf16>
    %158 = vector.shape_cast %157 : vector<1x1x8x16xbf16> to vector<8x16xbf16>
    %cst_79 = arith.constant dense<0.000000e+00> : vector<9x16xf32>
    %159 = tpu.matmul %156, %158, %cst_79 {dimension_numbers = #tpu.dot_dimension_numbers<[1], [0], [0], [1], [0, 0, 1, 1], [], []>} : vector<9x8xbf16>, vector<8x16xbf16>, vector<9x16xf32> -> vector<9x16xf32>
    %160 = arith.addf %154, %159 : vector<9x16xf32>
    %161 = vector.extract_strided_slice %24 {offsets = [2, 0], sizes = [9, 8], strides = [1, 1]} : vector<11x8xf32> to vector<9x8xf32>
    %162 = arith.truncf %161 : vector<9x8xf32> to vector<9x8xbf16>
    %c0_80 = arith.constant 0 : index
    %c2_81 = arith.constant 2 : index
    %c0_82 = arith.constant 0 : index
    %c0_83 = arith.constant 0 : index
    %163 = vector.load %arg3[%c0_80, %c2_81, %c0_82, %c0_83] : memref<3x3x8x16xbf16, #tpu.memory_space<vmem>>, vector<1x1x8x16xbf16>
    %164 = vector.shape_cast %163 : vector<1x1x8x16xbf16> to vector<8x16xbf16>
    %cst_84 = arith.constant dense<0.000000e+00> : vector<9x16xf32>
    %165 = tpu.matmul %162, %164, %cst_84 {dimension_numbers = #tpu.dot_dimension_numbers<[1], [0], [0], [1], [0, 0, 1, 1], [], []>} : vector<9x8xbf16>, vector<8x16xbf16>, vector<9x16xf32> -> vector<9x16xf32>
    %166 = arith.addf %160, %165 : vector<9x16xf32>
    %167 = vector.extract_strided_slice %31 {offsets = [0, 0], sizes = [9, 8], strides = [1, 1]} : vector<11x8xf32> to vector<9x8xf32>
    %168 = arith.truncf %167 : vector<9x8xf32> to vector<9x8xbf16>
    %c1_85 = arith.constant 1 : index
    %c0_86 = arith.constant 0 : index
    %c0_87 = arith.constant 0 : index
    %c0_88 = arith.constant 0 : index
    %169 = vector.load %arg3[%c1_85, %c0_86, %c0_87, %c0_88] : memref<3x3x8x16xbf16, #tpu.memory_space<vmem>>, vector<1x1x8x16xbf16>
    %170 = vector.shape_cast %169 : vector<1x1x8x16xbf16> to vector<8x16xbf16>
    %cst_89 = arith.constant dense<0.000000e+00> : vector<9x16xf32>
    %171 = tpu.matmul %168, %170, %cst_89 {dimension_numbers = #tpu.dot_dimension_numbers<[1], [0], [0], [1], [0, 0, 1, 1], [], []>} : vector<9x8xbf16>, vector<8x16xbf16>, vector<9x16xf32> -> vector<9x16xf32>
    %172 = arith.addf %166, %171 : vector<9x16xf32>
    %173 = vector.extract_strided_slice %31 {offsets = [1, 0], sizes = [9, 8], strides = [1, 1]} : vector<11x8xf32> to vector<9x8xf32>
    %174 = arith.truncf %173 : vector<9x8xf32> to vector<9x8xbf16>
    %c1_90 = arith.constant 1 : index
    %c1_91 = arith.constant 1 : index
    %c0_92 = arith.constant 0 : index
    %c0_93 = arith.constant 0 : index
    %175 = vector.load %arg3[%c1_90, %c1_91, %c0_92, %c0_93] : memref<3x3x8x16xbf16, #tpu.memory_space<vmem>>, vector<1x1x8x16xbf16>
    %176 = vector.shape_cast %175 : vector<1x1x8x16xbf16> to vector<8x16xbf16>
    %cst_94 = arith.constant dense<0.000000e+00> : vector<9x16xf32>
    %177 = tpu.matmul %174, %176, %cst_94 {dimension_numbers = #tpu.dot_dimension_numbers<[1], [0], [0], [1], [0, 0, 1, 1], [], []>} : vector<9x8xbf16>, vector<8x16xbf16>, vector<9x16xf32> -> vector<9x16xf32>
    %178 = arith.addf %172, %177 : vector<9x16xf32>
    %179 = vector.extract_strided_slice %31 {offsets = [2, 0], sizes = [9, 8], strides = [1, 1]} : vector<11x8xf32> to vector<9x8xf32>
    %180 = arith.truncf %179 : vector<9x8xf32> to vector<9x8xbf16>
    %c1_95 = arith.constant 1 : index
    %c2_96 = arith.constant 2 : index
    %c0_97 = arith.constant 0 : index
    %c0_98 = arith.constant 0 : index
    %181 = vector.load %arg3[%c1_95, %c2_96, %c0_97, %c0_98] : memref<3x3x8x16xbf16, #tpu.memory_space<vmem>>, vector<1x1x8x16xbf16>
    %182 = vector.shape_cast %181 : vector<1x1x8x16xbf16> to vector<8x16xbf16>
    %cst_99 = arith.constant dense<0.000000e+00> : vector<9x16xf32>
    %183 = tpu.matmul %180, %182, %cst_99 {dimension_numbers = #tpu.dot_dimension_numbers<[1], [0], [0], [1], [0, 0, 1, 1], [], []>} : vector<9x8xbf16>, vector<8x16xbf16>, vector<9x16xf32> -> vector<9x16xf32>
    %184 = arith.addf %178, %183 : vector<9x16xf32>
    %185 = vector.extract_strided_slice %38 {offsets = [0, 0], sizes = [9, 8], strides = [1, 1]} : vector<11x8xf32> to vector<9x8xf32>
    %186 = arith.truncf %185 : vector<9x8xf32> to vector<9x8xbf16>
    %c2_100 = arith.constant 2 : index
    %c0_101 = arith.constant 0 : index
    %c0_102 = arith.constant 0 : index
    %c0_103 = arith.constant 0 : index
    %187 = vector.load %arg3[%c2_100, %c0_101, %c0_102, %c0_103] : memref<3x3x8x16xbf16, #tpu.memory_space<vmem>>, vector<1x1x8x16xbf16>
    %188 = vector.shape_cast %187 : vector<1x1x8x16xbf16> to vector<8x16xbf16>
    %cst_104 = arith.constant dense<0.000000e+00> : vector<9x16xf32>
    %189 = tpu.matmul %186, %188, %cst_104 {dimension_numbers = #tpu.dot_dimension_numbers<[1], [0], [0], [1], [0, 0, 1, 1], [], []>} : vector<9x8xbf16>, vector<8x16xbf16>, vector<9x16xf32> -> vector<9x16xf32>
    %190 = arith.addf %184, %189 : vector<9x16xf32>
    %191 = vector.extract_strided_slice %38 {offsets = [1, 0], sizes = [9, 8], strides = [1, 1]} : vector<11x8xf32> to vector<9x8xf32>
    %192 = arith.truncf %191 : vector<9x8xf32> to vector<9x8xbf16>
    %c2_105 = arith.constant 2 : index
    %c1_106 = arith.constant 1 : index
    %c0_107 = arith.constant 0 : index
    %c0_108 = arith.constant 0 : index
    %193 = vector.load %arg3[%c2_105, %c1_106, %c0_107, %c0_108] : memref<3x3x8x16xbf16, #tpu.memory_space<vmem>>, vector<1x1x8x16xbf16>
    %194 = vector.shape_cast %193 : vector<1x1x8x16xbf16> to vector<8x16xbf16>
    %cst_109 = arith.constant dense<0.000000e+00> : vector<9x16xf32>
    %195 = tpu.matmul %192, %194, %cst_109 {dimension_numbers = #tpu.dot_dimension_numbers<[1], [0], [0], [1], [0, 0, 1, 1], [], []>} : vector<9x8xbf16>, vector<8x16xbf16>, vector<9x16xf32> -> vector<9x16xf32>
    %196 = arith.addf %190, %195 : vector<9x16xf32>
    %197 = vector.extract_strided_slice %38 {offsets = [2, 0], sizes = [9, 8], strides = [1, 1]} : vector<11x8xf32> to vector<9x8xf32>
    %198 = arith.truncf %197 : vector<9x8xf32> to vector<9x8xbf16>
    %c2_110 = arith.constant 2 : index
    %c2_111 = arith.constant 2 : index
    %c0_112 = arith.constant 0 : index
    %c0_113 = arith.constant 0 : index
    %199 = vector.load %arg3[%c2_110, %c2_111, %c0_112, %c0_113] : memref<3x3x8x16xbf16, #tpu.memory_space<vmem>>, vector<1x1x8x16xbf16>
    %200 = vector.shape_cast %199 : vector<1x1x8x16xbf16> to vector<8x16xbf16>
    %cst_114 = arith.constant dense<0.000000e+00> : vector<9x16xf32>
    %201 = tpu.matmul %198, %200, %cst_114 {dimension_numbers = #tpu.dot_dimension_numbers<[1], [0], [0], [1], [0, 0, 1, 1], [], []>} : vector<9x8xbf16>, vector<8x16xbf16>, vector<9x16xf32> -> vector<9x16xf32>
    %202 = arith.addf %196, %201 : vector<9x16xf32>
    %203 = vector.broadcast %81 : vector<1x16xf32> to vector<9x16xf32>
    %204 = arith.addf %202, %203 : vector<9x16xf32>
    %cst_115 = arith.constant 0.000000e+00 : f32
    %205 = vector.broadcast %cst_115 : f32 to vector<9x16xf32>
    %206 = arith.cmpf oge, %204, %205 : vector<9x16xf32>
    %cst_116 = arith.constant 0.00999999977 : f32
    %207 = vector.broadcast %cst_116 : f32 to vector<9x16xf32>
    %208 = arith.mulf %207, %204 : vector<9x16xf32>
    %209 = arith.select %206, %204, %208 : vector<9x16xi1>, vector<9x16xf32>
    %cst_117 = arith.constant dense<0.000000e+00> : vector<8x16xf32>
    %210 = tpu.matmul %10, %209, %cst_117 {dimension_numbers = #tpu.dot_dimension_numbers<[1], [0], [0], [1], [0, 0, 1, 1], [], []>} : vector<8x9xf32>, vector<9x16xf32>, vector<8x16xf32> -> vector<8x16xf32>
    %211 = vector.extract_strided_slice %210 {offsets = [0, 0], sizes = [4, 16], strides = [1, 1]} : vector<8x16xf32> to vector<4x16xf32>
    %212 = vector.extract_strided_slice %210 {offsets = [4, 0], sizes = [4, 16], strides = [1, 1]} : vector<8x16xf32> to vector<4x16xf32>
    %213 = arith.maximumf %211, %212 : vector<4x16xf32>
    %214 = arith.maximumf %147, %213 : vector<4x16xf32>
    %cst_118 = arith.constant 0.000000e+00 : f32
    %215 = vector.broadcast %cst_118 : f32 to vector<9x16xf32>
    %216 = vector.extract_strided_slice %31 {offsets = [0, 0], sizes = [9, 8], strides = [1, 1]} : vector<11x8xf32> to vector<9x8xf32>
    %217 = arith.truncf %216 : vector<9x8xf32> to vector<9x8xbf16>
    %c0_119 = arith.constant 0 : index
    %c0_120 = arith.constant 0 : index
    %c0_121 = arith.constant 0 : index
    %c0_122 = arith.constant 0 : index
    %218 = vector.load %arg3[%c0_119, %c0_120, %c0_121, %c0_122] : memref<3x3x8x16xbf16, #tpu.memory_space<vmem>>, vector<1x1x8x16xbf16>
    %219 = vector.shape_cast %218 : vector<1x1x8x16xbf16> to vector<8x16xbf16>
    %cst_123 = arith.constant dense<0.000000e+00> : vector<9x16xf32>
    %220 = tpu.matmul %217, %219, %cst_123 {dimension_numbers = #tpu.dot_dimension_numbers<[1], [0], [0], [1], [0, 0, 1, 1], [], []>} : vector<9x8xbf16>, vector<8x16xbf16>, vector<9x16xf32> -> vector<9x16xf32>
    %221 = arith.addf %215, %220 : vector<9x16xf32>
    %222 = vector.extract_strided_slice %31 {offsets = [1, 0], sizes = [9, 8], strides = [1, 1]} : vector<11x8xf32> to vector<9x8xf32>
    %223 = arith.truncf %222 : vector<9x8xf32> to vector<9x8xbf16>
    %c0_124 = arith.constant 0 : index
    %c1_125 = arith.constant 1 : index
    %c0_126 = arith.constant 0 : index
    %c0_127 = arith.constant 0 : index
    %224 = vector.load %arg3[%c0_124, %c1_125, %c0_126, %c0_127] : memref<3x3x8x16xbf16, #tpu.memory_space<vmem>>, vector<1x1x8x16xbf16>
    %225 = vector.shape_cast %224 : vector<1x1x8x16xbf16> to vector<8x16xbf16>
    %cst_128 = arith.constant dense<0.000000e+00> : vector<9x16xf32>
    %226 = tpu.matmul %223, %225, %cst_128 {dimension_numbers = #tpu.dot_dimension_numbers<[1], [0], [0], [1], [0, 0, 1, 1], [], []>} : vector<9x8xbf16>, vector<8x16xbf16>, vector<9x16xf32> -> vector<9x16xf32>
    %227 = arith.addf %221, %226 : vector<9x16xf32>
    %228 = vector.extract_strided_slice %31 {offsets = [2, 0], sizes = [9, 8], strides = [1, 1]} : vector<11x8xf32> to vector<9x8xf32>
    %229 = arith.truncf %228 : vector<9x8xf32> to vector<9x8xbf16>
    %c0_129 = arith.constant 0 : index
    %c2_130 = arith.constant 2 : index
    %c0_131 = arith.constant 0 : index
    %c0_132 = arith.constant 0 : index
    %230 = vector.load %arg3[%c0_129, %c2_130, %c0_131, %c0_132] : memref<3x3x8x16xbf16, #tpu.memory_space<vmem>>, vector<1x1x8x16xbf16>
    %231 = vector.shape_cast %230 : vector<1x1x8x16xbf16> to vector<8x16xbf16>
    %cst_133 = arith.constant dense<0.000000e+00> : vector<9x16xf32>
    %232 = tpu.matmul %229, %231, %cst_133 {dimension_numbers = #tpu.dot_dimension_numbers<[1], [0], [0], [1], [0, 0, 1, 1], [], []>} : vector<9x8xbf16>, vector<8x16xbf16>, vector<9x16xf32> -> vector<9x16xf32>
    %233 = arith.addf %227, %232 : vector<9x16xf32>
    %234 = vector.extract_strided_slice %38 {offsets = [0, 0], sizes = [9, 8], strides = [1, 1]} : vector<11x8xf32> to vector<9x8xf32>
    %235 = arith.truncf %234 : vector<9x8xf32> to vector<9x8xbf16>
    %c1_134 = arith.constant 1 : index
    %c0_135 = arith.constant 0 : index
    %c0_136 = arith.constant 0 : index
    %c0_137 = arith.constant 0 : index
    %236 = vector.load %arg3[%c1_134, %c0_135, %c0_136, %c0_137] : memref<3x3x8x16xbf16, #tpu.memory_space<vmem>>, vector<1x1x8x16xbf16>
    %237 = vector.shape_cast %236 : vector<1x1x8x16xbf16> to vector<8x16xbf16>
    %cst_138 = arith.constant dense<0.000000e+00> : vector<9x16xf32>
    %238 = tpu.matmul %235, %237, %cst_138 {dimension_numbers = #tpu.dot_dimension_numbers<[1], [0], [0], [1], [0, 0, 1, 1], [], []>} : vector<9x8xbf16>, vector<8x16xbf16>, vector<9x16xf32> -> vector<9x16xf32>
    %239 = arith.addf %233, %238 : vector<9x16xf32>
    %240 = vector.extract_strided_slice %38 {offsets = [1, 0], sizes = [9, 8], strides = [1, 1]} : vector<11x8xf32> to vector<9x8xf32>
    %241 = arith.truncf %240 : vector<9x8xf32> to vector<9x8xbf16>
    %c1_139 = arith.constant 1 : index
    %c1_140 = arith.constant 1 : index
    %c0_141 = arith.constant 0 : index
    %c0_142 = arith.constant 0 : index
    %242 = vector.load %arg3[%c1_139, %c1_140, %c0_141, %c0_142] : memref<3x3x8x16xbf16, #tpu.memory_space<vmem>>, vector<1x1x8x16xbf16>
    %243 = vector.shape_cast %242 : vector<1x1x8x16xbf16> to vector<8x16xbf16>
    %cst_143 = arith.constant dense<0.000000e+00> : vector<9x16xf32>
    %244 = tpu.matmul %241, %243, %cst_143 {dimension_numbers = #tpu.dot_dimension_numbers<[1], [0], [0], [1], [0, 0, 1, 1], [], []>} : vector<9x8xbf16>, vector<8x16xbf16>, vector<9x16xf32> -> vector<9x16xf32>
    %245 = arith.addf %239, %244 : vector<9x16xf32>
    %246 = vector.extract_strided_slice %38 {offsets = [2, 0], sizes = [9, 8], strides = [1, 1]} : vector<11x8xf32> to vector<9x8xf32>
    %247 = arith.truncf %246 : vector<9x8xf32> to vector<9x8xbf16>
    %c1_144 = arith.constant 1 : index
    %c2_145 = arith.constant 2 : index
    %c0_146 = arith.constant 0 : index
    %c0_147 = arith.constant 0 : index
    %248 = vector.load %arg3[%c1_144, %c2_145, %c0_146, %c0_147] : memref<3x3x8x16xbf16, #tpu.memory_space<vmem>>, vector<1x1x8x16xbf16>
    %249 = vector.shape_cast %248 : vector<1x1x8x16xbf16> to vector<8x16xbf16>
    %cst_148 = arith.constant dense<0.000000e+00> : vector<9x16xf32>
    %250 = tpu.matmul %247, %249, %cst_148 {dimension_numbers = #tpu.dot_dimension_numbers<[1], [0], [0], [1], [0, 0, 1, 1], [], []>} : vector<9x8xbf16>, vector<8x16xbf16>, vector<9x16xf32> -> vector<9x16xf32>
    %251 = arith.addf %245, %250 : vector<9x16xf32>
    %252 = vector.extract_strided_slice %45 {offsets = [0, 0], sizes = [9, 8], strides = [1, 1]} : vector<11x8xf32> to vector<9x8xf32>
    %253 = arith.truncf %252 : vector<9x8xf32> to vector<9x8xbf16>
    %c2_149 = arith.constant 2 : index
    %c0_150 = arith.constant 0 : index
    %c0_151 = arith.constant 0 : index
    %c0_152 = arith.constant 0 : index
    %254 = vector.load %arg3[%c2_149, %c0_150, %c0_151, %c0_152] : memref<3x3x8x16xbf16, #tpu.memory_space<vmem>>, vector<1x1x8x16xbf16>
    %255 = vector.shape_cast %254 : vector<1x1x8x16xbf16> to vector<8x16xbf16>
    %cst_153 = arith.constant dense<0.000000e+00> : vector<9x16xf32>
    %256 = tpu.matmul %253, %255, %cst_153 {dimension_numbers = #tpu.dot_dimension_numbers<[1], [0], [0], [1], [0, 0, 1, 1], [], []>} : vector<9x8xbf16>, vector<8x16xbf16>, vector<9x16xf32> -> vector<9x16xf32>
    %257 = arith.addf %251, %256 : vector<9x16xf32>
    %258 = vector.extract_strided_slice %45 {offsets = [1, 0], sizes = [9, 8], strides = [1, 1]} : vector<11x8xf32> to vector<9x8xf32>
    %259 = arith.truncf %258 : vector<9x8xf32> to vector<9x8xbf16>
    %c2_154 = arith.constant 2 : index
    %c1_155 = arith.constant 1 : index
    %c0_156 = arith.constant 0 : index
    %c0_157 = arith.constant 0 : index
    %260 = vector.load %arg3[%c2_154, %c1_155, %c0_156, %c0_157] : memref<3x3x8x16xbf16, #tpu.memory_space<vmem>>, vector<1x1x8x16xbf16>
    %261 = vector.shape_cast %260 : vector<1x1x8x16xbf16> to vector<8x16xbf16>
    %cst_158 = arith.constant dense<0.000000e+00> : vector<9x16xf32>
    %262 = tpu.matmul %259, %261, %cst_158 {dimension_numbers = #tpu.dot_dimension_numbers<[1], [0], [0], [1], [0, 0, 1, 1], [], []>} : vector<9x8xbf16>, vector<8x16xbf16>, vector<9x16xf32> -> vector<9x16xf32>
    %263 = arith.addf %257, %262 : vector<9x16xf32>
    %264 = vector.extract_strided_slice %45 {offsets = [2, 0], sizes = [9, 8], strides = [1, 1]} : vector<11x8xf32> to vector<9x8xf32>
    %265 = arith.truncf %264 : vector<9x8xf32> to vector<9x8xbf16>
    %c2_159 = arith.constant 2 : index
    %c2_160 = arith.constant 2 : index
    %c0_161 = arith.constant 0 : index
    %c0_162 = arith.constant 0 : index
    %266 = vector.load %arg3[%c2_159, %c2_160, %c0_161, %c0_162] : memref<3x3x8x16xbf16, #tpu.memory_space<vmem>>, vector<1x1x8x16xbf16>
    %267 = vector.shape_cast %266 : vector<1x1x8x16xbf16> to vector<8x16xbf16>
    %cst_163 = arith.constant dense<0.000000e+00> : vector<9x16xf32>
    %268 = tpu.matmul %265, %267, %cst_163 {dimension_numbers = #tpu.dot_dimension_numbers<[1], [0], [0], [1], [0, 0, 1, 1], [], []>} : vector<9x8xbf16>, vector<8x16xbf16>, vector<9x16xf32> -> vector<9x16xf32>
    %269 = arith.addf %263, %268 : vector<9x16xf32>
    %270 = vector.broadcast %81 : vector<1x16xf32> to vector<9x16xf32>
    %271 = arith.addf %269, %270 : vector<9x16xf32>
    %cst_164 = arith.constant 0.000000e+00 : f32
    %272 = vector.broadcast %cst_164 : f32 to vector<9x16xf32>
    %273 = arith.cmpf oge, %271, %272 : vector<9x16xf32>
    %cst_165 = arith.constant 0.00999999977 : f32
    %274 = vector.broadcast %cst_165 : f32 to vector<9x16xf32>
    %275 = arith.mulf %274, %271 : vector<9x16xf32>
    %276 = arith.select %273, %271, %275 : vector<9x16xi1>, vector<9x16xf32>
    %cst_166 = arith.constant dense<0.000000e+00> : vector<8x16xf32>
    %277 = tpu.matmul %10, %276, %cst_166 {dimension_numbers = #tpu.dot_dimension_numbers<[1], [0], [0], [1], [0, 0, 1, 1], [], []>} : vector<8x9xf32>, vector<9x16xf32>, vector<8x16xf32> -> vector<8x16xf32>
    %278 = vector.extract_strided_slice %277 {offsets = [0, 0], sizes = [4, 16], strides = [1, 1]} : vector<8x16xf32> to vector<4x16xf32>
    %279 = vector.extract_strided_slice %277 {offsets = [4, 0], sizes = [4, 16], strides = [1, 1]} : vector<8x16xf32> to vector<4x16xf32>
    %280 = arith.maximumf %278, %279 : vector<4x16xf32>
    %cst_167 = arith.constant 0.000000e+00 : f32
    %281 = vector.broadcast %cst_167 : f32 to vector<9x16xf32>
    %282 = vector.extract_strided_slice %38 {offsets = [0, 0], sizes = [9, 8], strides = [1, 1]} : vector<11x8xf32> to vector<9x8xf32>
    %283 = arith.truncf %282 : vector<9x8xf32> to vector<9x8xbf16>
    %c0_168 = arith.constant 0 : index
    %c0_169 = arith.constant 0 : index
    %c0_170 = arith.constant 0 : index
    %c0_171 = arith.constant 0 : index
    %284 = vector.load %arg3[%c0_168, %c0_169, %c0_170, %c0_171] : memref<3x3x8x16xbf16, #tpu.memory_space<vmem>>, vector<1x1x8x16xbf16>
    %285 = vector.shape_cast %284 : vector<1x1x8x16xbf16> to vector<8x16xbf16>
    %cst_172 = arith.constant dense<0.000000e+00> : vector<9x16xf32>
    %286 = tpu.matmul %283, %285, %cst_172 {dimension_numbers = #tpu.dot_dimension_numbers<[1], [0], [0], [1], [0, 0, 1, 1], [], []>} : vector<9x8xbf16>, vector<8x16xbf16>, vector<9x16xf32> -> vector<9x16xf32>
    %287 = arith.addf %281, %286 : vector<9x16xf32>
    %288 = vector.extract_strided_slice %38 {offsets = [1, 0], sizes = [9, 8], strides = [1, 1]} : vector<11x8xf32> to vector<9x8xf32>
    %289 = arith.truncf %288 : vector<9x8xf32> to vector<9x8xbf16>
    %c0_173 = arith.constant 0 : index
    %c1_174 = arith.constant 1 : index
    %c0_175 = arith.constant 0 : index
    %c0_176 = arith.constant 0 : index
    %290 = vector.load %arg3[%c0_173, %c1_174, %c0_175, %c0_176] : memref<3x3x8x16xbf16, #tpu.memory_space<vmem>>, vector<1x1x8x16xbf16>
    %291 = vector.shape_cast %290 : vector<1x1x8x16xbf16> to vector<8x16xbf16>
    %cst_177 = arith.constant dense<0.000000e+00> : vector<9x16xf32>
    %292 = tpu.matmul %289, %291, %cst_177 {dimension_numbers = #tpu.dot_dimension_numbers<[1], [0], [0], [1], [0, 0, 1, 1], [], []>} : vector<9x8xbf16>, vector<8x16xbf16>, vector<9x16xf32> -> vector<9x16xf32>
    %293 = arith.addf %287, %292 : vector<9x16xf32>
    %294 = vector.extract_strided_slice %38 {offsets = [2, 0], sizes = [9, 8], strides = [1, 1]} : vector<11x8xf32> to vector<9x8xf32>
    %295 = arith.truncf %294 : vector<9x8xf32> to vector<9x8xbf16>
    %c0_178 = arith.constant 0 : index
    %c2_179 = arith.constant 2 : index
    %c0_180 = arith.constant 0 : index
    %c0_181 = arith.constant 0 : index
    %296 = vector.load %arg3[%c0_178, %c2_179, %c0_180, %c0_181] : memref<3x3x8x16xbf16, #tpu.memory_space<vmem>>, vector<1x1x8x16xbf16>
    %297 = vector.shape_cast %296 : vector<1x1x8x16xbf16> to vector<8x16xbf16>
    %cst_182 = arith.constant dense<0.000000e+00> : vector<9x16xf32>
    %298 = tpu.matmul %295, %297, %cst_182 {dimension_numbers = #tpu.dot_dimension_numbers<[1], [0], [0], [1], [0, 0, 1, 1], [], []>} : vector<9x8xbf16>, vector<8x16xbf16>, vector<9x16xf32> -> vector<9x16xf32>
    %299 = arith.addf %293, %298 : vector<9x16xf32>
    %300 = vector.extract_strided_slice %45 {offsets = [0, 0], sizes = [9, 8], strides = [1, 1]} : vector<11x8xf32> to vector<9x8xf32>
    %301 = arith.truncf %300 : vector<9x8xf32> to vector<9x8xbf16>
    %c1_183 = arith.constant 1 : index
    %c0_184 = arith.constant 0 : index
    %c0_185 = arith.constant 0 : index
    %c0_186 = arith.constant 0 : index
    %302 = vector.load %arg3[%c1_183, %c0_184, %c0_185, %c0_186] : memref<3x3x8x16xbf16, #tpu.memory_space<vmem>>, vector<1x1x8x16xbf16>
    %303 = vector.shape_cast %302 : vector<1x1x8x16xbf16> to vector<8x16xbf16>
    %cst_187 = arith.constant dense<0.000000e+00> : vector<9x16xf32>
    %304 = tpu.matmul %301, %303, %cst_187 {dimension_numbers = #tpu.dot_dimension_numbers<[1], [0], [0], [1], [0, 0, 1, 1], [], []>} : vector<9x8xbf16>, vector<8x16xbf16>, vector<9x16xf32> -> vector<9x16xf32>
    %305 = arith.addf %299, %304 : vector<9x16xf32>
    %306 = vector.extract_strided_slice %45 {offsets = [1, 0], sizes = [9, 8], strides = [1, 1]} : vector<11x8xf32> to vector<9x8xf32>
    %307 = arith.truncf %306 : vector<9x8xf32> to vector<9x8xbf16>
    %c1_188 = arith.constant 1 : index
    %c1_189 = arith.constant 1 : index
    %c0_190 = arith.constant 0 : index
    %c0_191 = arith.constant 0 : index
    %308 = vector.load %arg3[%c1_188, %c1_189, %c0_190, %c0_191] : memref<3x3x8x16xbf16, #tpu.memory_space<vmem>>, vector<1x1x8x16xbf16>
    %309 = vector.shape_cast %308 : vector<1x1x8x16xbf16> to vector<8x16xbf16>
    %cst_192 = arith.constant dense<0.000000e+00> : vector<9x16xf32>
    %310 = tpu.matmul %307, %309, %cst_192 {dimension_numbers = #tpu.dot_dimension_numbers<[1], [0], [0], [1], [0, 0, 1, 1], [], []>} : vector<9x8xbf16>, vector<8x16xbf16>, vector<9x16xf32> -> vector<9x16xf32>
    %311 = arith.addf %305, %310 : vector<9x16xf32>
    %312 = vector.extract_strided_slice %45 {offsets = [2, 0], sizes = [9, 8], strides = [1, 1]} : vector<11x8xf32> to vector<9x8xf32>
    %313 = arith.truncf %312 : vector<9x8xf32> to vector<9x8xbf16>
    %c1_193 = arith.constant 1 : index
    %c2_194 = arith.constant 2 : index
    %c0_195 = arith.constant 0 : index
    %c0_196 = arith.constant 0 : index
    %314 = vector.load %arg3[%c1_193, %c2_194, %c0_195, %c0_196] : memref<3x3x8x16xbf16, #tpu.memory_space<vmem>>, vector<1x1x8x16xbf16>
    %315 = vector.shape_cast %314 : vector<1x1x8x16xbf16> to vector<8x16xbf16>
    %cst_197 = arith.constant dense<0.000000e+00> : vector<9x16xf32>
    %316 = tpu.matmul %313, %315, %cst_197 {dimension_numbers = #tpu.dot_dimension_numbers<[1], [0], [0], [1], [0, 0, 1, 1], [], []>} : vector<9x8xbf16>, vector<8x16xbf16>, vector<9x16xf32> -> vector<9x16xf32>
    %317 = arith.addf %311, %316 : vector<9x16xf32>
    %318 = vector.extract_strided_slice %52 {offsets = [0, 0], sizes = [9, 8], strides = [1, 1]} : vector<11x8xf32> to vector<9x8xf32>
    %319 = arith.truncf %318 : vector<9x8xf32> to vector<9x8xbf16>
    %c2_198 = arith.constant 2 : index
    %c0_199 = arith.constant 0 : index
    %c0_200 = arith.constant 0 : index
    %c0_201 = arith.constant 0 : index
    %320 = vector.load %arg3[%c2_198, %c0_199, %c0_200, %c0_201] : memref<3x3x8x16xbf16, #tpu.memory_space<vmem>>, vector<1x1x8x16xbf16>
    %321 = vector.shape_cast %320 : vector<1x1x8x16xbf16> to vector<8x16xbf16>
    %cst_202 = arith.constant dense<0.000000e+00> : vector<9x16xf32>
    %322 = tpu.matmul %319, %321, %cst_202 {dimension_numbers = #tpu.dot_dimension_numbers<[1], [0], [0], [1], [0, 0, 1, 1], [], []>} : vector<9x8xbf16>, vector<8x16xbf16>, vector<9x16xf32> -> vector<9x16xf32>
    %323 = arith.addf %317, %322 : vector<9x16xf32>
    %324 = vector.extract_strided_slice %52 {offsets = [1, 0], sizes = [9, 8], strides = [1, 1]} : vector<11x8xf32> to vector<9x8xf32>
    %325 = arith.truncf %324 : vector<9x8xf32> to vector<9x8xbf16>
    %c2_203 = arith.constant 2 : index
    %c1_204 = arith.constant 1 : index
    %c0_205 = arith.constant 0 : index
    %c0_206 = arith.constant 0 : index
    %326 = vector.load %arg3[%c2_203, %c1_204, %c0_205, %c0_206] : memref<3x3x8x16xbf16, #tpu.memory_space<vmem>>, vector<1x1x8x16xbf16>
    %327 = vector.shape_cast %326 : vector<1x1x8x16xbf16> to vector<8x16xbf16>
    %cst_207 = arith.constant dense<0.000000e+00> : vector<9x16xf32>
    %328 = tpu.matmul %325, %327, %cst_207 {dimension_numbers = #tpu.dot_dimension_numbers<[1], [0], [0], [1], [0, 0, 1, 1], [], []>} : vector<9x8xbf16>, vector<8x16xbf16>, vector<9x16xf32> -> vector<9x16xf32>
    %329 = arith.addf %323, %328 : vector<9x16xf32>
    %330 = vector.extract_strided_slice %52 {offsets = [2, 0], sizes = [9, 8], strides = [1, 1]} : vector<11x8xf32> to vector<9x8xf32>
    %331 = arith.truncf %330 : vector<9x8xf32> to vector<9x8xbf16>
    %c2_208 = arith.constant 2 : index
    %c2_209 = arith.constant 2 : index
    %c0_210 = arith.constant 0 : index
    %c0_211 = arith.constant 0 : index
    %332 = vector.load %arg3[%c2_208, %c2_209, %c0_210, %c0_211] : memref<3x3x8x16xbf16, #tpu.memory_space<vmem>>, vector<1x1x8x16xbf16>
    %333 = vector.shape_cast %332 : vector<1x1x8x16xbf16> to vector<8x16xbf16>
    %cst_212 = arith.constant dense<0.000000e+00> : vector<9x16xf32>
    %334 = tpu.matmul %331, %333, %cst_212 {dimension_numbers = #tpu.dot_dimension_numbers<[1], [0], [0], [1], [0, 0, 1, 1], [], []>} : vector<9x8xbf16>, vector<8x16xbf16>, vector<9x16xf32> -> vector<9x16xf32>
    %335 = arith.addf %329, %334 : vector<9x16xf32>
    %336 = vector.broadcast %81 : vector<1x16xf32> to vector<9x16xf32>
    %337 = arith.addf %335, %336 : vector<9x16xf32>
    %cst_213 = arith.constant 0.000000e+00 : f32
    %338 = vector.broadcast %cst_213 : f32 to vector<9x16xf32>
    %339 = arith.cmpf oge, %337, %338 : vector<9x16xf32>
    %cst_214 = arith.constant 0.00999999977 : f32
    %340 = vector.broadcast %cst_214 : f32 to vector<9x16xf32>
    %341 = arith.mulf %340, %337 : vector<9x16xf32>
    %342 = arith.select %339, %337, %341 : vector<9x16xi1>, vector<9x16xf32>
    %cst_215 = arith.constant dense<0.000000e+00> : vector<8x16xf32>
    %343 = tpu.matmul %10, %342, %cst_215 {dimension_numbers = #tpu.dot_dimension_numbers<[1], [0], [0], [1], [0, 0, 1, 1], [], []>} : vector<8x9xf32>, vector<9x16xf32>, vector<8x16xf32> -> vector<8x16xf32>
    %344 = vector.extract_strided_slice %343 {offsets = [0, 0], sizes = [4, 16], strides = [1, 1]} : vector<8x16xf32> to vector<4x16xf32>
    %345 = vector.extract_strided_slice %343 {offsets = [4, 0], sizes = [4, 16], strides = [1, 1]} : vector<8x16xf32> to vector<4x16xf32>
    %346 = arith.maximumf %344, %345 : vector<4x16xf32>
    %347 = arith.maximumf %280, %346 : vector<4x16xf32>
    %cst_216 = arith.constant 0.000000e+00 : f32
    %348 = vector.broadcast %cst_216 : f32 to vector<9x16xf32>
    %349 = vector.extract_strided_slice %45 {offsets = [0, 0], sizes = [9, 8], strides = [1, 1]} : vector<11x8xf32> to vector<9x8xf32>
    %350 = arith.truncf %349 : vector<9x8xf32> to vector<9x8xbf16>
    %c0_217 = arith.constant 0 : index
    %c0_218 = arith.constant 0 : index
    %c0_219 = arith.constant 0 : index
    %c0_220 = arith.constant 0 : index
    %351 = vector.load %arg3[%c0_217, %c0_218, %c0_219, %c0_220] : memref<3x3x8x16xbf16, #tpu.memory_space<vmem>>, vector<1x1x8x16xbf16>
    %352 = vector.shape_cast %351 : vector<1x1x8x16xbf16> to vector<8x16xbf16>
    %cst_221 = arith.constant dense<0.000000e+00> : vector<9x16xf32>
    %353 = tpu.matmul %350, %352, %cst_221 {dimension_numbers = #tpu.dot_dimension_numbers<[1], [0], [0], [1], [0, 0, 1, 1], [], []>} : vector<9x8xbf16>, vector<8x16xbf16>, vector<9x16xf32> -> vector<9x16xf32>
    %354 = arith.addf %348, %353 : vector<9x16xf32>
    %355 = vector.extract_strided_slice %45 {offsets = [1, 0], sizes = [9, 8], strides = [1, 1]} : vector<11x8xf32> to vector<9x8xf32>
    %356 = arith.truncf %355 : vector<9x8xf32> to vector<9x8xbf16>
    %c0_222 = arith.constant 0 : index
    %c1_223 = arith.constant 1 : index
    %c0_224 = arith.constant 0 : index
    %c0_225 = arith.constant 0 : index
    %357 = vector.load %arg3[%c0_222, %c1_223, %c0_224, %c0_225] : memref<3x3x8x16xbf16, #tpu.memory_space<vmem>>, vector<1x1x8x16xbf16>
    %358 = vector.shape_cast %357 : vector<1x1x8x16xbf16> to vector<8x16xbf16>
    %cst_226 = arith.constant dense<0.000000e+00> : vector<9x16xf32>
    %359 = tpu.matmul %356, %358, %cst_226 {dimension_numbers = #tpu.dot_dimension_numbers<[1], [0], [0], [1], [0, 0, 1, 1], [], []>} : vector<9x8xbf16>, vector<8x16xbf16>, vector<9x16xf32> -> vector<9x16xf32>
    %360 = arith.addf %354, %359 : vector<9x16xf32>
    %361 = vector.extract_strided_slice %45 {offsets = [2, 0], sizes = [9, 8], strides = [1, 1]} : vector<11x8xf32> to vector<9x8xf32>
    %362 = arith.truncf %361 : vector<9x8xf32> to vector<9x8xbf16>
    %c0_227 = arith.constant 0 : index
    %c2_228 = arith.constant 2 : index
    %c0_229 = arith.constant 0 : index
    %c0_230 = arith.constant 0 : index
    %363 = vector.load %arg3[%c0_227, %c2_228, %c0_229, %c0_230] : memref<3x3x8x16xbf16, #tpu.memory_space<vmem>>, vector<1x1x8x16xbf16>
    %364 = vector.shape_cast %363 : vector<1x1x8x16xbf16> to vector<8x16xbf16>
    %cst_231 = arith.constant dense<0.000000e+00> : vector<9x16xf32>
    %365 = tpu.matmul %362, %364, %cst_231 {dimension_numbers = #tpu.dot_dimension_numbers<[1], [0], [0], [1], [0, 0, 1, 1], [], []>} : vector<9x8xbf16>, vector<8x16xbf16>, vector<9x16xf32> -> vector<9x16xf32>
    %366 = arith.addf %360, %365 : vector<9x16xf32>
    %367 = vector.extract_strided_slice %52 {offsets = [0, 0], sizes = [9, 8], strides = [1, 1]} : vector<11x8xf32> to vector<9x8xf32>
    %368 = arith.truncf %367 : vector<9x8xf32> to vector<9x8xbf16>
    %c1_232 = arith.constant 1 : index
    %c0_233 = arith.constant 0 : index
    %c0_234 = arith.constant 0 : index
    %c0_235 = arith.constant 0 : index
    %369 = vector.load %arg3[%c1_232, %c0_233, %c0_234, %c0_235] : memref<3x3x8x16xbf16, #tpu.memory_space<vmem>>, vector<1x1x8x16xbf16>
    %370 = vector.shape_cast %369 : vector<1x1x8x16xbf16> to vector<8x16xbf16>
    %cst_236 = arith.constant dense<0.000000e+00> : vector<9x16xf32>
    %371 = tpu.matmul %368, %370, %cst_236 {dimension_numbers = #tpu.dot_dimension_numbers<[1], [0], [0], [1], [0, 0, 1, 1], [], []>} : vector<9x8xbf16>, vector<8x16xbf16>, vector<9x16xf32> -> vector<9x16xf32>
    %372 = arith.addf %366, %371 : vector<9x16xf32>
    %373 = vector.extract_strided_slice %52 {offsets = [1, 0], sizes = [9, 8], strides = [1, 1]} : vector<11x8xf32> to vector<9x8xf32>
    %374 = arith.truncf %373 : vector<9x8xf32> to vector<9x8xbf16>
    %c1_237 = arith.constant 1 : index
    %c1_238 = arith.constant 1 : index
    %c0_239 = arith.constant 0 : index
    %c0_240 = arith.constant 0 : index
    %375 = vector.load %arg3[%c1_237, %c1_238, %c0_239, %c0_240] : memref<3x3x8x16xbf16, #tpu.memory_space<vmem>>, vector<1x1x8x16xbf16>
    %376 = vector.shape_cast %375 : vector<1x1x8x16xbf16> to vector<8x16xbf16>
    %cst_241 = arith.constant dense<0.000000e+00> : vector<9x16xf32>
    %377 = tpu.matmul %374, %376, %cst_241 {dimension_numbers = #tpu.dot_dimension_numbers<[1], [0], [0], [1], [0, 0, 1, 1], [], []>} : vector<9x8xbf16>, vector<8x16xbf16>, vector<9x16xf32> -> vector<9x16xf32>
    %378 = arith.addf %372, %377 : vector<9x16xf32>
    %379 = vector.extract_strided_slice %52 {offsets = [2, 0], sizes = [9, 8], strides = [1, 1]} : vector<11x8xf32> to vector<9x8xf32>
    %380 = arith.truncf %379 : vector<9x8xf32> to vector<9x8xbf16>
    %c1_242 = arith.constant 1 : index
    %c2_243 = arith.constant 2 : index
    %c0_244 = arith.constant 0 : index
    %c0_245 = arith.constant 0 : index
    %381 = vector.load %arg3[%c1_242, %c2_243, %c0_244, %c0_245] : memref<3x3x8x16xbf16, #tpu.memory_space<vmem>>, vector<1x1x8x16xbf16>
    %382 = vector.shape_cast %381 : vector<1x1x8x16xbf16> to vector<8x16xbf16>
    %cst_246 = arith.constant dense<0.000000e+00> : vector<9x16xf32>
    %383 = tpu.matmul %380, %382, %cst_246 {dimension_numbers = #tpu.dot_dimension_numbers<[1], [0], [0], [1], [0, 0, 1, 1], [], []>} : vector<9x8xbf16>, vector<8x16xbf16>, vector<9x16xf32> -> vector<9x16xf32>
    %384 = arith.addf %378, %383 : vector<9x16xf32>
    %385 = vector.extract_strided_slice %59 {offsets = [0, 0], sizes = [9, 8], strides = [1, 1]} : vector<11x8xf32> to vector<9x8xf32>
    %386 = arith.truncf %385 : vector<9x8xf32> to vector<9x8xbf16>
    %c2_247 = arith.constant 2 : index
    %c0_248 = arith.constant 0 : index
    %c0_249 = arith.constant 0 : index
    %c0_250 = arith.constant 0 : index
    %387 = vector.load %arg3[%c2_247, %c0_248, %c0_249, %c0_250] : memref<3x3x8x16xbf16, #tpu.memory_space<vmem>>, vector<1x1x8x16xbf16>
    %388 = vector.shape_cast %387 : vector<1x1x8x16xbf16> to vector<8x16xbf16>
    %cst_251 = arith.constant dense<0.000000e+00> : vector<9x16xf32>
    %389 = tpu.matmul %386, %388, %cst_251 {dimension_numbers = #tpu.dot_dimension_numbers<[1], [0], [0], [1], [0, 0, 1, 1], [], []>} : vector<9x8xbf16>, vector<8x16xbf16>, vector<9x16xf32> -> vector<9x16xf32>
    %390 = arith.addf %384, %389 : vector<9x16xf32>
    %391 = vector.extract_strided_slice %59 {offsets = [1, 0], sizes = [9, 8], strides = [1, 1]} : vector<11x8xf32> to vector<9x8xf32>
    %392 = arith.truncf %391 : vector<9x8xf32> to vector<9x8xbf16>
    %c2_252 = arith.constant 2 : index
    %c1_253 = arith.constant 1 : index
    %c0_254 = arith.constant 0 : index
    %c0_255 = arith.constant 0 : index
    %393 = vector.load %arg3[%c2_252, %c1_253, %c0_254, %c0_255] : memref<3x3x8x16xbf16, #tpu.memory_space<vmem>>, vector<1x1x8x16xbf16>
    %394 = vector.shape_cast %393 : vector<1x1x8x16xbf16> to vector<8x16xbf16>
    %cst_256 = arith.constant dense<0.000000e+00> : vector<9x16xf32>
    %395 = tpu.matmul %392, %394, %cst_256 {dimension_numbers = #tpu.dot_dimension_numbers<[1], [0], [0], [1], [0, 0, 1, 1], [], []>} : vector<9x8xbf16>, vector<8x16xbf16>, vector<9x16xf32> -> vector<9x16xf32>
    %396 = arith.addf %390, %395 : vector<9x16xf32>
    %397 = vector.extract_strided_slice %59 {offsets = [2, 0], sizes = [9, 8], strides = [1, 1]} : vector<11x8xf32> to vector<9x8xf32>
    %398 = arith.truncf %397 : vector<9x8xf32> to vector<9x8xbf16>
    %c2_257 = arith.constant 2 : index
    %c2_258 = arith.constant 2 : index
    %c0_259 = arith.constant 0 : index
    %c0_260 = arith.constant 0 : index
    %399 = vector.load %arg3[%c2_257, %c2_258, %c0_259, %c0_260] : memref<3x3x8x16xbf16, #tpu.memory_space<vmem>>, vector<1x1x8x16xbf16>
    %400 = vector.shape_cast %399 : vector<1x1x8x16xbf16> to vector<8x16xbf16>
    %cst_261 = arith.constant dense<0.000000e+00> : vector<9x16xf32>
    %401 = tpu.matmul %398, %400, %cst_261 {dimension_numbers = #tpu.dot_dimension_numbers<[1], [0], [0], [1], [0, 0, 1, 1], [], []>} : vector<9x8xbf16>, vector<8x16xbf16>, vector<9x16xf32> -> vector<9x16xf32>
    %402 = arith.addf %396, %401 : vector<9x16xf32>
    %403 = vector.broadcast %81 : vector<1x16xf32> to vector<9x16xf32>
    %404 = arith.addf %402, %403 : vector<9x16xf32>
    %cst_262 = arith.constant 0.000000e+00 : f32
    %405 = vector.broadcast %cst_262 : f32 to vector<9x16xf32>
    %406 = arith.cmpf oge, %404, %405 : vector<9x16xf32>
    %cst_263 = arith.constant 0.00999999977 : f32
    %407 = vector.broadcast %cst_263 : f32 to vector<9x16xf32>
    %408 = arith.mulf %407, %404 : vector<9x16xf32>
    %409 = arith.select %406, %404, %408 : vector<9x16xi1>, vector<9x16xf32>
    %cst_264 = arith.constant dense<0.000000e+00> : vector<8x16xf32>
    %410 = tpu.matmul %10, %409, %cst_264 {dimension_numbers = #tpu.dot_dimension_numbers<[1], [0], [0], [1], [0, 0, 1, 1], [], []>} : vector<8x9xf32>, vector<9x16xf32>, vector<8x16xf32> -> vector<8x16xf32>
    %411 = vector.extract_strided_slice %410 {offsets = [0, 0], sizes = [4, 16], strides = [1, 1]} : vector<8x16xf32> to vector<4x16xf32>
    %412 = vector.extract_strided_slice %410 {offsets = [4, 0], sizes = [4, 16], strides = [1, 1]} : vector<8x16xf32> to vector<4x16xf32>
    %413 = arith.maximumf %411, %412 : vector<4x16xf32>
    %cst_265 = arith.constant 0.000000e+00 : f32
    %414 = vector.broadcast %cst_265 : f32 to vector<9x16xf32>
    %415 = vector.extract_strided_slice %52 {offsets = [0, 0], sizes = [9, 8], strides = [1, 1]} : vector<11x8xf32> to vector<9x8xf32>
    %416 = arith.truncf %415 : vector<9x8xf32> to vector<9x8xbf16>
    %c0_266 = arith.constant 0 : index
    %c0_267 = arith.constant 0 : index
    %c0_268 = arith.constant 0 : index
    %c0_269 = arith.constant 0 : index
    %417 = vector.load %arg3[%c0_266, %c0_267, %c0_268, %c0_269] : memref<3x3x8x16xbf16, #tpu.memory_space<vmem>>, vector<1x1x8x16xbf16>
    %418 = vector.shape_cast %417 : vector<1x1x8x16xbf16> to vector<8x16xbf16>
    %cst_270 = arith.constant dense<0.000000e+00> : vector<9x16xf32>
    %419 = tpu.matmul %416, %418, %cst_270 {dimension_numbers = #tpu.dot_dimension_numbers<[1], [0], [0], [1], [0, 0, 1, 1], [], []>} : vector<9x8xbf16>, vector<8x16xbf16>, vector<9x16xf32> -> vector<9x16xf32>
    %420 = arith.addf %414, %419 : vector<9x16xf32>
    %421 = vector.extract_strided_slice %52 {offsets = [1, 0], sizes = [9, 8], strides = [1, 1]} : vector<11x8xf32> to vector<9x8xf32>
    %422 = arith.truncf %421 : vector<9x8xf32> to vector<9x8xbf16>
    %c0_271 = arith.constant 0 : index
    %c1_272 = arith.constant 1 : index
    %c0_273 = arith.constant 0 : index
    %c0_274 = arith.constant 0 : index
    %423 = vector.load %arg3[%c0_271, %c1_272, %c0_273, %c0_274] : memref<3x3x8x16xbf16, #tpu.memory_space<vmem>>, vector<1x1x8x16xbf16>
    %424 = vector.shape_cast %423 : vector<1x1x8x16xbf16> to vector<8x16xbf16>
    %cst_275 = arith.constant dense<0.000000e+00> : vector<9x16xf32>
    %425 = tpu.matmul %422, %424, %cst_275 {dimension_numbers = #tpu.dot_dimension_numbers<[1], [0], [0], [1], [0, 0, 1, 1], [], []>} : vector<9x8xbf16>, vector<8x16xbf16>, vector<9x16xf32> -> vector<9x16xf32>
    %426 = arith.addf %420, %425 : vector<9x16xf32>
    %427 = vector.extract_strided_slice %52 {offsets = [2, 0], sizes = [9, 8], strides = [1, 1]} : vector<11x8xf32> to vector<9x8xf32>
    %428 = arith.truncf %427 : vector<9x8xf32> to vector<9x8xbf16>
    %c0_276 = arith.constant 0 : index
    %c2_277 = arith.constant 2 : index
    %c0_278 = arith.constant 0 : index
    %c0_279 = arith.constant 0 : index
    %429 = vector.load %arg3[%c0_276, %c2_277, %c0_278, %c0_279] : memref<3x3x8x16xbf16, #tpu.memory_space<vmem>>, vector<1x1x8x16xbf16>
    %430 = vector.shape_cast %429 : vector<1x1x8x16xbf16> to vector<8x16xbf16>
    %cst_280 = arith.constant dense<0.000000e+00> : vector<9x16xf32>
    %431 = tpu.matmul %428, %430, %cst_280 {dimension_numbers = #tpu.dot_dimension_numbers<[1], [0], [0], [1], [0, 0, 1, 1], [], []>} : vector<9x8xbf16>, vector<8x16xbf16>, vector<9x16xf32> -> vector<9x16xf32>
    %432 = arith.addf %426, %431 : vector<9x16xf32>
    %433 = vector.extract_strided_slice %59 {offsets = [0, 0], sizes = [9, 8], strides = [1, 1]} : vector<11x8xf32> to vector<9x8xf32>
    %434 = arith.truncf %433 : vector<9x8xf32> to vector<9x8xbf16>
    %c1_281 = arith.constant 1 : index
    %c0_282 = arith.constant 0 : index
    %c0_283 = arith.constant 0 : index
    %c0_284 = arith.constant 0 : index
    %435 = vector.load %arg3[%c1_281, %c0_282, %c0_283, %c0_284] : memref<3x3x8x16xbf16, #tpu.memory_space<vmem>>, vector<1x1x8x16xbf16>
    %436 = vector.shape_cast %435 : vector<1x1x8x16xbf16> to vector<8x16xbf16>
    %cst_285 = arith.constant dense<0.000000e+00> : vector<9x16xf32>
    %437 = tpu.matmul %434, %436, %cst_285 {dimension_numbers = #tpu.dot_dimension_numbers<[1], [0], [0], [1], [0, 0, 1, 1], [], []>} : vector<9x8xbf16>, vector<8x16xbf16>, vector<9x16xf32> -> vector<9x16xf32>
    %438 = arith.addf %432, %437 : vector<9x16xf32>
    %439 = vector.extract_strided_slice %59 {offsets = [1, 0], sizes = [9, 8], strides = [1, 1]} : vector<11x8xf32> to vector<9x8xf32>
    %440 = arith.truncf %439 : vector<9x8xf32> to vector<9x8xbf16>
    %c1_286 = arith.constant 1 : index
    %c1_287 = arith.constant 1 : index
    %c0_288 = arith.constant 0 : index
    %c0_289 = arith.constant 0 : index
    %441 = vector.load %arg3[%c1_286, %c1_287, %c0_288, %c0_289] : memref<3x3x8x16xbf16, #tpu.memory_space<vmem>>, vector<1x1x8x16xbf16>
    %442 = vector.shape_cast %441 : vector<1x1x8x16xbf16> to vector<8x16xbf16>
    %cst_290 = arith.constant dense<0.000000e+00> : vector<9x16xf32>
    %443 = tpu.matmul %440, %442, %cst_290 {dimension_numbers = #tpu.dot_dimension_numbers<[1], [0], [0], [1], [0, 0, 1, 1], [], []>} : vector<9x8xbf16>, vector<8x16xbf16>, vector<9x16xf32> -> vector<9x16xf32>
    %444 = arith.addf %438, %443 : vector<9x16xf32>
    %445 = vector.extract_strided_slice %59 {offsets = [2, 0], sizes = [9, 8], strides = [1, 1]} : vector<11x8xf32> to vector<9x8xf32>
    %446 = arith.truncf %445 : vector<9x8xf32> to vector<9x8xbf16>
    %c1_291 = arith.constant 1 : index
    %c2_292 = arith.constant 2 : index
    %c0_293 = arith.constant 0 : index
    %c0_294 = arith.constant 0 : index
    %447 = vector.load %arg3[%c1_291, %c2_292, %c0_293, %c0_294] : memref<3x3x8x16xbf16, #tpu.memory_space<vmem>>, vector<1x1x8x16xbf16>
    %448 = vector.shape_cast %447 : vector<1x1x8x16xbf16> to vector<8x16xbf16>
    %cst_295 = arith.constant dense<0.000000e+00> : vector<9x16xf32>
    %449 = tpu.matmul %446, %448, %cst_295 {dimension_numbers = #tpu.dot_dimension_numbers<[1], [0], [0], [1], [0, 0, 1, 1], [], []>} : vector<9x8xbf16>, vector<8x16xbf16>, vector<9x16xf32> -> vector<9x16xf32>
    %450 = arith.addf %444, %449 : vector<9x16xf32>
    %451 = vector.extract_strided_slice %66 {offsets = [0, 0], sizes = [9, 8], strides = [1, 1]} : vector<11x8xf32> to vector<9x8xf32>
    %452 = arith.truncf %451 : vector<9x8xf32> to vector<9x8xbf16>
    %c2_296 = arith.constant 2 : index
    %c0_297 = arith.constant 0 : index
    %c0_298 = arith.constant 0 : index
    %c0_299 = arith.constant 0 : index
    %453 = vector.load %arg3[%c2_296, %c0_297, %c0_298, %c0_299] : memref<3x3x8x16xbf16, #tpu.memory_space<vmem>>, vector<1x1x8x16xbf16>
    %454 = vector.shape_cast %453 : vector<1x1x8x16xbf16> to vector<8x16xbf16>
    %cst_300 = arith.constant dense<0.000000e+00> : vector<9x16xf32>
    %455 = tpu.matmul %452, %454, %cst_300 {dimension_numbers = #tpu.dot_dimension_numbers<[1], [0], [0], [1], [0, 0, 1, 1], [], []>} : vector<9x8xbf16>, vector<8x16xbf16>, vector<9x16xf32> -> vector<9x16xf32>
    %456 = arith.addf %450, %455 : vector<9x16xf32>
    %457 = vector.extract_strided_slice %66 {offsets = [1, 0], sizes = [9, 8], strides = [1, 1]} : vector<11x8xf32> to vector<9x8xf32>
    %458 = arith.truncf %457 : vector<9x8xf32> to vector<9x8xbf16>
    %c2_301 = arith.constant 2 : index
    %c1_302 = arith.constant 1 : index
    %c0_303 = arith.constant 0 : index
    %c0_304 = arith.constant 0 : index
    %459 = vector.load %arg3[%c2_301, %c1_302, %c0_303, %c0_304] : memref<3x3x8x16xbf16, #tpu.memory_space<vmem>>, vector<1x1x8x16xbf16>
    %460 = vector.shape_cast %459 : vector<1x1x8x16xbf16> to vector<8x16xbf16>
    %cst_305 = arith.constant dense<0.000000e+00> : vector<9x16xf32>
    %461 = tpu.matmul %458, %460, %cst_305 {dimension_numbers = #tpu.dot_dimension_numbers<[1], [0], [0], [1], [0, 0, 1, 1], [], []>} : vector<9x8xbf16>, vector<8x16xbf16>, vector<9x16xf32> -> vector<9x16xf32>
    %462 = arith.addf %456, %461 : vector<9x16xf32>
    %463 = vector.extract_strided_slice %66 {offsets = [2, 0], sizes = [9, 8], strides = [1, 1]} : vector<11x8xf32> to vector<9x8xf32>
    %464 = arith.truncf %463 : vector<9x8xf32> to vector<9x8xbf16>
    %c2_306 = arith.constant 2 : index
    %c2_307 = arith.constant 2 : index
    %c0_308 = arith.constant 0 : index
    %c0_309 = arith.constant 0 : index
    %465 = vector.load %arg3[%c2_306, %c2_307, %c0_308, %c0_309] : memref<3x3x8x16xbf16, #tpu.memory_space<vmem>>, vector<1x1x8x16xbf16>
    %466 = vector.shape_cast %465 : vector<1x1x8x16xbf16> to vector<8x16xbf16>
    %cst_310 = arith.constant dense<0.000000e+00> : vector<9x16xf32>
    %467 = tpu.matmul %464, %466, %cst_310 {dimension_numbers = #tpu.dot_dimension_numbers<[1], [0], [0], [1], [0, 0, 1, 1], [], []>} : vector<9x8xbf16>, vector<8x16xbf16>, vector<9x16xf32> -> vector<9x16xf32>
    %468 = arith.addf %462, %467 : vector<9x16xf32>
    %469 = vector.broadcast %81 : vector<1x16xf32> to vector<9x16xf32>
    %470 = arith.addf %468, %469 : vector<9x16xf32>
    %cst_311 = arith.constant 0.000000e+00 : f32
    %471 = vector.broadcast %cst_311 : f32 to vector<9x16xf32>
    %472 = arith.cmpf oge, %470, %471 : vector<9x16xf32>
    %cst_312 = arith.constant 0.00999999977 : f32
    %473 = vector.broadcast %cst_312 : f32 to vector<9x16xf32>
    %474 = arith.mulf %473, %470 : vector<9x16xf32>
    %475 = arith.select %472, %470, %474 : vector<9x16xi1>, vector<9x16xf32>
    %cst_313 = arith.constant dense<0.000000e+00> : vector<8x16xf32>
    %476 = tpu.matmul %10, %475, %cst_313 {dimension_numbers = #tpu.dot_dimension_numbers<[1], [0], [0], [1], [0, 0, 1, 1], [], []>} : vector<8x9xf32>, vector<9x16xf32>, vector<8x16xf32> -> vector<8x16xf32>
    %477 = vector.extract_strided_slice %476 {offsets = [0, 0], sizes = [4, 16], strides = [1, 1]} : vector<8x16xf32> to vector<4x16xf32>
    %478 = vector.extract_strided_slice %476 {offsets = [4, 0], sizes = [4, 16], strides = [1, 1]} : vector<8x16xf32> to vector<4x16xf32>
    %479 = arith.maximumf %477, %478 : vector<4x16xf32>
    %480 = arith.maximumf %413, %479 : vector<4x16xf32>
    %cst_314 = arith.constant 0.000000e+00 : f32
    %481 = vector.broadcast %cst_314 : f32 to vector<9x16xf32>
    %482 = vector.extract_strided_slice %59 {offsets = [0, 0], sizes = [9, 8], strides = [1, 1]} : vector<11x8xf32> to vector<9x8xf32>
    %483 = arith.truncf %482 : vector<9x8xf32> to vector<9x8xbf16>
    %c0_315 = arith.constant 0 : index
    %c0_316 = arith.constant 0 : index
    %c0_317 = arith.constant 0 : index
    %c0_318 = arith.constant 0 : index
    %484 = vector.load %arg3[%c0_315, %c0_316, %c0_317, %c0_318] : memref<3x3x8x16xbf16, #tpu.memory_space<vmem>>, vector<1x1x8x16xbf16>
    %485 = vector.shape_cast %484 : vector<1x1x8x16xbf16> to vector<8x16xbf16>
    %cst_319 = arith.constant dense<0.000000e+00> : vector<9x16xf32>
    %486 = tpu.matmul %483, %485, %cst_319 {dimension_numbers = #tpu.dot_dimension_numbers<[1], [0], [0], [1], [0, 0, 1, 1], [], []>} : vector<9x8xbf16>, vector<8x16xbf16>, vector<9x16xf32> -> vector<9x16xf32>
    %487 = arith.addf %481, %486 : vector<9x16xf32>
    %488 = vector.extract_strided_slice %59 {offsets = [1, 0], sizes = [9, 8], strides = [1, 1]} : vector<11x8xf32> to vector<9x8xf32>
    %489 = arith.truncf %488 : vector<9x8xf32> to vector<9x8xbf16>
    %c0_320 = arith.constant 0 : index
    %c1_321 = arith.constant 1 : index
    %c0_322 = arith.constant 0 : index
    %c0_323 = arith.constant 0 : index
    %490 = vector.load %arg3[%c0_320, %c1_321, %c0_322, %c0_323] : memref<3x3x8x16xbf16, #tpu.memory_space<vmem>>, vector<1x1x8x16xbf16>
    %491 = vector.shape_cast %490 : vector<1x1x8x16xbf16> to vector<8x16xbf16>
    %cst_324 = arith.constant dense<0.000000e+00> : vector<9x16xf32>
    %492 = tpu.matmul %489, %491, %cst_324 {dimension_numbers = #tpu.dot_dimension_numbers<[1], [0], [0], [1], [0, 0, 1, 1], [], []>} : vector<9x8xbf16>, vector<8x16xbf16>, vector<9x16xf32> -> vector<9x16xf32>
    %493 = arith.addf %487, %492 : vector<9x16xf32>
    %494 = vector.extract_strided_slice %59 {offsets = [2, 0], sizes = [9, 8], strides = [1, 1]} : vector<11x8xf32> to vector<9x8xf32>
    %495 = arith.truncf %494 : vector<9x8xf32> to vector<9x8xbf16>
    %c0_325 = arith.constant 0 : index
    %c2_326 = arith.constant 2 : index
    %c0_327 = arith.constant 0 : index
    %c0_328 = arith.constant 0 : index
    %496 = vector.load %arg3[%c0_325, %c2_326, %c0_327, %c0_328] : memref<3x3x8x16xbf16, #tpu.memory_space<vmem>>, vector<1x1x8x16xbf16>
    %497 = vector.shape_cast %496 : vector<1x1x8x16xbf16> to vector<8x16xbf16>
    %cst_329 = arith.constant dense<0.000000e+00> : vector<9x16xf32>
    %498 = tpu.matmul %495, %497, %cst_329 {dimension_numbers = #tpu.dot_dimension_numbers<[1], [0], [0], [1], [0, 0, 1, 1], [], []>} : vector<9x8xbf16>, vector<8x16xbf16>, vector<9x16xf32> -> vector<9x16xf32>
    %499 = arith.addf %493, %498 : vector<9x16xf32>
    %500 = vector.extract_strided_slice %66 {offsets = [0, 0], sizes = [9, 8], strides = [1, 1]} : vector<11x8xf32> to vector<9x8xf32>
    %501 = arith.truncf %500 : vector<9x8xf32> to vector<9x8xbf16>
    %c1_330 = arith.constant 1 : index
    %c0_331 = arith.constant 0 : index
    %c0_332 = arith.constant 0 : index
    %c0_333 = arith.constant 0 : index
    %502 = vector.load %arg3[%c1_330, %c0_331, %c0_332, %c0_333] : memref<3x3x8x16xbf16, #tpu.memory_space<vmem>>, vector<1x1x8x16xbf16>
    %503 = vector.shape_cast %502 : vector<1x1x8x16xbf16> to vector<8x16xbf16>
    %cst_334 = arith.constant dense<0.000000e+00> : vector<9x16xf32>
    %504 = tpu.matmul %501, %503, %cst_334 {dimension_numbers = #tpu.dot_dimension_numbers<[1], [0], [0], [1], [0, 0, 1, 1], [], []>} : vector<9x8xbf16>, vector<8x16xbf16>, vector<9x16xf32> -> vector<9x16xf32>
    %505 = arith.addf %499, %504 : vector<9x16xf32>
    %506 = vector.extract_strided_slice %66 {offsets = [1, 0], sizes = [9, 8], strides = [1, 1]} : vector<11x8xf32> to vector<9x8xf32>
    %507 = arith.truncf %506 : vector<9x8xf32> to vector<9x8xbf16>
    %c1_335 = arith.constant 1 : index
    %c1_336 = arith.constant 1 : index
    %c0_337 = arith.constant 0 : index
    %c0_338 = arith.constant 0 : index
    %508 = vector.load %arg3[%c1_335, %c1_336, %c0_337, %c0_338] : memref<3x3x8x16xbf16, #tpu.memory_space<vmem>>, vector<1x1x8x16xbf16>
    %509 = vector.shape_cast %508 : vector<1x1x8x16xbf16> to vector<8x16xbf16>
    %cst_339 = arith.constant dense<0.000000e+00> : vector<9x16xf32>
    %510 = tpu.matmul %507, %509, %cst_339 {dimension_numbers = #tpu.dot_dimension_numbers<[1], [0], [0], [1], [0, 0, 1, 1], [], []>} : vector<9x8xbf16>, vector<8x16xbf16>, vector<9x16xf32> -> vector<9x16xf32>
    %511 = arith.addf %505, %510 : vector<9x16xf32>
    %512 = vector.extract_strided_slice %66 {offsets = [2, 0], sizes = [9, 8], strides = [1, 1]} : vector<11x8xf32> to vector<9x8xf32>
    %513 = arith.truncf %512 : vector<9x8xf32> to vector<9x8xbf16>
    %c1_340 = arith.constant 1 : index
    %c2_341 = arith.constant 2 : index
    %c0_342 = arith.constant 0 : index
    %c0_343 = arith.constant 0 : index
    %514 = vector.load %arg3[%c1_340, %c2_341, %c0_342, %c0_343] : memref<3x3x8x16xbf16, #tpu.memory_space<vmem>>, vector<1x1x8x16xbf16>
    %515 = vector.shape_cast %514 : vector<1x1x8x16xbf16> to vector<8x16xbf16>
    %cst_344 = arith.constant dense<0.000000e+00> : vector<9x16xf32>
    %516 = tpu.matmul %513, %515, %cst_344 {dimension_numbers = #tpu.dot_dimension_numbers<[1], [0], [0], [1], [0, 0, 1, 1], [], []>} : vector<9x8xbf16>, vector<8x16xbf16>, vector<9x16xf32> -> vector<9x16xf32>
    %517 = arith.addf %511, %516 : vector<9x16xf32>
    %518 = vector.extract_strided_slice %73 {offsets = [0, 0], sizes = [9, 8], strides = [1, 1]} : vector<11x8xf32> to vector<9x8xf32>
    %519 = arith.truncf %518 : vector<9x8xf32> to vector<9x8xbf16>
    %c2_345 = arith.constant 2 : index
    %c0_346 = arith.constant 0 : index
    %c0_347 = arith.constant 0 : index
    %c0_348 = arith.constant 0 : index
    %520 = vector.load %arg3[%c2_345, %c0_346, %c0_347, %c0_348] : memref<3x3x8x16xbf16, #tpu.memory_space<vmem>>, vector<1x1x8x16xbf16>
    %521 = vector.shape_cast %520 : vector<1x1x8x16xbf16> to vector<8x16xbf16>
    %cst_349 = arith.constant dense<0.000000e+00> : vector<9x16xf32>
    %522 = tpu.matmul %519, %521, %cst_349 {dimension_numbers = #tpu.dot_dimension_numbers<[1], [0], [0], [1], [0, 0, 1, 1], [], []>} : vector<9x8xbf16>, vector<8x16xbf16>, vector<9x16xf32> -> vector<9x16xf32>
    %523 = arith.addf %517, %522 : vector<9x16xf32>
    %524 = vector.extract_strided_slice %73 {offsets = [1, 0], sizes = [9, 8], strides = [1, 1]} : vector<11x8xf32> to vector<9x8xf32>
    %525 = arith.truncf %524 : vector<9x8xf32> to vector<9x8xbf16>
    %c2_350 = arith.constant 2 : index
    %c1_351 = arith.constant 1 : index
    %c0_352 = arith.constant 0 : index
    %c0_353 = arith.constant 0 : index
    %526 = vector.load %arg3[%c2_350, %c1_351, %c0_352, %c0_353] : memref<3x3x8x16xbf16, #tpu.memory_space<vmem>>, vector<1x1x8x16xbf16>
    %527 = vector.shape_cast %526 : vector<1x1x8x16xbf16> to vector<8x16xbf16>
    %cst_354 = arith.constant dense<0.000000e+00> : vector<9x16xf32>
    %528 = tpu.matmul %525, %527, %cst_354 {dimension_numbers = #tpu.dot_dimension_numbers<[1], [0], [0], [1], [0, 0, 1, 1], [], []>} : vector<9x8xbf16>, vector<8x16xbf16>, vector<9x16xf32> -> vector<9x16xf32>
    %529 = arith.addf %523, %528 : vector<9x16xf32>
    %530 = vector.extract_strided_slice %73 {offsets = [2, 0], sizes = [9, 8], strides = [1, 1]} : vector<11x8xf32> to vector<9x8xf32>
    %531 = arith.truncf %530 : vector<9x8xf32> to vector<9x8xbf16>
    %c2_355 = arith.constant 2 : index
    %c2_356 = arith.constant 2 : index
    %c0_357 = arith.constant 0 : index
    %c0_358 = arith.constant 0 : index
    %532 = vector.load %arg3[%c2_355, %c2_356, %c0_357, %c0_358] : memref<3x3x8x16xbf16, #tpu.memory_space<vmem>>, vector<1x1x8x16xbf16>
    %533 = vector.shape_cast %532 : vector<1x1x8x16xbf16> to vector<8x16xbf16>
    %cst_359 = arith.constant dense<0.000000e+00> : vector<9x16xf32>
    %534 = tpu.matmul %531, %533, %cst_359 {dimension_numbers = #tpu.dot_dimension_numbers<[1], [0], [0], [1], [0, 0, 1, 1], [], []>} : vector<9x8xbf16>, vector<8x16xbf16>, vector<9x16xf32> -> vector<9x16xf32>
    %535 = arith.addf %529, %534 : vector<9x16xf32>
    %536 = vector.broadcast %81 : vector<1x16xf32> to vector<9x16xf32>
    %537 = arith.addf %535, %536 : vector<9x16xf32>
    %cst_360 = arith.constant 0.000000e+00 : f32
    %538 = vector.broadcast %cst_360 : f32 to vector<9x16xf32>
    %539 = arith.cmpf oge, %537, %538 : vector<9x16xf32>
    %cst_361 = arith.constant 0.00999999977 : f32
    %540 = vector.broadcast %cst_361 : f32 to vector<9x16xf32>
    %541 = arith.mulf %540, %537 : vector<9x16xf32>
    %542 = arith.select %539, %537, %541 : vector<9x16xi1>, vector<9x16xf32>
    %cst_362 = arith.constant dense<0.000000e+00> : vector<8x16xf32>
    %543 = tpu.matmul %10, %542, %cst_362 {dimension_numbers = #tpu.dot_dimension_numbers<[1], [0], [0], [1], [0, 0, 1, 1], [], []>} : vector<8x9xf32>, vector<9x16xf32>, vector<8x16xf32> -> vector<8x16xf32>
    %544 = vector.extract_strided_slice %543 {offsets = [0, 0], sizes = [4, 16], strides = [1, 1]} : vector<8x16xf32> to vector<4x16xf32>
    %545 = vector.extract_strided_slice %543 {offsets = [4, 0], sizes = [4, 16], strides = [1, 1]} : vector<8x16xf32> to vector<4x16xf32>
    %546 = arith.maximumf %544, %545 : vector<4x16xf32>
    %cst_363 = arith.constant 0.000000e+00 : f32
    %547 = vector.broadcast %cst_363 : f32 to vector<9x16xf32>
    %548 = vector.extract_strided_slice %66 {offsets = [0, 0], sizes = [9, 8], strides = [1, 1]} : vector<11x8xf32> to vector<9x8xf32>
    %549 = arith.truncf %548 : vector<9x8xf32> to vector<9x8xbf16>
    %c0_364 = arith.constant 0 : index
    %c0_365 = arith.constant 0 : index
    %c0_366 = arith.constant 0 : index
    %c0_367 = arith.constant 0 : index
    %550 = vector.load %arg3[%c0_364, %c0_365, %c0_366, %c0_367] : memref<3x3x8x16xbf16, #tpu.memory_space<vmem>>, vector<1x1x8x16xbf16>
    %551 = vector.shape_cast %550 : vector<1x1x8x16xbf16> to vector<8x16xbf16>
    %cst_368 = arith.constant dense<0.000000e+00> : vector<9x16xf32>
    %552 = tpu.matmul %549, %551, %cst_368 {dimension_numbers = #tpu.dot_dimension_numbers<[1], [0], [0], [1], [0, 0, 1, 1], [], []>} : vector<9x8xbf16>, vector<8x16xbf16>, vector<9x16xf32> -> vector<9x16xf32>
    %553 = arith.addf %547, %552 : vector<9x16xf32>
    %554 = vector.extract_strided_slice %66 {offsets = [1, 0], sizes = [9, 8], strides = [1, 1]} : vector<11x8xf32> to vector<9x8xf32>
    %555 = arith.truncf %554 : vector<9x8xf32> to vector<9x8xbf16>
    %c0_369 = arith.constant 0 : index
    %c1_370 = arith.constant 1 : index
    %c0_371 = arith.constant 0 : index
    %c0_372 = arith.constant 0 : index
    %556 = vector.load %arg3[%c0_369, %c1_370, %c0_371, %c0_372] : memref<3x3x8x16xbf16, #tpu.memory_space<vmem>>, vector<1x1x8x16xbf16>
    %557 = vector.shape_cast %556 : vector<1x1x8x16xbf16> to vector<8x16xbf16>
    %cst_373 = arith.constant dense<0.000000e+00> : vector<9x16xf32>
    %558 = tpu.matmul %555, %557, %cst_373 {dimension_numbers = #tpu.dot_dimension_numbers<[1], [0], [0], [1], [0, 0, 1, 1], [], []>} : vector<9x8xbf16>, vector<8x16xbf16>, vector<9x16xf32> -> vector<9x16xf32>
    %559 = arith.addf %553, %558 : vector<9x16xf32>
    %560 = vector.extract_strided_slice %66 {offsets = [2, 0], sizes = [9, 8], strides = [1, 1]} : vector<11x8xf32> to vector<9x8xf32>
    %561 = arith.truncf %560 : vector<9x8xf32> to vector<9x8xbf16>
    %c0_374 = arith.constant 0 : index
    %c2_375 = arith.constant 2 : index
    %c0_376 = arith.constant 0 : index
    %c0_377 = arith.constant 0 : index
    %562 = vector.load %arg3[%c0_374, %c2_375, %c0_376, %c0_377] : memref<3x3x8x16xbf16, #tpu.memory_space<vmem>>, vector<1x1x8x16xbf16>
    %563 = vector.shape_cast %562 : vector<1x1x8x16xbf16> to vector<8x16xbf16>
    %cst_378 = arith.constant dense<0.000000e+00> : vector<9x16xf32>
    %564 = tpu.matmul %561, %563, %cst_378 {dimension_numbers = #tpu.dot_dimension_numbers<[1], [0], [0], [1], [0, 0, 1, 1], [], []>} : vector<9x8xbf16>, vector<8x16xbf16>, vector<9x16xf32> -> vector<9x16xf32>
    %565 = arith.addf %559, %564 : vector<9x16xf32>
    %566 = vector.extract_strided_slice %73 {offsets = [0, 0], sizes = [9, 8], strides = [1, 1]} : vector<11x8xf32> to vector<9x8xf32>
    %567 = arith.truncf %566 : vector<9x8xf32> to vector<9x8xbf16>
    %c1_379 = arith.constant 1 : index
    %c0_380 = arith.constant 0 : index
    %c0_381 = arith.constant 0 : index
    %c0_382 = arith.constant 0 : index
    %568 = vector.load %arg3[%c1_379, %c0_380, %c0_381, %c0_382] : memref<3x3x8x16xbf16, #tpu.memory_space<vmem>>, vector<1x1x8x16xbf16>
    %569 = vector.shape_cast %568 : vector<1x1x8x16xbf16> to vector<8x16xbf16>
    %cst_383 = arith.constant dense<0.000000e+00> : vector<9x16xf32>
    %570 = tpu.matmul %567, %569, %cst_383 {dimension_numbers = #tpu.dot_dimension_numbers<[1], [0], [0], [1], [0, 0, 1, 1], [], []>} : vector<9x8xbf16>, vector<8x16xbf16>, vector<9x16xf32> -> vector<9x16xf32>
    %571 = arith.addf %565, %570 : vector<9x16xf32>
    %572 = vector.extract_strided_slice %73 {offsets = [1, 0], sizes = [9, 8], strides = [1, 1]} : vector<11x8xf32> to vector<9x8xf32>
    %573 = arith.truncf %572 : vector<9x8xf32> to vector<9x8xbf16>
    %c1_384 = arith.constant 1 : index
    %c1_385 = arith.constant 1 : index
    %c0_386 = arith.constant 0 : index
    %c0_387 = arith.constant 0 : index
    %574 = vector.load %arg3[%c1_384, %c1_385, %c0_386, %c0_387] : memref<3x3x8x16xbf16, #tpu.memory_space<vmem>>, vector<1x1x8x16xbf16>
    %575 = vector.shape_cast %574 : vector<1x1x8x16xbf16> to vector<8x16xbf16>
    %cst_388 = arith.constant dense<0.000000e+00> : vector<9x16xf32>
    %576 = tpu.matmul %573, %575, %cst_388 {dimension_numbers = #tpu.dot_dimension_numbers<[1], [0], [0], [1], [0, 0, 1, 1], [], []>} : vector<9x8xbf16>, vector<8x16xbf16>, vector<9x16xf32> -> vector<9x16xf32>
    %577 = arith.addf %571, %576 : vector<9x16xf32>
    %578 = vector.extract_strided_slice %73 {offsets = [2, 0], sizes = [9, 8], strides = [1, 1]} : vector<11x8xf32> to vector<9x8xf32>
    %579 = arith.truncf %578 : vector<9x8xf32> to vector<9x8xbf16>
    %c1_389 = arith.constant 1 : index
    %c2_390 = arith.constant 2 : index
    %c0_391 = arith.constant 0 : index
    %c0_392 = arith.constant 0 : index
    %580 = vector.load %arg3[%c1_389, %c2_390, %c0_391, %c0_392] : memref<3x3x8x16xbf16, #tpu.memory_space<vmem>>, vector<1x1x8x16xbf16>
    %581 = vector.shape_cast %580 : vector<1x1x8x16xbf16> to vector<8x16xbf16>
    %cst_393 = arith.constant dense<0.000000e+00> : vector<9x16xf32>
    %582 = tpu.matmul %579, %581, %cst_393 {dimension_numbers = #tpu.dot_dimension_numbers<[1], [0], [0], [1], [0, 0, 1, 1], [], []>} : vector<9x8xbf16>, vector<8x16xbf16>, vector<9x16xf32> -> vector<9x16xf32>
    %583 = arith.addf %577, %582 : vector<9x16xf32>
    %584 = vector.extract_strided_slice %80 {offsets = [0, 0], sizes = [9, 8], strides = [1, 1]} : vector<11x8xf32> to vector<9x8xf32>
    %585 = arith.truncf %584 : vector<9x8xf32> to vector<9x8xbf16>
    %c2_394 = arith.constant 2 : index
    %c0_395 = arith.constant 0 : index
    %c0_396 = arith.constant 0 : index
    %c0_397 = arith.constant 0 : index
    %586 = vector.load %arg3[%c2_394, %c0_395, %c0_396, %c0_397] : memref<3x3x8x16xbf16, #tpu.memory_space<vmem>>, vector<1x1x8x16xbf16>
    %587 = vector.shape_cast %586 : vector<1x1x8x16xbf16> to vector<8x16xbf16>
    %cst_398 = arith.constant dense<0.000000e+00> : vector<9x16xf32>
    %588 = tpu.matmul %585, %587, %cst_398 {dimension_numbers = #tpu.dot_dimension_numbers<[1], [0], [0], [1], [0, 0, 1, 1], [], []>} : vector<9x8xbf16>, vector<8x16xbf16>, vector<9x16xf32> -> vector<9x16xf32>
    %589 = arith.addf %583, %588 : vector<9x16xf32>
    %590 = vector.extract_strided_slice %80 {offsets = [1, 0], sizes = [9, 8], strides = [1, 1]} : vector<11x8xf32> to vector<9x8xf32>
    %591 = arith.truncf %590 : vector<9x8xf32> to vector<9x8xbf16>
    %c2_399 = arith.constant 2 : index
    %c1_400 = arith.constant 1 : index
    %c0_401 = arith.constant 0 : index
    %c0_402 = arith.constant 0 : index
    %592 = vector.load %arg3[%c2_399, %c1_400, %c0_401, %c0_402] : memref<3x3x8x16xbf16, #tpu.memory_space<vmem>>, vector<1x1x8x16xbf16>
    %593 = vector.shape_cast %592 : vector<1x1x8x16xbf16> to vector<8x16xbf16>
    %cst_403 = arith.constant dense<0.000000e+00> : vector<9x16xf32>
    %594 = tpu.matmul %591, %593, %cst_403 {dimension_numbers = #tpu.dot_dimension_numbers<[1], [0], [0], [1], [0, 0, 1, 1], [], []>} : vector<9x8xbf16>, vector<8x16xbf16>, vector<9x16xf32> -> vector<9x16xf32>
    %595 = arith.addf %589, %594 : vector<9x16xf32>
    %596 = vector.extract_strided_slice %80 {offsets = [2, 0], sizes = [9, 8], strides = [1, 1]} : vector<11x8xf32> to vector<9x8xf32>
    %597 = arith.truncf %596 : vector<9x8xf32> to vector<9x8xbf16>
    %c2_404 = arith.constant 2 : index
    %c2_405 = arith.constant 2 : index
    %c0_406 = arith.constant 0 : index
    %c0_407 = arith.constant 0 : index
    %598 = vector.load %arg3[%c2_404, %c2_405, %c0_406, %c0_407] : memref<3x3x8x16xbf16, #tpu.memory_space<vmem>>, vector<1x1x8x16xbf16>
    %599 = vector.shape_cast %598 : vector<1x1x8x16xbf16> to vector<8x16xbf16>
    %cst_408 = arith.constant dense<0.000000e+00> : vector<9x16xf32>
    %600 = tpu.matmul %597, %599, %cst_408 {dimension_numbers = #tpu.dot_dimension_numbers<[1], [0], [0], [1], [0, 0, 1, 1], [], []>} : vector<9x8xbf16>, vector<8x16xbf16>, vector<9x16xf32> -> vector<9x16xf32>
    %601 = arith.addf %595, %600 : vector<9x16xf32>
    %602 = vector.broadcast %81 : vector<1x16xf32> to vector<9x16xf32>
    %603 = arith.addf %601, %602 : vector<9x16xf32>
    %cst_409 = arith.constant 0.000000e+00 : f32
    %604 = vector.broadcast %cst_409 : f32 to vector<9x16xf32>
    %605 = arith.cmpf oge, %603, %604 : vector<9x16xf32>
    %cst_410 = arith.constant 0.00999999977 : f32
    %606 = vector.broadcast %cst_410 : f32 to vector<9x16xf32>
    %607 = arith.mulf %606, %603 : vector<9x16xf32>
    %608 = arith.select %605, %603, %607 : vector<9x16xi1>, vector<9x16xf32>
    %cst_411 = arith.constant dense<0.000000e+00> : vector<8x16xf32>
    %609 = tpu.matmul %10, %608, %cst_411 {dimension_numbers = #tpu.dot_dimension_numbers<[1], [0], [0], [1], [0, 0, 1, 1], [], []>} : vector<8x9xf32>, vector<9x16xf32>, vector<8x16xf32> -> vector<8x16xf32>
    %610 = vector.extract_strided_slice %609 {offsets = [0, 0], sizes = [4, 16], strides = [1, 1]} : vector<8x16xf32> to vector<4x16xf32>
    %611 = vector.extract_strided_slice %609 {offsets = [4, 0], sizes = [4, 16], strides = [1, 1]} : vector<8x16xf32> to vector<4x16xf32>
    %612 = arith.maximumf %610, %611 : vector<4x16xf32>
    %613 = arith.maximumf %546, %612 : vector<4x16xf32>
    %c0_412 = arith.constant 0 : index
    %c0_413 = arith.constant 0 : index
    %614 = vector.load %arg6[%c0_412, %c0_413] : memref<1x64xf32, #tpu.memory_space<vmem>>, vector<1x64xf32>
    %615 = vector.extract_strided_slice %214 {offsets = [0, 0], sizes = [1, 16], strides = [1, 1]} : vector<4x16xf32> to vector<1x16xf32>
    %616 = arith.truncf %615 : vector<1x16xf32> to vector<1x16xbf16>
    %c0_414 = arith.constant 0 : index
    %c0_415 = arith.constant 0 : index
    %c0_416 = arith.constant 0 : index
    %617 = vector.load %arg5[%c0_414, %c0_415, %c0_416] : memref<16x16x64xbf16, #tpu.memory_space<vmem>>, vector<1x16x64xbf16>
    %618 = vector.shape_cast %617 : vector<1x16x64xbf16> to vector<16x64xbf16>
    %cst_417 = arith.constant dense<0.000000e+00> : vector<1x64xf32>
    %619 = tpu.matmul %616, %618, %cst_417 {dimension_numbers = #tpu.dot_dimension_numbers<[1], [0], [0], [1], [0, 0, 1, 1], [], []>} : vector<1x16xbf16>, vector<16x64xbf16>, vector<1x64xf32> -> vector<1x64xf32>
    %620 = arith.addf %614, %619 : vector<1x64xf32>
    %621 = vector.extract_strided_slice %214 {offsets = [1, 0], sizes = [1, 16], strides = [1, 1]} : vector<4x16xf32> to vector<1x16xf32>
    %622 = arith.truncf %621 : vector<1x16xf32> to vector<1x16xbf16>
    %c1_418 = arith.constant 1 : index
    %c0_419 = arith.constant 0 : index
    %c0_420 = arith.constant 0 : index
    %623 = vector.load %arg5[%c1_418, %c0_419, %c0_420] : memref<16x16x64xbf16, #tpu.memory_space<vmem>>, vector<1x16x64xbf16>
    %624 = vector.shape_cast %623 : vector<1x16x64xbf16> to vector<16x64xbf16>
    %cst_421 = arith.constant dense<0.000000e+00> : vector<1x64xf32>
    %625 = tpu.matmul %622, %624, %cst_421 {dimension_numbers = #tpu.dot_dimension_numbers<[1], [0], [0], [1], [0, 0, 1, 1], [], []>} : vector<1x16xbf16>, vector<16x64xbf16>, vector<1x64xf32> -> vector<1x64xf32>
    %626 = arith.addf %620, %625 : vector<1x64xf32>
    %627 = vector.extract_strided_slice %214 {offsets = [2, 0], sizes = [1, 16], strides = [1, 1]} : vector<4x16xf32> to vector<1x16xf32>
    %628 = arith.truncf %627 : vector<1x16xf32> to vector<1x16xbf16>
    %c2_422 = arith.constant 2 : index
    %c0_423 = arith.constant 0 : index
    %c0_424 = arith.constant 0 : index
    %629 = vector.load %arg5[%c2_422, %c0_423, %c0_424] : memref<16x16x64xbf16, #tpu.memory_space<vmem>>, vector<1x16x64xbf16>
    %630 = vector.shape_cast %629 : vector<1x16x64xbf16> to vector<16x64xbf16>
    %cst_425 = arith.constant dense<0.000000e+00> : vector<1x64xf32>
    %631 = tpu.matmul %628, %630, %cst_425 {dimension_numbers = #tpu.dot_dimension_numbers<[1], [0], [0], [1], [0, 0, 1, 1], [], []>} : vector<1x16xbf16>, vector<16x64xbf16>, vector<1x64xf32> -> vector<1x64xf32>
    %632 = arith.addf %626, %631 : vector<1x64xf32>
    %633 = vector.extract_strided_slice %214 {offsets = [3, 0], sizes = [1, 16], strides = [1, 1]} : vector<4x16xf32> to vector<1x16xf32>
    %634 = arith.truncf %633 : vector<1x16xf32> to vector<1x16xbf16>
    %c3 = arith.constant 3 : index
    %c0_426 = arith.constant 0 : index
    %c0_427 = arith.constant 0 : index
    %635 = vector.load %arg5[%c3, %c0_426, %c0_427] : memref<16x16x64xbf16, #tpu.memory_space<vmem>>, vector<1x16x64xbf16>
    %636 = vector.shape_cast %635 : vector<1x16x64xbf16> to vector<16x64xbf16>
    %cst_428 = arith.constant dense<0.000000e+00> : vector<1x64xf32>
    %637 = tpu.matmul %634, %636, %cst_428 {dimension_numbers = #tpu.dot_dimension_numbers<[1], [0], [0], [1], [0, 0, 1, 1], [], []>} : vector<1x16xbf16>, vector<16x64xbf16>, vector<1x64xf32> -> vector<1x64xf32>
    %638 = arith.addf %632, %637 : vector<1x64xf32>
    %639 = vector.extract_strided_slice %347 {offsets = [0, 0], sizes = [1, 16], strides = [1, 1]} : vector<4x16xf32> to vector<1x16xf32>
    %640 = arith.truncf %639 : vector<1x16xf32> to vector<1x16xbf16>
    %c4 = arith.constant 4 : index
    %c0_429 = arith.constant 0 : index
    %c0_430 = arith.constant 0 : index
    %641 = vector.load %arg5[%c4, %c0_429, %c0_430] : memref<16x16x64xbf16, #tpu.memory_space<vmem>>, vector<1x16x64xbf16>
    %642 = vector.shape_cast %641 : vector<1x16x64xbf16> to vector<16x64xbf16>
    %cst_431 = arith.constant dense<0.000000e+00> : vector<1x64xf32>
    %643 = tpu.matmul %640, %642, %cst_431 {dimension_numbers = #tpu.dot_dimension_numbers<[1], [0], [0], [1], [0, 0, 1, 1], [], []>} : vector<1x16xbf16>, vector<16x64xbf16>, vector<1x64xf32> -> vector<1x64xf32>
    %644 = arith.addf %638, %643 : vector<1x64xf32>
    %645 = vector.extract_strided_slice %347 {offsets = [1, 0], sizes = [1, 16], strides = [1, 1]} : vector<4x16xf32> to vector<1x16xf32>
    %646 = arith.truncf %645 : vector<1x16xf32> to vector<1x16xbf16>
    %c5 = arith.constant 5 : index
    %c0_432 = arith.constant 0 : index
    %c0_433 = arith.constant 0 : index
    %647 = vector.load %arg5[%c5, %c0_432, %c0_433] : memref<16x16x64xbf16, #tpu.memory_space<vmem>>, vector<1x16x64xbf16>
    %648 = vector.shape_cast %647 : vector<1x16x64xbf16> to vector<16x64xbf16>
    %cst_434 = arith.constant dense<0.000000e+00> : vector<1x64xf32>
    %649 = tpu.matmul %646, %648, %cst_434 {dimension_numbers = #tpu.dot_dimension_numbers<[1], [0], [0], [1], [0, 0, 1, 1], [], []>} : vector<1x16xbf16>, vector<16x64xbf16>, vector<1x64xf32> -> vector<1x64xf32>
    %650 = arith.addf %644, %649 : vector<1x64xf32>
    %651 = vector.extract_strided_slice %347 {offsets = [2, 0], sizes = [1, 16], strides = [1, 1]} : vector<4x16xf32> to vector<1x16xf32>
    %652 = arith.truncf %651 : vector<1x16xf32> to vector<1x16xbf16>
    %c6 = arith.constant 6 : index
    %c0_435 = arith.constant 0 : index
    %c0_436 = arith.constant 0 : index
    %653 = vector.load %arg5[%c6, %c0_435, %c0_436] : memref<16x16x64xbf16, #tpu.memory_space<vmem>>, vector<1x16x64xbf16>
    %654 = vector.shape_cast %653 : vector<1x16x64xbf16> to vector<16x64xbf16>
    %cst_437 = arith.constant dense<0.000000e+00> : vector<1x64xf32>
    %655 = tpu.matmul %652, %654, %cst_437 {dimension_numbers = #tpu.dot_dimension_numbers<[1], [0], [0], [1], [0, 0, 1, 1], [], []>} : vector<1x16xbf16>, vector<16x64xbf16>, vector<1x64xf32> -> vector<1x64xf32>
    %656 = arith.addf %650, %655 : vector<1x64xf32>
    %657 = vector.extract_strided_slice %347 {offsets = [3, 0], sizes = [1, 16], strides = [1, 1]} : vector<4x16xf32> to vector<1x16xf32>
    %658 = arith.truncf %657 : vector<1x16xf32> to vector<1x16xbf16>
    %c7 = arith.constant 7 : index
    %c0_438 = arith.constant 0 : index
    %c0_439 = arith.constant 0 : index
    %659 = vector.load %arg5[%c7, %c0_438, %c0_439] : memref<16x16x64xbf16, #tpu.memory_space<vmem>>, vector<1x16x64xbf16>
    %660 = vector.shape_cast %659 : vector<1x16x64xbf16> to vector<16x64xbf16>
    %cst_440 = arith.constant dense<0.000000e+00> : vector<1x64xf32>
    %661 = tpu.matmul %658, %660, %cst_440 {dimension_numbers = #tpu.dot_dimension_numbers<[1], [0], [0], [1], [0, 0, 1, 1], [], []>} : vector<1x16xbf16>, vector<16x64xbf16>, vector<1x64xf32> -> vector<1x64xf32>
    %662 = arith.addf %656, %661 : vector<1x64xf32>
    %663 = vector.extract_strided_slice %480 {offsets = [0, 0], sizes = [1, 16], strides = [1, 1]} : vector<4x16xf32> to vector<1x16xf32>
    %664 = arith.truncf %663 : vector<1x16xf32> to vector<1x16xbf16>
    %c8 = arith.constant 8 : index
    %c0_441 = arith.constant 0 : index
    %c0_442 = arith.constant 0 : index
    %665 = vector.load %arg5[%c8, %c0_441, %c0_442] : memref<16x16x64xbf16, #tpu.memory_space<vmem>>, vector<1x16x64xbf16>
    %666 = vector.shape_cast %665 : vector<1x16x64xbf16> to vector<16x64xbf16>
    %cst_443 = arith.constant dense<0.000000e+00> : vector<1x64xf32>
    %667 = tpu.matmul %664, %666, %cst_443 {dimension_numbers = #tpu.dot_dimension_numbers<[1], [0], [0], [1], [0, 0, 1, 1], [], []>} : vector<1x16xbf16>, vector<16x64xbf16>, vector<1x64xf32> -> vector<1x64xf32>
    %668 = arith.addf %662, %667 : vector<1x64xf32>
    %669 = vector.extract_strided_slice %480 {offsets = [1, 0], sizes = [1, 16], strides = [1, 1]} : vector<4x16xf32> to vector<1x16xf32>
    %670 = arith.truncf %669 : vector<1x16xf32> to vector<1x16xbf16>
    %c9 = arith.constant 9 : index
    %c0_444 = arith.constant 0 : index
    %c0_445 = arith.constant 0 : index
    %671 = vector.load %arg5[%c9, %c0_444, %c0_445] : memref<16x16x64xbf16, #tpu.memory_space<vmem>>, vector<1x16x64xbf16>
    %672 = vector.shape_cast %671 : vector<1x16x64xbf16> to vector<16x64xbf16>
    %cst_446 = arith.constant dense<0.000000e+00> : vector<1x64xf32>
    %673 = tpu.matmul %670, %672, %cst_446 {dimension_numbers = #tpu.dot_dimension_numbers<[1], [0], [0], [1], [0, 0, 1, 1], [], []>} : vector<1x16xbf16>, vector<16x64xbf16>, vector<1x64xf32> -> vector<1x64xf32>
    %674 = arith.addf %668, %673 : vector<1x64xf32>
    %675 = vector.extract_strided_slice %480 {offsets = [2, 0], sizes = [1, 16], strides = [1, 1]} : vector<4x16xf32> to vector<1x16xf32>
    %676 = arith.truncf %675 : vector<1x16xf32> to vector<1x16xbf16>
    %c10 = arith.constant 10 : index
    %c0_447 = arith.constant 0 : index
    %c0_448 = arith.constant 0 : index
    %677 = vector.load %arg5[%c10, %c0_447, %c0_448] : memref<16x16x64xbf16, #tpu.memory_space<vmem>>, vector<1x16x64xbf16>
    %678 = vector.shape_cast %677 : vector<1x16x64xbf16> to vector<16x64xbf16>
    %cst_449 = arith.constant dense<0.000000e+00> : vector<1x64xf32>
    %679 = tpu.matmul %676, %678, %cst_449 {dimension_numbers = #tpu.dot_dimension_numbers<[1], [0], [0], [1], [0, 0, 1, 1], [], []>} : vector<1x16xbf16>, vector<16x64xbf16>, vector<1x64xf32> -> vector<1x64xf32>
    %680 = arith.addf %674, %679 : vector<1x64xf32>
    %681 = vector.extract_strided_slice %480 {offsets = [3, 0], sizes = [1, 16], strides = [1, 1]} : vector<4x16xf32> to vector<1x16xf32>
    %682 = arith.truncf %681 : vector<1x16xf32> to vector<1x16xbf16>
    %c11 = arith.constant 11 : index
    %c0_450 = arith.constant 0 : index
    %c0_451 = arith.constant 0 : index
    %683 = vector.load %arg5[%c11, %c0_450, %c0_451] : memref<16x16x64xbf16, #tpu.memory_space<vmem>>, vector<1x16x64xbf16>
    %684 = vector.shape_cast %683 : vector<1x16x64xbf16> to vector<16x64xbf16>
    %cst_452 = arith.constant dense<0.000000e+00> : vector<1x64xf32>
    %685 = tpu.matmul %682, %684, %cst_452 {dimension_numbers = #tpu.dot_dimension_numbers<[1], [0], [0], [1], [0, 0, 1, 1], [], []>} : vector<1x16xbf16>, vector<16x64xbf16>, vector<1x64xf32> -> vector<1x64xf32>
    %686 = arith.addf %680, %685 : vector<1x64xf32>
    %687 = vector.extract_strided_slice %613 {offsets = [0, 0], sizes = [1, 16], strides = [1, 1]} : vector<4x16xf32> to vector<1x16xf32>
    %688 = arith.truncf %687 : vector<1x16xf32> to vector<1x16xbf16>
    %c12 = arith.constant 12 : index
    %c0_453 = arith.constant 0 : index
    %c0_454 = arith.constant 0 : index
    %689 = vector.load %arg5[%c12, %c0_453, %c0_454] : memref<16x16x64xbf16, #tpu.memory_space<vmem>>, vector<1x16x64xbf16>
    %690 = vector.shape_cast %689 : vector<1x16x64xbf16> to vector<16x64xbf16>
    %cst_455 = arith.constant dense<0.000000e+00> : vector<1x64xf32>
    %691 = tpu.matmul %688, %690, %cst_455 {dimension_numbers = #tpu.dot_dimension_numbers<[1], [0], [0], [1], [0, 0, 1, 1], [], []>} : vector<1x16xbf16>, vector<16x64xbf16>, vector<1x64xf32> -> vector<1x64xf32>
    %692 = arith.addf %686, %691 : vector<1x64xf32>
    %693 = vector.extract_strided_slice %613 {offsets = [1, 0], sizes = [1, 16], strides = [1, 1]} : vector<4x16xf32> to vector<1x16xf32>
    %694 = arith.truncf %693 : vector<1x16xf32> to vector<1x16xbf16>
    %c13 = arith.constant 13 : index
    %c0_456 = arith.constant 0 : index
    %c0_457 = arith.constant 0 : index
    %695 = vector.load %arg5[%c13, %c0_456, %c0_457] : memref<16x16x64xbf16, #tpu.memory_space<vmem>>, vector<1x16x64xbf16>
    %696 = vector.shape_cast %695 : vector<1x16x64xbf16> to vector<16x64xbf16>
    %cst_458 = arith.constant dense<0.000000e+00> : vector<1x64xf32>
    %697 = tpu.matmul %694, %696, %cst_458 {dimension_numbers = #tpu.dot_dimension_numbers<[1], [0], [0], [1], [0, 0, 1, 1], [], []>} : vector<1x16xbf16>, vector<16x64xbf16>, vector<1x64xf32> -> vector<1x64xf32>
    %698 = arith.addf %692, %697 : vector<1x64xf32>
    %699 = vector.extract_strided_slice %613 {offsets = [2, 0], sizes = [1, 16], strides = [1, 1]} : vector<4x16xf32> to vector<1x16xf32>
    %700 = arith.truncf %699 : vector<1x16xf32> to vector<1x16xbf16>
    %c14 = arith.constant 14 : index
    %c0_459 = arith.constant 0 : index
    %c0_460 = arith.constant 0 : index
    %701 = vector.load %arg5[%c14, %c0_459, %c0_460] : memref<16x16x64xbf16, #tpu.memory_space<vmem>>, vector<1x16x64xbf16>
    %702 = vector.shape_cast %701 : vector<1x16x64xbf16> to vector<16x64xbf16>
    %cst_461 = arith.constant dense<0.000000e+00> : vector<1x64xf32>
    %703 = tpu.matmul %700, %702, %cst_461 {dimension_numbers = #tpu.dot_dimension_numbers<[1], [0], [0], [1], [0, 0, 1, 1], [], []>} : vector<1x16xbf16>, vector<16x64xbf16>, vector<1x64xf32> -> vector<1x64xf32>
    %704 = arith.addf %698, %703 : vector<1x64xf32>
    %705 = vector.extract_strided_slice %613 {offsets = [3, 0], sizes = [1, 16], strides = [1, 1]} : vector<4x16xf32> to vector<1x16xf32>
    %706 = arith.truncf %705 : vector<1x16xf32> to vector<1x16xbf16>
    %c15 = arith.constant 15 : index
    %c0_462 = arith.constant 0 : index
    %c0_463 = arith.constant 0 : index
    %707 = vector.load %arg5[%c15, %c0_462, %c0_463] : memref<16x16x64xbf16, #tpu.memory_space<vmem>>, vector<1x16x64xbf16>
    %708 = vector.shape_cast %707 : vector<1x16x64xbf16> to vector<16x64xbf16>
    %cst_464 = arith.constant dense<0.000000e+00> : vector<1x64xf32>
    %709 = tpu.matmul %706, %708, %cst_464 {dimension_numbers = #tpu.dot_dimension_numbers<[1], [0], [0], [1], [0, 0, 1, 1], [], []>} : vector<1x16xbf16>, vector<16x64xbf16>, vector<1x64xf32> -> vector<1x64xf32>
    %710 = arith.addf %704, %709 : vector<1x64xf32>
    %cst_465 = arith.constant 0.000000e+00 : f32
    %711 = vector.broadcast %cst_465 : f32 to vector<1x64xf32>
    %712 = arith.cmpf oge, %710, %711 : vector<1x64xf32>
    %cst_466 = arith.constant 0.00999999977 : f32
    %713 = vector.broadcast %cst_466 : f32 to vector<1x64xf32>
    %714 = arith.mulf %713, %710 : vector<1x64xf32>
    %715 = arith.select %712, %710, %714 : vector<1x64xi1>, vector<1x64xf32>
    %716 = arith.truncf %715 : vector<1x64xf32> to vector<1x64xbf16>
    %c0_467 = arith.constant 0 : index
    %c0_468 = arith.constant 0 : index
    %717 = vector.load %arg7[%c0_467, %c0_468] : memref<64x128xbf16, #tpu.memory_space<vmem>>, vector<64x128xbf16>
    %cst_469 = arith.constant dense<0.000000e+00> : vector<1x128xf32>
    %718 = tpu.matmul %716, %717, %cst_469 {dimension_numbers = #tpu.dot_dimension_numbers<[1], [0], [0], [1], [0, 0, 1, 1], [], []>} : vector<1x64xbf16>, vector<64x128xbf16>, vector<1x128xf32> -> vector<1x128xf32>
    %c0_470 = arith.constant 0 : index
    %c0_471 = arith.constant 0 : index
    %719 = vector.load %arg8[%c0_470, %c0_471] : memref<1x128xf32, #tpu.memory_space<vmem>>, vector<1x128xf32>
    %720 = arith.addf %718, %719 : vector<1x128xf32>
    %c0_472 = arith.constant 0 : index
    %c0_473 = arith.constant 0 : index
    %c0_474 = arith.constant 0 : index
    %721 = vector.load %arg11[%c0_472, %c0_473, %c0_474] : memref<1x1x128xf32, #tpu.memory_space<vmem>>, vector<1x1x128xf32>
    %722 = vector.shape_cast %721 : vector<1x1x128xf32> to vector<1x128xf32>
    %723 = vector.shape_cast %720 : vector<1x128xf32> to vector<1x1x128xf32>
    tpu.vector_store %arg11[%c0_472, %c0_473, %c0_474], %723 {strides = array<i32>} : memref<1x1x128xf32, #tpu.memory_space<vmem>>, vector<1x1x128xf32>,
    return
  }
  func.func @transform_0(%arg0: i32) -> (i32, i32, i32) {
    %c0_i32 = arith.constant 0 : i32
    %c0_i32_0 = arith.constant 0 : i32
    %c0_i32_1 = arith.constant 0 : i32
    return %arg0, %c0_i32, %c0_i32_0 : i32, i32, i32
  }
  func.func @transform_1(%arg0: i32) -> (i32, i32) {
    %c0_i32 = arith.constant 0 : i32
    %c0_i32_0 = arith.constant 0 : i32
    %c0_i32_1 = arith.constant 0 : i32
    return %c0_i32, %c0_i32_0 : i32, i32
  }
  func.func @transform_2(%arg0: i32) -> (i32, i32, i32, i32) {
    %c0_i32 = arith.constant 0 : i32
    %c0_i32_0 = arith.constant 0 : i32
    %c0_i32_1 = arith.constant 0 : i32
    %c0_i32_2 = arith.constant 0 : i32
    %c0_i32_3 = arith.constant 0 : i32
    return %c0_i32, %c0_i32_0, %c0_i32_1, %c0_i32_2 : i32, i32, i32, i32
  }
  func.func @transform_3(%arg0: i32) -> (i32, i32) {
    %c0_i32 = arith.constant 0 : i32
    %c0_i32_0 = arith.constant 0 : i32
    %c0_i32_1 = arith.constant 0 : i32
    return %c0_i32, %c0_i32_0 : i32, i32
  }
  func.func @transform_4(%arg0: i32) -> (i32, i32, i32) {
    %c0_i32 = arith.constant 0 : i32
    %c0_i32_0 = arith.constant 0 : i32
    %c0_i32_1 = arith.constant 0 : i32
    %c0_i32_2 = arith.constant 0 : i32
    return %c0_i32, %c0_i32_0, %c0_i32_1 : i32, i32, i32
  }
  func.func @transform_5(%arg0: i32) -> (i32, i32) {
    %c0_i32 = arith.constant 0 : i32
    %c0_i32_0 = arith.constant 0 : i32
    %c0_i32_1 = arith.constant 0 : i32
    return %c0_i32, %c0_i32_0 : i32, i32
  }
  func.func @transform_6(%arg0: i32) -> (i32, i32) {
    %c0_i32 = arith.constant 0 : i32
    %c0_i32_0 = arith.constant 0 : i32
    %c0_i32_1 = arith.constant 0 : i32
    return %c0_i32, %c0_i32_0 : i32, i32
  }
  func.func @transform_7(%arg0: i32) -> (i32, i32) {
    %c0_i32 = arith.constant 0 : i32
    %c0_i32_0 = arith.constant 0 : i32
    %c0_i32_1 = arith.constant 0 : i32
    return %c0_i32, %c0_i32_0 : i32, i32
  }
  func.func @transform_8(%arg0: i32) -> (i32, i32) {
    %c0_i32 = arith.constant 0 : i32
    %c0_i32_0 = arith.constant 0 : i32
    %c0_i32_1 = arith.constant 0 : i32
    return %c0_i32, %c0_i32_0 : i32, i32
  }
  func.func @transform_9(%arg0: i32) -> (i32, i32) {
    %c0_i32 = arith.constant 0 : i32
    %c0_i32_0 = arith.constant 0 : i32
    %c0_i32_1 = arith.constant 0 : i32
    return %c0_i32, %c0_i32_0 : i32, i32
  }
  func.func @transform_10(%arg0: i32) -> (i32, i32, i32) {
    %c0_i32 = arith.constant 0 : i32
    %c0_i32_0 = arith.constant 0 : i32
    %c0_i32_1 = arith.constant 0 : i32
    return %arg0, %c0_i32, %c0_i32_0 : i32, i32, i32
  }
}

</mosaic_0001>

<llo_original>
// kernel: cnn_small_forward.1
$region0: #{cnn_small_forward.1}
  #allocation0 [shape = 'u32[]', space=smem, size = 0x4, offset = 0x4, fixed_abs, tag = 'smem constant byte address 0x4 - core index']
  #allocation1 [shape = 'u32[72,128]{1,0:T(1,128)}', space=vmem, size = 0x9000, scoped, tag = 'internal scratch']
  %s0 = inlined_call_operand.vmem [shape: bf16[2,536,384], index: 0, kind: input, shape index: {}]
  %s1 = inlined_call_operand.vmem [shape: bf16[384,8], index: 1, kind: input, shape index: {}]
  %s2 = inlined_call_operand.vmem [shape: bf16[3,3,8,16], index: 2, kind: input, shape index: {}]
  %s3 = inlined_call_operand.vmem [shape: f32[1,16], index: 3, kind: input, shape index: {}]
  %s4 = inlined_call_operand.vmem [shape: bf16[16,16,64], index: 4, kind: input, shape index: {}]
  %s5 = inlined_call_operand.vmem [shape: f32[1,64], index: 5, kind: input, shape index: {}]
  %s6 = inlined_call_operand.vmem [shape: bf16[64,128], index: 6, kind: input, shape index: {}]
  %s7 = inlined_call_operand.vmem [shape: f32[1,128], index: 7, kind: input, shape index: {}]
  %s8 = inlined_call_operand.vmem [shape: f32[22,23], index: 8, kind: input, shape index: {}]
  %s9 = inlined_call_operand.vmem [shape: f32[8,9], index: 9, kind: input, shape index: {}]
  %s10 = inlined_call_operand.hbm [shape: f32[2,1,128], index: 10, kind: output, shape index: {}]
  %s11 = sld [smem:[#allocation0]]
  $region73: #{cnn_small_forward.1} parent=0
    _
  %s13 = ssub.s32 1, %s11
  %s14 = scalar_select 0, %s13, %s11
  $region1: #{cnn_small_forward.1} parent=0
    #allocation2 [shape = 'u8[1024]{0}', space=vmem, size = 0x400, scoped, tag = 'output window, operand 0']
    #allocation3 [shape = 's32[2]{0}', space=sflag, size = 0x8, scoped, tag = 'scoped memory for cnn_small_forward.1']
    %15 = vsyncpa [#allocation3], 0
    %s16 = scalar_lea.sflag [#allocation3], 1
    %17 = vsyncpa %s16, 0
    loop: start=0, step=1, limit=4
    $region2: #{cnn_small_forward.1} parent=1 // loop_pre_header
      _
    $region3: #{cnn_small_forward.1} parent=1 // loop_header
      %s19 = sphi 0, %s23
      %p20 = scmp.ge.s32.totalorder %s19, 4
      %s29 = sphi 0, %s31
      %s32 = sphi 0, %s29
      %s33 = sphi 0, %s32
      %s49 = sphi 0, %s33
      %s53 = sphi 0, %s53
      %s55 = sphi 0, %s53
      %s56 = sphi 0, %s55
      %s70 = sphi 0, %s56
      %s74 = sphi 0, %s74
      %s76 = sphi 0, %s74
      %s77 = sphi 0, %s76
      %s91 = sphi 0, %s77
      %s95 = sphi 0, %s95
      %s97 = sphi 0, %s95
      %s98 = sphi 0, %s97
      %s112 = sphi 0, %s98
      %s116 = sphi 0, %s116
      %s118 = sphi 0, %s116
      %s119 = sphi 0, %s118
      %s133 = sphi 0, %s119
      %s137 = sphi 0, %s137
      %s139 = sphi 0, %s137
      %s140 = sphi 0, %s139
      %s154 = sphi 0, %s140
      %s158 = sphi 0, %s158
      %s160 = sphi 0, %s158
      %s161 = sphi 0, %s160
      %s175 = sphi 0, %s161
      %s179 = sphi 0, %s179
      %s181 = sphi 0, %s179
      %s182 = sphi 0, %s181
      %s196 = sphi 0, %s182
      %s200 = sphi 0, %s200
      %s202 = sphi 0, %s200
      %s203 = sphi 0, %s202
      %s217 = sphi 0, %s203
      %s221 = sphi 0, %s221
      %s223 = sphi 0, %s221
      %s224 = sphi 0, %s223
      %s238 = sphi 0, %s224
      %s244 = sphi 0, %s246
      %s247 = sphi 0, %s244
      %s248 = sphi 0, %s247
      %s264 = sphi 0, %s248
    $region4: #{cnn_small_forward.1} parent=1 // loop_header_branch
      %22 = sbr.rel (%p20) target = $region8
    $region5: #{cnn_small_forward.1} parent=1 // loop_body
      %s24 = ssub.s32 %s19, 1
      %s25 = ssub.s32 %s19, 2
      %s26 = sadd.s32 %s19, 1
      %s27 = ssub.s32 %s19, %s26
      %p28 = scmp.eq.s32.totalorder %s27, 0
      %s30 = sadd.s32 %s29, 1
      %s31 = scalar_select %p28, %s29, %s30
      %p34 = pneg %p28
      %p35 = scmp.eq.s32.totalorder %s19, 1
      %p36 = por %p34, %p35
      %p37 = scmp.ne.s32.totalorder %s29, %s32
      %p38 = scmp.eq.s32.totalorder %s19, 0
      %p39 = por %p37, %p38
      %p40 = scmp.ne.s32.totalorder %s29, %s32
      %p41 = scmp.eq.s32.totalorder %s24, 1
      %p42 = por %p40, %p41
      %p43 = scmp.ne.s32.totalorder %s32, %s33
      %p44 = scmp.eq.s32.totalorder %s24, 0
      %p45 = por %p43, %p44
      %p46 = scmp.ne.s32.totalorder %s32, %s33
      %p47 = scmp.eq.s32.totalorder %s25, 1
      %p48 = por %p46, %p47
      %p50 = scmp.ne.s32.totalorder %s33, %s49
      %p51 = scmp.eq.s32.totalorder %s25, 0
      %p52 = por %p50, %p51
      %s54 = sadd.s32 %s53, 1
      %p57 = scmp.eq.s32.totalorder %s19, 1
      %p58 = scmp.ne.s32.totalorder %s53, %s55
      %p59 = scmp.eq.s32.totalorder %s19, 0
      %p60 = por %p58, %p59
      %p61 = scmp.ne.s32.totalorder %s53, %s55
      %p62 = scmp.eq.s32.totalorder %s24, 1
      %p63 = por %p61, %p62
      %p64 = scmp.ne.s32.totalorder %s55, %s56
      %p65 = scmp.eq.s32.totalorder %s24, 0
      %p66 = por %p64, %p65
      %p67 = scmp.ne.s32.totalorder %s55, %s56
      %p68 = scmp.eq.s32.totalorder %s25, 1
      %p69 = por %p67, %p68
      %p71 = scmp.ne.s32.totalorder %s56, %s70
      %p72 = scmp.eq.s32.totalorder %s25, 0
      %p73 = por %p71, %p72
      %s75 = sadd.s32 %s74, 1
      %p78 = scmp.eq.s32.totalorder %s19, 1
      %p79 = scmp.ne.s32.totalorder %s74, %s76
      %p80 = scmp.eq.s32.totalorder %s19, 0
      %p81 = por %p79, %p80
      %p82 = scmp.ne.s32.totalorder %s74, %s76
      %p83 = scmp.eq.s32.totalorder %s24, 1
      %p84 = por %p82, %p83
      %p85 = scmp.ne.s32.totalorder %s76, %s77
      %p86 = scmp.eq.s32.totalorder %s24, 0
      %p87 = por %p85, %p86
      %p88 = scmp.ne.s32.totalorder %s76, %s77
      %p89 = scmp.eq.s32.totalorder %s25, 1
      %p90 = por %p88, %p89
      %p92 = scmp.ne.s32.totalorder %s77, %s91
      %p93 = scmp.eq.s32.totalorder %s25, 0
      %p94 = por %p92, %p93
      %s96 = sadd.s32 %s95, 1
      %p99 = scmp.eq.s32.totalorder %s19, 1
      %p100 = scmp.ne.s32.totalorder %s95, %s97
      %p101 = scmp.eq.s32.totalorder %s19, 0
      %p102 = por %p100, %p101
      %p103 = scmp.ne.s32.totalorder %s95, %s97
      %p104 = scmp.eq.s32.totalorder %s24, 1
      %p105 = por %p103, %p104
      %p106 = scmp.ne.s32.totalorder %s97, %s98
      %p107 = scmp.eq.s32.totalorder %s24, 0
      %p108 = por %p106, %p107
      %p109 = scmp.ne.s32.totalorder %s97, %s98
      %p110 = scmp.eq.s32.totalorder %s25, 1
      %p111 = por %p109, %p110
      %p113 = scmp.ne.s32.totalorder %s98, %s112
      %p114 = scmp.eq.s32.totalorder %s25, 0
      %p115 = por %p113, %p114
      %s117 = sadd.s32 %s116, 1
      %p120 = scmp.eq.s32.totalorder %s19, 1
      %p121 = scmp.ne.s32.totalorder %s116, %s118
      %p122 = scmp.eq.s32.totalorder %s19, 0
      %p123 = por %p121, %p122
      %p124 = scmp.ne.s32.totalorder %s116, %s118
      %p125 = scmp.eq.s32.totalorder %s24, 1
      %p126 = por %p124, %p125
      %p127 = scmp.ne.s32.totalorder %s118, %s119
      %p128 = scmp.eq.s32.totalorder %s24, 0
      %p129 = por %p127, %p128
      %p130 = scmp.ne.s32.totalorder %s118, %s119
      %p131 = scmp.eq.s32.totalorder %s25, 1
      %p132 = por %p130, %p131
      %p134 = scmp.ne.s32.totalorder %s119, %s133
      %p135 = scmp.eq.s32.totalorder %s25, 0
      %p136 = por %p134, %p135
      %s138 = sadd.s32 %s137, 1
      %p141 = scmp.eq.s32.totalorder %s19, 1
      %p142 = scmp.ne.s32.totalorder %s137, %s139
      %p143 = scmp.eq.s32.totalorder %s19, 0
      %p144 = por %p142, %p143
      %p145 = scmp.ne.s32.totalorder %s137, %s139
      %p146 = scmp.eq.s32.totalorder %s24, 1
      %p147 = por %p145, %p146
      %p148 = scmp.ne.s32.totalorder %s139, %s140
      %p149 = scmp.eq.s32.totalorder %s24, 0
      %p150 = por %p148, %p149
      %p151 = scmp.ne.s32.totalorder %s139, %s140
      %p152 = scmp.eq.s32.totalorder %s25, 1
      %p153 = por %p151, %p152
      %p155 = scmp.ne.s32.totalorder %s140, %s154
      %p156 = scmp.eq.s32.totalorder %s25, 0
      %p157 = por %p155, %p156
      %s159 = sadd.s32 %s158, 1
      %p162 = scmp.eq.s32.totalorder %s19, 1
      %p163 = scmp.ne.s32.totalorder %s158, %s160
      %p164 = scmp.eq.s32.totalorder %s19, 0
      %p165 = por %p163, %p164
      %p166 = scmp.ne.s32.totalorder %s158, %s160
      %p167 = scmp.eq.s32.totalorder %s24, 1
      %p168 = por %p166, %p167
      %p169 = scmp.ne.s32.totalorder %s160, %s161
      %p170 = scmp.eq.s32.totalorder %s24, 0
      %p171 = por %p169, %p170
      %p172 = scmp.ne.s32.totalorder %s160, %s161
      %p173 = scmp.eq.s32.totalorder %s25, 1
      %p174 = por %p172, %p173
      %p176 = scmp.ne.s32.totalorder %s161, %s175
      %p177 = scmp.eq.s32.totalorder %s25, 0
      %p178 = por %p176, %p177
      %s180 = sadd.s32 %s179, 1
      %p183 = scmp.eq.s32.totalorder %s19, 1
      %p184 = scmp.ne.s32.totalorder %s179, %s181
      %p185 = scmp.eq.s32.totalorder %s19, 0
      %p186 = por %p184, %p185
      %p187 = scmp.ne.s32.totalorder %s179, %s181
      %p188 = scmp.eq.s32.totalorder %s24, 1
      %p189 = por %p187, %p188
      %p190 = scmp.ne.s32.totalorder %s181, %s182
      %p191 = scmp.eq.s32.totalorder %s24, 0
      %p192 = por %p190, %p191
      %p193 = scmp.ne.s32.totalorder %s181, %s182
      %p194 = scmp.eq.s32.totalorder %s25, 1
      %p195 = por %p193, %p194
      %p197 = scmp.ne.s32.totalorder %s182, %s196
      %p198 = scmp.eq.s32.totalorder %s25, 0
      %p199 = por %p197, %p198
      %s201 = sadd.s32 %s200, 1
      %p204 = scmp.eq.s32.totalorder %s19, 1
      %p205 = scmp.ne.s32.totalorder %s200, %s202
      %p206 = scmp.eq.s32.totalorder %s19, 0
      %p207 = por %p205, %p206
      %p208 = scmp.ne.s32.totalorder %s200, %s202
      %p209 = scmp.eq.s32.totalorder %s24, 1
      %p210 = por %p208, %p209
      %p211 = scmp.ne.s32.totalorder %s202, %s203
      %p212 = scmp.eq.s32.totalorder %s24, 0
      %p213 = por %p211, %p212
      %p214 = scmp.ne.s32.totalorder %s202, %s203
      %p215 = scmp.eq.s32.totalorder %s25, 1
      %p216 = por %p214, %p215
      %p218 = scmp.ne.s32.totalorder %s203, %s217
      %p219 = scmp.eq.s32.totalorder %s25, 0
      %p220 = por %p218, %p219
      %s222 = sadd.s32 %s221, 1
      %p225 = scmp.eq.s32.totalorder %s19, 1
      %p226 = scmp.ne.s32.totalorder %s221, %s223
      %p227 = scmp.eq.s32.totalorder %s19, 0
      %p228 = por %p226, %p227
      %p229 = scmp.ne.s32.totalorder %s221, %s223
      %p230 = scmp.eq.s32.totalorder %s24, 1
      %p231 = por %p229, %p230
      %p232 = scmp.ne.s32.totalorder %s223, %s224
      %p233 = scmp.eq.s32.totalorder %s24, 0
      %p234 = por %p232, %p233
      %p235 = scmp.ne.s32.totalorder %s223, %s224
      %p236 = scmp.eq.s32.totalorder %s25, 1
      %p237 = por %p235, %p236
      %p239 = scmp.ne.s32.totalorder %s224, %s238
      %p240 = scmp.eq.s32.totalorder %s25, 0
      %p241 = por %p239, %p240
      %s242 = ssub.s32 %s19, %s26
      %p243 = scmp.eq.s32.totalorder %s242, 0
      %s245 = sadd.s32 %s244, 1
      %s246 = scalar_select %p243, %s244, %s245
      %p249 = pneg %p243
      %p250 = scmp.eq.s32.totalorder %s19, 1
      %p251 = por %p249, %p250
      %p252 = scmp.ne.s32.totalorder %s244, %s247
      %p253 = scmp.eq.s32.totalorder %s19, 0
      %p254 = por %p252, %p253
      %p255 = scmp.ne.s32.totalorder %s244, %s247
      %p256 = scmp.eq.s32.totalorder %s24, 1
      %p257 = por %p255, %p256
      %p258 = scmp.ne.s32.totalorder %s247, %s248
      %p259 = scmp.eq.s32.totalorder %s24, 0
      %p260 = por %p258, %p259
      %p261 = scmp.ne.s32.totalorder %s247, %s248
      %p262 = scmp.eq.s32.totalorder %s25, 1
      %p263 = por %p261, %p262
      %p265 = scmp.ne.s32.totalorder %s248, %s264
      %p266 = scmp.eq.s32.totalorder %s25, 0
      %p267 = por %p265, %p266
      %p268 = scmp.le.s32.totalorder 1, %s19
      %p269 = scmp.lt.s32.totalorder %s19, 3
      %p270 = pnand %p268, %p269
      %p271 = pneg %p270
      // Predicated region
      $region9: #{cnn_small_forward.1} parent=5 // pred_check
        _
      $region10: #{cnn_small_forward.1} parent=5 // pred_check_branch
        %273 = sbr.rel (%p270) target = $region12
      $region11: #{cnn_small_forward.1} parent=5 // pred_region
        %s274 = ssub.s32 %s19, 1
        // Predicated region
        $region13: #{cnn_small_forward.1} parent=11 // pred_check
          %p275 = pneg %p66
        $region14: #{cnn_small_forward.1} parent=11 // pred_check_branch
          %277 = sbr.rel (%p275) target = $region16
        $region15: #{cnn_small_forward.1} parent=11 // pred_region
          _
        $region16: #{cnn_small_forward.1} parent=11 // pred_fallthru
          _
        // Predicated region
        $region17: #{cnn_small_forward.1} parent=11 // pred_check
          %p278 = pneg %p87
        $region18: #{cnn_small_forward.1} parent=11 // pred_check_branch
          %280 = sbr.rel (%p278) target = $region20
        $region19: #{cnn_small_forward.1} parent=11 // pred_region
          _
        $region20: #{cnn_small_forward.1} parent=11 // pred_fallthru
          _
        // Predicated region
        $region21: #{cnn_small_forward.1} parent=11 // pred_check
          %p281 = pneg %p108
        $region22: #{cnn_small_forward.1} parent=11 // pred_check_branch
          %283 = sbr.rel (%p281) target = $region24
        $region23: #{cnn_small_forward.1} parent=11 // pred_region
          _
        $region24: #{cnn_small_forward.1} parent=11 // pred_fallthru
          _
        // Predicated region
        $region25: #{cnn_small_forward.1} parent=11 // pred_check
          %p284 = pneg %p129
        $region26: #{cnn_small_forward.1} parent=11 // pred_check_branch
          %286 = sbr.rel (%p284) target = $region28
        $region27: #{cnn_small_forward.1} parent=11 // pred_region
          _
        $region28: #{cnn_small_forward.1} parent=11 // pred_fallthru
          _
        // Predicated region
        $region29: #{cnn_small_forward.1} parent=11 // pred_check
          %p287 = pneg %p150
        $region30: #{cnn_small_forward.1} parent=11 // pred_check_branch
          %289 = sbr.rel (%p287) target = $region32
        $region31: #{cnn_small_forward.1} parent=11 // pred_region
          _
        $region32: #{cnn_small_forward.1} parent=11 // pred_fallthru
          _
        // Predicated region
        $region33: #{cnn_small_forward.1} parent=11 // pred_check
          %p290 = pneg %p171
        $region34: #{cnn_small_forward.1} parent=11 // pred_check_branch
          %292 = sbr.rel (%p290) target = $region36
        $region35: #{cnn_small_forward.1} parent=11 // pred_region
          _
        $region36: #{cnn_small_forward.1} parent=11 // pred_fallthru
          _
        // Predicated region
        $region37: #{cnn_small_forward.1} parent=11 // pred_check
          %p293 = pneg %p192
        $region38: #{cnn_small_forward.1} parent=11 // pred_check_branch
          %295 = sbr.rel (%p293) target = $region40
        $region39: #{cnn_small_forward.1} parent=11 // pred_region
          _
        $region40: #{cnn_small_forward.1} parent=11 // pred_fallthru
          _
        // Predicated region
        $region41: #{cnn_small_forward.1} parent=11 // pred_check
          %p296 = pneg %p213
        $region42: #{cnn_small_forward.1} parent=11 // pred_check_branch
          %298 = sbr.rel (%p296) target = $region44
        $region43: #{cnn_small_forward.1} parent=11 // pred_region
          _
        $region44: #{cnn_small_forward.1} parent=11 // pred_fallthru
          _
        // Predicated region
        $region45: #{cnn_small_forward.1} parent=11 // pred_check
          %p299 = pneg %p234
        $region46: #{cnn_small_forward.1} parent=11 // pred_check_branch
          %301 = sbr.rel (%p299) target = $region48
        $region47: #{cnn_small_forward.1} parent=11 // pred_region
          _
        $region48: #{cnn_small_forward.1} parent=11 // pred_fallthru
          _
      $region12: #{cnn_small_forward.1} parent=5 // pred_fallthru
        _
      %p302 = scmp.lt.s32.totalorder %s19, 2
      // Predicated region
      $region49: #{cnn_small_forward.1} parent=5 // pred_check
        %p303 = pneg %p302
      $region50: #{cnn_small_forward.1} parent=5 // pred_check_branch
        %305 = sbr.rel (%p303) target = $region52
      $region51: #{cnn_small_forward.1} parent=5 // pred_region
        // Predicated region
        $region53: #{cnn_small_forward.1} parent=51 // pred_check
          %p306 = pneg %p39
        $region54: #{cnn_small_forward.1} parent=51 // pred_check_branch
          %308 = sbr.rel (%p306) target = $region56
        $region55: #{cnn_small_forward.1} parent=51 // pred_region
          %p309 = scmp.lt.s32.totalorder %s19, 1
          %s310 = scalar_select %p309, %s19, 1
          %s311 = smul.addr %s310, 201
          %s312 = smul.addr %s311, 4
          %s313 = scalar_lea.vmem %s0, %s312
        $region56: #{cnn_small_forward.1} parent=51 // pred_fallthru
          _
      $region52: #{cnn_small_forward.1} parent=5 // pred_fallthru
        _
      %p314 = scmp.le.s32.totalorder 1, %s19
      %p315 = scmp.lt.s32.totalorder %s19, 3
      %p316 = pnand %p314, %p315
      %p317 = pneg %p316
      // Predicated region
      $region57: #{cnn_small_forward.1} parent=5 // pred_check
        _
      $region58: #{cnn_small_forward.1} parent=5 // pred_check_branch
        %319 = sbr.rel (%p316) target = $region60
      $region59: #{cnn_small_forward.1} parent=5 // pred_region
        %s320 = ssub.s32 %s19, 1
        %p321 = scmp.lt.s32.totalorder %s24, 1
        %s322 = scalar_select %p321, %s24, 1
        %s323 = smul.addr %s322, 201
        %s324 = smul.addr %s323, 4
        %s325 = scalar_lea.vmem %s0, %s324
        %p326 = pneg %p45
        %p327 = pneg %p42
        %p328 = pneg %p66
        %p329 = pneg %p63
        %p330 = pneg %p87
        %p331 = pneg %p84
        %p332 = pneg %p108
        %p333 = pneg %p105
        %p334 = pneg %p129
        %p335 = pneg %p126
        %p336 = pneg %p150
        %p337 = pneg %p147
        %p338 = pneg %p171
        %p339 = pneg %p168
        %p340 = pneg %p192
        %p341 = pneg %p189
        %p342 = pneg %p213
        %p343 = pneg %p210
        %p344 = pneg %p234
        %p345 = pneg %p231
        %p346 = pneg %p260
        %p347 = pneg %p257
        %s348 = sand.u32 %s247, 1
        %s349 = scalar_lea.sflag [#allocation3], %s348
        %s350 = sand.u32 %s247, 1
        %s351 = scalar_lea.vmem [#allocation2], %s350
        %p352 = scmp.lt.s32.totalorder %s24, 1
        %s353 = scalar_select %p352, %s24, 1
        %s354 = smul.addr %s353, 201
        %s355 = smul.addr %s354, 4
        %s356 = scalar_lea.vmem %s0, %s355
        %v358 = vld [vmem:[%s356] sm:$0xff]
        %v359 = vld [vmem:[%s356 + $0x8] sm:$0xf]
        %v360 = vld [vmem:[%s356 + $0xc] sm:$0xff]
        %v361 = vld [vmem:[%s356 + $0x14] sm:$0xf]
        %v362 = vld [vmem:[%s356 + $0x18] sm:$0xff]
        %v363 = vld [vmem:[%s356 + $0x20] sm:$0xf]
        %v364 = vld [vmem:[%s356 + $0x24] sm:$0xff]
        %v365 = vld [vmem:[%s356 + $0x2c] sm:$0xf]
        %v366 = vld [vmem:[%s356 + $0x30] sm:$0xff]
        %v367 = vld [vmem:[%s356 + $0x38] sm:$0xf]
        %v368 = vld [vmem:[%s356 + $0x3c] sm:$0xff]
        %v369 = vld [vmem:[%s356 + $0x44] sm:$0xf]
        %v370 = vld [vmem:[%s356 + $0x48] sm:$0xff]
        %v371 = vld [vmem:[%s356 + $0x50] sm:$0xf]
        %v372 = vld [vmem:[%s356 + $0x54] sm:$0xff]
        %v373 = vld [vmem:[%s356 + $0x5c] sm:$0xf]
        %v374 = vld [vmem:[%s356 + $0x60] sm:$0xff]
        %v375 = vld [vmem:[%s356 + $0x68] sm:$0xf]
        %v376 = vld [vmem:[%s356 + $0x6c] sm:$0xff]
        %v377 = vld [vmem:[%s356 + $0x74] sm:$0xf]
        %v378 = vld [vmem:[%s356 + $0x78] sm:$0xff]
        %v379 = vld [vmem:[%s356 + $0x80] sm:$0xf]
        %v380 = vld [vmem:[%s356 + $0x84] sm:$0xff]
        %v381 = vld [vmem:[%s356 + $0x8c] sm:$0xf]
        %v382 = vld [vmem:[%s356 + $0x90] sm:$0xff]
        %v383 = vld [vmem:[%s356 + $0x98] sm:$0xf]
        %v384 = vld [vmem:[%s356 + $0x9c] sm:$0xff]
        %v385 = vld [vmem:[%s356 + $0xa4] sm:$0xf]
        %v386 = vld [vmem:[%s356 + $0xa8] sm:$0xff]
        %v387 = vld [vmem:[%s356 + $0xb0] sm:$0xf]
        %v388 = vld [vmem:[%s356 + $0xb4] sm:$0xff]
        %v389 = vld [vmem:[%s356 + $0xbc] sm:$0xf]
        %v390 = vld [vmem:[%s356 + $0xc0] sm:$0xff]
        %v391 = vld [vmem:[%s356 + $0xc8] sm:$0xf]
        %v392 = vld [vmem:[%s356 + $0xcc] sm:$0xff]
        %v393 = vld [vmem:[%s356 + $0xd4] sm:$0xf]
        %v394 = vld [vmem:[%s356 + $0xd8] sm:$0xff]
        %v395 = vld [vmem:[%s356 + $0xe0] sm:$0xf]
        %v396 = vld [vmem:[%s356 + $0xe4] sm:$0xff]
        %v397 = vld [vmem:[%s356 + $0xec] sm:$0xf]
        %v398 = vld [vmem:[%s356 + $0xf0] sm:$0xff]
        %v399 = vld [vmem:[%s356 + $0xf8] sm:$0xf]
        %v400 = vld [vmem:[%s356 + $0xfc] sm:$0xff]
        %v401 = vld [vmem:[%s356 + $0x104] sm:$0xf]
        %v402 = vld [vmem:[%s356 + $0x108] sm:$0xff]
        %v403 = vld [vmem:[%s356 + $0x110] sm:$0xf]
        %v404 = vld [vmem:[%s356 + $0x114] sm:$0xff]
        %v405 = vld [vmem:[%s356 + $0x11c] sm:$0xf]
        %v406 = vld [vmem:[%s356 + $0x120] sm:$0xff]
        %v407 = vld [vmem:[%s356 + $0x128] sm:$0xf]
        %v408 = vld [vmem:[%s356 + $0x12c] sm:$0xff]
        %v409 = vld [vmem:[%s356 + $0x134] sm:$0xf]
        %v410 = vld [vmem:[%s356 + $0x138] sm:$0xff]
        %v411 = vld [vmem:[%s356 + $0x140] sm:$0xf]
        %v412 = vld [vmem:[%s356 + $0x144] sm:$0xff]
        %v413 = vld [vmem:[%s356 + $0x14c] sm:$0xf]
        %v414 = vld [vmem:[%s356 + $0x150] sm:$0xff]
        %v415 = vld [vmem:[%s356 + $0x158] sm:$0xf]
        %v416 = vld [vmem:[%s356 + $0x15c] sm:$0xff]
        %v417 = vld [vmem:[%s356 + $0x164] sm:$0xf]
        %v418 = vld [vmem:[%s356 + $0x168] sm:$0xff]
        %v419 = vld [vmem:[%s356 + $0x170] sm:$0xf]
        %v420 = vld [vmem:[%s356 + $0x174] sm:$0xff]
        %v421 = vld [vmem:[%s356 + $0x17c] sm:$0xf]
        %v422 = vld [vmem:[%s356 + $0x180] sm:$0xff]
        %v423 = vld [vmem:[%s356 + $0x188] sm:$0xf]
        %v424 = vld [vmem:[%s356 + $0x18c] sm:$0xff]
        %v425 = vld [vmem:[%s356 + $0x194] sm:$0xf]
        %v426 = vld [vmem:[%s356 + $0x198] sm:$0xff]
        %v427 = vld [vmem:[%s356 + $0x1a0] sm:$0xf]
        %v428 = vld [vmem:[%s356 + $0x1a4] sm:$0xff]
        %v429 = vld [vmem:[%s356 + $0x1ac] sm:$0xf]
        %v430 = vld [vmem:[%s356 + $0x1b0] sm:$0xff]
        %v431 = vld [vmem:[%s356 + $0x1b8] sm:$0xf]
        %v432 = vld [vmem:[%s356 + $0x1bc] sm:$0xff]
        %v433 = vld [vmem:[%s356 + $0x1c4] sm:$0xf]
        %v434 = vld [vmem:[%s356 + $0x1c8] sm:$0xff]
        %v435 = vld [vmem:[%s356 + $0x1d0] sm:$0xf]
        %v436 = vld [vmem:[%s356 + $0x1d4] sm:$0xff]
        %v437 = vld [vmem:[%s356 + $0x1dc] sm:$0xf]
        %v438 = vld [vmem:[%s356 + $0x1e0] sm:$0xff]
        %v439 = vld [vmem:[%s356 + $0x1e8] sm:$0xf]
        %v440 = vld [vmem:[%s356 + $0x1ec] sm:$0xff]
        %v441 = vld [vmem:[%s356 + $0x1f4] sm:$0xf]
        %v442 = vld [vmem:[%s356 + $0x1f8] sm:$0xff]
        %v443 = vld [vmem:[%s356 + $0x200] sm:$0xf]
        %v444 = vld [vmem:[%s356 + $0x204] sm:$0xff]
        %v445 = vld [vmem:[%s356 + $0x20c] sm:$0xf]
        %v446 = vld [vmem:[%s356 + $0x210] sm:$0xff]
        %v447 = vld [vmem:[%s356 + $0x218] sm:$0xf]
        %v448 = vld [vmem:[%s356 + $0x21c] sm:$0xff]
        %v449 = vld [vmem:[%s356 + $0x224] sm:$0xf]
        %v450 = vld [vmem:[%s356 + $0x228] sm:$0xff]
        %v451 = vld [vmem:[%s356 + $0x230] sm:$0xf]
        %v452 = vld [vmem:[%s356 + $0x234] sm:$0xff]
        %v453 = vld [vmem:[%s356 + $0x23c] sm:$0xf]
        %v454 = vld [vmem:[%s356 + $0x240] sm:$0xff]
        %v455 = vld [vmem:[%s356 + $0x248] sm:$0xf]
        %v456 = vld [vmem:[%s356 + $0x24c] sm:$0xff]
        %v457 = vld [vmem:[%s356 + $0x254] sm:$0xf]
        %v458 = vld [vmem:[%s356 + $0x258] sm:$0xff]
        %v459 = vld [vmem:[%s356 + $0x260] sm:$0xf]
        %v460 = vld [vmem:[%s356 + $0x264] sm:$0xff]
        %v461 = vld [vmem:[%s356 + $0x26c] sm:$0xf]
        %v462 = vld [vmem:[%s356 + $0x270] sm:$0xff]
        %v463 = vld [vmem:[%s356 + $0x278] sm:$0xf]
        %v464 = vld [vmem:[%s356 + $0x27c] sm:$0xff]
        %v465 = vld [vmem:[%s356 + $0x284] sm:$0xf]
        %v466 = vld [vmem:[%s356 + $0x288] sm:$0xff]
        %v467 = vld [vmem:[%s356 + $0x290] sm:$0xf]
        %v468 = vld [vmem:[%s356 + $0x294] sm:$0xff]
        %v469 = vld [vmem:[%s356 + $0x29c] sm:$0xf]
        %v470 = vld [vmem:[%s356 + $0x2a0] sm:$0xff]
        %v471 = vld [vmem:[%s356 + $0x2a8] sm:$0xf]
        %v472 = vld [vmem:[%s356 + $0x2ac] sm:$0xff]
        %v473 = vld [vmem:[%s356 + $0x2b4] sm:$0xf]
        %v474 = vld [vmem:[%s356 + $0x2b8] sm:$0xff]
        %v475 = vld [vmem:[%s356 + $0x2c0] sm:$0xf]
        %v476 = vld [vmem:[%s356 + $0x2c4] sm:$0xff]
        %v477 = vld [vmem:[%s356 + $0x2cc] sm:$0xf]
        %v478 = vld [vmem:[%s356 + $0x2d0] sm:$0xff]
        %v479 = vld [vmem:[%s356 + $0x2d8] sm:$0xf]
        %v480 = vld [vmem:[%s356 + $0x2dc] sm:$0xff]
        %v481 = vld [vmem:[%s356 + $0x2e4] sm:$0xf]
        %v482 = vld [vmem:[%s356 + $0x2e8] sm:$0xff]
        %v483 = vld [vmem:[%s356 + $0x2f0] sm:$0xf]
        %v484 = vld [vmem:[%s356 + $0x2f4] sm:$0xff]
        %v485 = vld [vmem:[%s356 + $0x2fc] sm:$0xf]
        %v486 = vld [vmem:[%s356 + $0x300] sm:$0xff]
        %v487 = vld [vmem:[%s356 + $0x308] sm:$0xf]
        %v488 = vld [vmem:[%s356 + $0x30c] sm:$0xff]
        %v489 = vld [vmem:[%s356 + $0x314] sm:$0xf]
        %v490 = vld [vmem:[%s356 + $0x318] sm:$0xff]
        %v491 = vld [vmem:[%s356 + $0x320] sm:$0xf]
        %v492 = vld [vmem:[%s1] sm:$0xf]
        %v493 = vld [vmem:[%s1 + $0x4] sm:$0xf]
        %v494 = vld [vmem:[%s1 + $0x8] sm:$0xf]
        %v495 = vld [vmem:[%s1 + $0xc] sm:$0xf]
        %v496 = vld [vmem:[%s1 + $0x10] sm:$0xf]
        %v497 = vld [vmem:[%s1 + $0x14] sm:$0xf]
        %v498 = vld [vmem:[%s1 + $0x18] sm:$0xf]
        %v499 = vld [vmem:[%s1 + $0x1c] sm:$0xf]
        %v500 = vld [vmem:[%s1 + $0x20] sm:$0xf]
        %v501 = vld [vmem:[%s1 + $0x24] sm:$0xf]
        %v502 = vld [vmem:[%s1 + $0x28] sm:$0xf]
        %v503 = vld [vmem:[%s1 + $0x2c] sm:$0xf]
        %v504 = vld [vmem:[%s1 + $0x30] sm:$0xf]
        %v505 = vld [vmem:[%s1 + $0x34] sm:$0xf]
        %v506 = vld [vmem:[%s1 + $0x38] sm:$0xf]
        %v507 = vld [vmem:[%s1 + $0x3c] sm:$0xf]
        %v508 = vld [vmem:[%s1 + $0x40] sm:$0xf]
        %v509 = vld [vmem:[%s1 + $0x44] sm:$0xf]
        %v510 = vld [vmem:[%s1 + $0x48] sm:$0xf]
        %v511 = vld [vmem:[%s1 + $0x4c] sm:$0xf]
        %v512 = vld [vmem:[%s1 + $0x50] sm:$0xf]
        %v513 = vld [vmem:[%s1 + $0x54] sm:$0xf]
        %v514 = vld [vmem:[%s1 + $0x58] sm:$0xf]
        %v515 = vld [vmem:[%s1 + $0x5c] sm:$0xf]
        %v516 = vld [vmem:[%s1 + $0x60] sm:$0xf]
        %v517 = vld [vmem:[%s1 + $0x64] sm:$0xf]
        %v518 = vld [vmem:[%s1 + $0x68] sm:$0xf]
        %v519 = vld [vmem:[%s1 + $0x6c] sm:$0xf]
        %v520 = vld [vmem:[%s1 + $0x70] sm:$0xf]
        %v521 = vld [vmem:[%s1 + $0x74] sm:$0xf]
        %v522 = vld [vmem:[%s1 + $0x78] sm:$0xf]
        %v523 = vld [vmem:[%s1 + $0x7c] sm:$0xf]
        %v524 = vld [vmem:[%s1 + $0x80] sm:$0xf]
        %v525 = vld [vmem:[%s1 + $0x84] sm:$0xf]
        %v526 = vld [vmem:[%s1 + $0x88] sm:$0xf]
        %v527 = vld [vmem:[%s1 + $0x8c] sm:$0xf]
        %v528 = vld [vmem:[%s1 + $0x90] sm:$0xf]
        %v529 = vld [vmem:[%s1 + $0x94] sm:$0xf]
        %v530 = vld [vmem:[%s1 + $0x98] sm:$0xf]
        %v531 = vld [vmem:[%s1 + $0x9c] sm:$0xf]
        %v532 = vld [vmem:[%s1 + $0xa0] sm:$0xf]
        %v533 = vld [vmem:[%s1 + $0xa4] sm:$0xf]
        %v534 = vld [vmem:[%s1 + $0xa8] sm:$0xf]
        %v535 = vld [vmem:[%s1 + $0xac] sm:$0xf]
        %v536 = vld [vmem:[%s1 + $0xb0] sm:$0xf]
        %v537 = vld [vmem:[%s1 + $0xb4] sm:$0xf]
        %v538 = vld [vmem:[%s1 + $0xb8] sm:$0xf]
        %v539 = vld [vmem:[%s1 + $0xbc] sm:$0xf]
        %v674 = vunpack.c.l.b16 %v358
        %v675 = vunpack.c.h.b16 %v358
        %v676 = vunpack.c.l.b16 %v359
        %v677 = vunpack.c.l.b16 %v360
        %v678 = vunpack.c.h.b16 %v360
        %v679 = vunpack.c.l.b16 %v361
        %v680 = vunpack.c.l.b16 %v362
        %v681 = vunpack.c.h.b16 %v362
        %v682 = vunpack.c.l.b16 %v363
        %v683 = vunpack.c.l.b16 %v364
        %v684 = vunpack.c.h.b16 %v364
        %v685 = vunpack.c.l.b16 %v365
        %v686 = vunpack.c.l.b16 %v366
        %v687 = vunpack.c.h.b16 %v366
        %v688 = vunpack.c.l.b16 %v367
        %v689 = vunpack.c.l.b16 %v368
        %v690 = vunpack.c.h.b16 %v368
        %v691 = vunpack.c.l.b16 %v369
        %v692 = vunpack.c.l.b16 %v370
        %v693 = vunpack.c.h.b16 %v370
        %v694 = vunpack.c.l.b16 %v371
        %v695 = vunpack.c.l.b16 %v372
        %v696 = vunpack.c.h.b16 %v372
        %v697 = vunpack.c.l.b16 %v373
        %v698 = vunpack.c.l.b16 %v374
        %v699 = vunpack.c.h.b16 %v374
        %v700 = vunpack.c.l.b16 %v375
        %v701 = vunpack.c.l.b16 %v376
        %v702 = vunpack.c.h.b16 %v376
        %v703 = vunpack.c.l.b16 %v377
        %v704 = vunpack.c.l.b16 %v378
        %v705 = vunpack.c.h.b16 %v378
        %v706 = vunpack.c.l.b16 %v379
        %v707 = vunpack.c.l.b16 %v380
        %v708 = vunpack.c.h.b16 %v380
        %v709 = vunpack.c.l.b16 %v381
        %v710 = vunpack.c.l.b16 %v382
        %v711 = vunpack.c.h.b16 %v382
        %v712 = vunpack.c.l.b16 %v383
        %v713 = vunpack.c.l.b16 %v384
        %v714 = vunpack.c.h.b16 %v384
        %v715 = vunpack.c.l.b16 %v385
        %v716 = vunpack.c.l.b16 %v386
        %v717 = vunpack.c.h.b16 %v386
        %v718 = vunpack.c.l.b16 %v387
        %v719 = vunpack.c.l.b16 %v388
        %v720 = vunpack.c.h.b16 %v388
        %v721 = vunpack.c.l.b16 %v389
        %v722 = vunpack.c.l.b16 %v390
        %v723 = vunpack.c.h.b16 %v390
        %v724 = vunpack.c.l.b16 %v391
        %v725 = vunpack.c.l.b16 %v392
        %v726 = vunpack.c.h.b16 %v392
        %v727 = vunpack.c.l.b16 %v393
        %v728 = vunpack.c.l.b16 %v394
        %v729 = vunpack.c.h.b16 %v394
        %v730 = vunpack.c.l.b16 %v395
        %v731 = vunpack.c.l.b16 %v396
        %v732 = vunpack.c.h.b16 %v396
        %v733 = vunpack.c.l.b16 %v397
        %v734 = vunpack.c.l.b16 %v398
        %v735 = vunpack.c.h.b16 %v398
        %v736 = vunpack.c.l.b16 %v399
        %v737 = vunpack.c.l.b16 %v400
        %v738 = vunpack.c.h.b16 %v400
        %v739 = vunpack.c.l.b16 %v401
        %v740 = vunpack.c.l.b16 %v402
        %v741 = vunpack.c.h.b16 %v402
        %v742 = vunpack.c.l.b16 %v403
        %v743 = vunpack.c.l.b16 %v404
        %v744 = vunpack.c.h.b16 %v404
        %v745 = vunpack.c.l.b16 %v405
        %v746 = vunpack.c.l.b16 %v406
        %v747 = vunpack.c.h.b16 %v406
        %v748 = vunpack.c.l.b16 %v407
        %v749 = vunpack.c.l.b16 %v408
        %v750 = vunpack.c.h.b16 %v408
        %v751 = vunpack.c.l.b16 %v409
        %v752 = vunpack.c.l.b16 %v410
        %v753 = vunpack.c.h.b16 %v410
        %v754 = vunpack.c.l.b16 %v411
        %v755 = vunpack.c.l.b16 %v412
        %v756 = vunpack.c.h.b16 %v412
        %v757 = vunpack.c.l.b16 %v413
        %v758 = vunpack.c.l.b16 %v414
        %v759 = vunpack.c.h.b16 %v414
        %v760 = vunpack.c.l.b16 %v415
        %v761 = vunpack.c.l.b16 %v416
        %v762 = vunpack.c.h.b16 %v416
        %v763 = vunpack.c.l.b16 %v417
        %v764 = vunpack.c.l.b16 %v418
        %v765 = vunpack.c.h.b16 %v418
        %v766 = vunpack.c.l.b16 %v419
        %v767 = vunpack.c.l.b16 %v420
        %v768 = vunpack.c.h.b16 %v420
        %v769 = vunpack.c.l.b16 %v421
        %v770 = vunpack.c.l.b16 %v422
        %v771 = vunpack.c.h.b16 %v422
        %v772 = vunpack.c.l.b16 %v423
        %v773 = vunpack.c.l.b16 %v424
        %v774 = vunpack.c.h.b16 %v424
        %v775 = vunpack.c.l.b16 %v425
        %v776 = vunpack.c.l.b16 %v426
        %v777 = vunpack.c.h.b16 %v426
        %v778 = vunpack.c.l.b16 %v427
        %v779 = vunpack.c.l.b16 %v428
        %v780 = vunpack.c.h.b16 %v428
        %v781 = vunpack.c.l.b16 %v429
        %v782 = vunpack.c.l.b16 %v430
        %v783 = vunpack.c.h.b16 %v430
        %v784 = vunpack.c.l.b16 %v431
        %v785 = vunpack.c.l.b16 %v432
        %v786 = vunpack.c.h.b16 %v432
        %v787 = vunpack.c.l.b16 %v433
        %v788 = vunpack.c.l.b16 %v434
        %v789 = vunpack.c.h.b16 %v434
        %v790 = vunpack.c.l.b16 %v435
        %v791 = vunpack.c.l.b16 %v436
        %v792 = vunpack.c.h.b16 %v436
        %v793 = vunpack.c.l.b16 %v437
        %v794 = vunpack.c.l.b16 %v438
        %v795 = vunpack.c.h.b16 %v438
        %v796 = vunpack.c.l.b16 %v439
        %v797 = vunpack.c.l.b16 %v440
        %v798 = vunpack.c.h.b16 %v440
        %v799 = vunpack.c.l.b16 %v441
        %v800 = vunpack.c.l.b16 %v442
        %v801 = vunpack.c.h.b16 %v442
        %v802 = vunpack.c.l.b16 %v443
        %v803 = vunpack.c.l.b16 %v444
        %v804 = vunpack.c.h.b16 %v444
        %v805 = vunpack.c.l.b16 %v445
        %v806 = vunpack.c.l.b16 %v446
        %v807 = vunpack.c.h.b16 %v446
        %v808 = vunpack.c.l.b16 %v447
        %v809 = vunpack.c.l.b16 %v448
        %v810 = vunpack.c.h.b16 %v448
        %v811 = vunpack.c.l.b16 %v449
        %v812 = vunpack.c.l.b16 %v450
        %v813 = vunpack.c.h.b16 %v450
        %v814 = vunpack.c.l.b16 %v451
        %v815 = vunpack.c.l.b16 %v452
        %v816 = vunpack.c.h.b16 %v452
        %v817 = vunpack.c.l.b16 %v453
        %v818 = vunpack.c.l.b16 %v454
        %v819 = vunpack.c.h.b16 %v454
        %v820 = vunpack.c.l.b16 %v455
        %v821 = vunpack.c.l.b16 %v456
        %v822 = vunpack.c.h.b16 %v456
        %v823 = vunpack.c.l.b16 %v457
        %v824 = vunpack.c.l.b16 %v458
        %v825 = vunpack.c.h.b16 %v458
        %v826 = vunpack.c.l.b16 %v459
        %v827 = vunpack.c.l.b16 %v460
        %v828 = vunpack.c.h.b16 %v460
        %v829 = vunpack.c.l.b16 %v461
        %v830 = vunpack.c.l.b16 %v462
        %v831 = vunpack.c.h.b16 %v462
        %v832 = vunpack.c.l.b16 %v463
        %v833 = vunpack.c.l.b16 %v464
        %v834 = vunpack.c.h.b16 %v464
        %v835 = vunpack.c.l.b16 %v465
        %v836 = vunpack.c.l.b16 %v466
        %v837 = vunpack.c.h.b16 %v466
        %v838 = vunpack.c.l.b16 %v467
        %v839 = vunpack.c.l.b16 %v468
        %v840 = vunpack.c.h.b16 %v468
        %v841 = vunpack.c.l.b16 %v469
        %v842 = vunpack.c.l.b16 %v470
        %v843 = vunpack.c.h.b16 %v470
        %v844 = vunpack.c.l.b16 %v471
        %v845 = vunpack.c.l.b16 %v472
        %v846 = vunpack.c.h.b16 %v472
        %v847 = vunpack.c.l.b16 %v473
        %v848 = vunpack.c.l.b16 %v474
        %v849 = vunpack.c.h.b16 %v474
        %v850 = vunpack.c.l.b16 %v475
        %v851 = vunpack.c.l.b16 %v476
        %v852 = vunpack.c.h.b16 %v476
        %v853 = vunpack.c.l.b16 %v477
        %v854 = vunpack.c.l.b16 %v478
        %v855 = vunpack.c.h.b16 %v478
        %v856 = vunpack.c.l.b16 %v479
        %v857 = vunpack.c.l.b16 %v480
        %v858 = vunpack.c.h.b16 %v480
        %v859 = vunpack.c.l.b16 %v481
        %v860 = vunpack.c.l.b16 %v482
        %v861 = vunpack.c.h.b16 %v482
        %v862 = vunpack.c.l.b16 %v483
        %v863 = vunpack.c.l.b16 %v484
        %v864 = vunpack.c.h.b16 %v484
        %v865 = vunpack.c.l.b16 %v485
        %v866 = vunpack.c.l.b16 %v486
        %v867 = vunpack.c.h.b16 %v486
        %v868 = vunpack.c.l.b16 %v487
        %v869 = vunpack.c.l.b16 %v488
        %v870 = vunpack.c.h.b16 %v488
        %v871 = vunpack.c.l.b16 %v489
        %v872 = vunpack.c.l.b16 %v490
        %v873 = vunpack.c.h.b16 %v490
        %v874 = vunpack.c.l.b16 %v491
        %v875 = vpack.c.b16 %v677, %v674
        %v876 = vpack.c.b16 %v678, %v675
        %v877 = vpack.c.b16 %v679, %v676
        %v878 = vpack.c.b16 %v683, %v680
        %v879 = vpack.c.b16 %v684, %v681
        %v880 = vpack.c.b16 %v685, %v682
        %v881 = vpack.c.b16 %v689, %v686
        %v882 = vpack.c.b16 %v690, %v687
        %v883 = vpack.c.b16 %v691, %v688
        %v884 = vpack.c.b16 %v695, %v692
        %v885 = vpack.c.b16 %v696, %v693
        %v886 = vpack.c.b16 %v697, %v694
        %v887 = vpack.c.b16 %v701, %v698
        %v888 = vpack.c.b16 %v702, %v699
        %v889 = vpack.c.b16 %v703, %v700
        %v890 = vpack.c.b16 %v707, %v704
        %v891 = vpack.c.b16 %v708, %v705
        %v892 = vpack.c.b16 %v709, %v706
        %v893 = vpack.c.b16 %v713, %v710
        %v894 = vpack.c.b16 %v714, %v711
        %v895 = vpack.c.b16 %v715, %v712
        %v896 = vpack.c.b16 %v719, %v716
        %v897 = vpack.c.b16 %v720, %v717
        %v898 = vpack.c.b16 %v721, %v718
        %v899 = vpack.c.b16 %v725, %v722
        %v900 = vpack.c.b16 %v726, %v723
        %v901 = vpack.c.b16 %v727, %v724
        %v902 = vpack.c.b16 %v731, %v728
        %v903 = vpack.c.b16 %v732, %v729
        %v904 = vpack.c.b16 %v733, %v730
        %v905 = vpack.c.b16 %v737, %v734
        %v906 = vpack.c.b16 %v738, %v735
        %v907 = vpack.c.b16 %v739, %v736
        %v908 = vpack.c.b16 %v743, %v740
        %v909 = vpack.c.b16 %v744, %v741
        %v910 = vpack.c.b16 %v745, %v742
        %v911 = vpack.c.b16 %v749, %v746
        %v912 = vpack.c.b16 %v750, %v747
        %v913 = vpack.c.b16 %v751, %v748
        %v914 = vpack.c.b16 %v755, %v752
        %v915 = vpack.c.b16 %v756, %v753
        %v916 = vpack.c.b16 %v757, %v754
        %v917 = vpack.c.b16 %v761, %v758
        %v918 = vpack.c.b16 %v762, %v759
        %v919 = vpack.c.b16 %v763, %v760
        %v920 = vpack.c.b16 %v767, %v764
        %v921 = vpack.c.b16 %v768, %v765
        %v922 = vpack.c.b16 %v769, %v766
        %v923 = vpack.c.b16 %v773, %v770
        %v924 = vpack.c.b16 %v774, %v771
        %v925 = vpack.c.b16 %v775, %v772
        %v926 = vpack.c.b16 %v779, %v776
        %v927 = vpack.c.b16 %v780, %v777
        %v928 = vpack.c.b16 %v781, %v778
        %v929 = vpack.c.b16 %v785, %v782
        %v930 = vpack.c.b16 %v786, %v783
        %v931 = vpack.c.b16 %v787, %v784
        %v932 = vpack.c.b16 %v791, %v788
        %v933 = vpack.c.b16 %v792, %v789
        %v934 = vpack.c.b16 %v793, %v790
        %v935 = vpack.c.b16 %v797, %v794
        %v936 = vpack.c.b16 %v798, %v795
        %v937 = vpack.c.b16 %v799, %v796
        %v938 = vpack.c.b16 %v803, %v800
        %v939 = vpack.c.b16 %v804, %v801
        %v940 = vpack.c.b16 %v805, %v802
        %v941 = vpack.c.b16 %v809, %v806
        %v942 = vpack.c.b16 %v810, %v807
        %v943 = vpack.c.b16 %v811, %v808
        %v944 = vpack.c.b16 %v815, %v812
        %v945 = vpack.c.b16 %v816, %v813
        %v946 = vpack.c.b16 %v817, %v814
        %v947 = vpack.c.b16 %v821, %v818
        %v948 = vpack.c.b16 %v822, %v819
        %v949 = vpack.c.b16 %v823, %v820
        %v950 = vpack.c.b16 %v827, %v824
        %v951 = vpack.c.b16 %v828, %v825
        %v952 = vpack.c.b16 %v829, %v826
        %v953 = vpack.c.b16 %v833, %v830
        %v954 = vpack.c.b16 %v834, %v831
        %v955 = vpack.c.b16 %v835, %v832
        %v956 = vpack.c.b16 %v839, %v836
        %v957 = vpack.c.b16 %v840, %v837
        %v958 = vpack.c.b16 %v841, %v838
        %v959 = vpack.c.b16 %v845, %v842
        %v960 = vpack.c.b16 %v846, %v843
        %v961 = vpack.c.b16 %v847, %v844
        %v962 = vpack.c.b16 %v851, %v848
        %v963 = vpack.c.b16 %v852, %v849
        %v964 = vpack.c.b16 %v853, %v850
        %v965 = vpack.c.b16 %v857, %v854
        %v966 = vpack.c.b16 %v858, %v855
        %v967 = vpack.c.b16 %v859, %v856
        %v968 = vpack.c.b16 %v863, %v860
        %v969 = vpack.c.b16 %v864, %v861
        %v970 = vpack.c.b16 %v865, %v862
        %v971 = vpack.c.b16 %v869, %v866
        %v972 = vpack.c.b16 %v870, %v867
        %v973 = vpack.c.b16 %v871, %v868
        %v974 = vpack.c.b16 %v872, %v872
        %v975 = vpack.c.b16 %v873, %v873
        %v976 = vpack.c.b16 %v874, %v874
        %v1127 = vunpack.c.l.b16 %v492
        %v1128 = vunpack.c.l.b16 %v493
        %v1129 = vunpack.c.l.b16 %v494
        %v1130 = vunpack.c.l.b16 %v495
        %v1131 = vunpack.c.l.b16 %v496
        %v1132 = vunpack.c.l.b16 %v497
        %v1133 = vunpack.c.l.b16 %v498
        %v1134 = vunpack.c.l.b16 %v499
        %v1135 = vunpack.c.l.b16 %v500
        %v1136 = vunpack.c.l.b16 %v501
        %v1137 = vunpack.c.l.b16 %v502
        %v1138 = vunpack.c.l.b16 %v503
        %v1139 = vunpack.c.l.b16 %v504
        %v1140 = vunpack.c.l.b16 %v505
        %v1141 = vunpack.c.l.b16 %v506
        %v1142 = vunpack.c.l.b16 %v507
        %v1143 = vunpack.c.l.b16 %v508
        %v1144 = vunpack.c.l.b16 %v509
        %v1145 = vunpack.c.l.b16 %v510
        %v1146 = vunpack.c.l.b16 %v511
        %v1147 = vunpack.c.l.b16 %v512
        %v1148 = vunpack.c.l.b16 %v513
        %v1149 = vunpack.c.l.b16 %v514
        %v1150 = vunpack.c.l.b16 %v515
        %v1151 = vunpack.c.l.b16 %v516
        %v1152 = vunpack.c.l.b16 %v517
        %v1153 = vunpack.c.l.b16 %v518
        %v1154 = vunpack.c.l.b16 %v519
        %v1155 = vunpack.c.l.b16 %v520
        %v1156 = vunpack.c.l.b16 %v521
        %v1157 = vunpack.c.l.b16 %v522
        %v1158 = vunpack.c.l.b16 %v523
        %v1159 = vunpack.c.l.b16 %v524
        %v1160 = vunpack.c.l.b16 %v525
        %v1161 = vunpack.c.l.b16 %v526
        %v1162 = vunpack.c.l.b16 %v527
        %v1163 = vunpack.c.l.b16 %v528
        %v1164 = vunpack.c.l.b16 %v529
        %v1165 = vunpack.c.l.b16 %v530
        %v1166 = vunpack.c.l.b16 %v531
        %v1167 = vunpack.c.l.b16 %v532
        %v1168 = vunpack.c.l.b16 %v533
        %v1169 = vunpack.c.l.b16 %v534
        %v1170 = vunpack.c.l.b16 %v535
        %v1171 = vunpack.c.l.b16 %v536
        %v1172 = vunpack.c.l.b16 %v537
        %v1173 = vunpack.c.l.b16 %v538
        %v1174 = vunpack.c.l.b16 %v539
        %v1175 = vpack.c.b16 %v1128, %v1127
        %v1176 = vpack.c.b16 %v1130, %v1129
        %v1177 = vpack.c.b16 %v1132, %v1131
        %v1178 = vpack.c.b16 %v1134, %v1133
        %v1179 = vpack.c.b16 %v1136, %v1135
        %v1180 = vpack.c.b16 %v1138, %v1137
        %v1181 = vpack.c.b16 %v1140, %v1139
        %v1182 = vpack.c.b16 %v1142, %v1141
        %v1183 = vpack.c.b16 %v1144, %v1143
        %v1184 = vpack.c.b16 %v1146, %v1145
        %v1185 = vpack.c.b16 %v1148, %v1147
        %v1186 = vpack.c.b16 %v1150, %v1149
        %v1187 = vpack.c.b16 %v1152, %v1151
        %v1188 = vpack.c.b16 %v1154, %v1153
        %v1189 = vpack.c.b16 %v1156, %v1155
        %v1190 = vpack.c.b16 %v1158, %v1157
        %v1191 = vpack.c.b16 %v1160, %v1159
        %v1192 = vpack.c.b16 %v1162, %v1161
        %v1193 = vpack.c.b16 %v1164, %v1163
        %v1194 = vpack.c.b16 %v1166, %v1165
        %v1195 = vpack.c.b16 %v1168, %v1167
        %v1196 = vpack.c.b16 %v1170, %v1169
        %v1197 = vpack.c.b16 %v1172, %v1171
        %v1198 = vpack.c.b16 %v1174, %v1173
        %1223 = vmatpush.bf16.msra.mxu0 %v1182
        %1224 = vmatpush.bf16.msra.mxu0 %v1181
        %1225 = vmatpush.bf16.msra.mxu0 %v1180
        %1226 = vmatpush.bf16.msra.mxu0 %v1179
        %1227 = vmatpush.bf16.msra.mxu0 %v1178
        %1228 = vmatpush.bf16.msra.mxu0 %v1177
        %1229 = vmatpush.bf16.msra.mxu0 %v1176
        %1230 = vmatpush.bf16.msra.mxu0 %v1175
        %1231 = vmatmul.bf16.gmra.mxu0 %v875
        %v1232 = vpop.f32.mrf.mxu0
        %v1233 = vadd.f32 0.0, %v1232
        %v1234 = vpop.f32.mrf.mxu0
        %v1235 = vadd.f32 0.0, %v1234
        %1236 = vmatmul.bf16.gmra.mxu0 %v878
        %v1237 = vpop.f32.mrf.mxu0
        %v1238 = vadd.f32 0.0, %v1237
        %v1239 = vpop.f32.mrf.mxu0
        %v1240 = vadd.f32 0.0, %v1239
        %1241 = vmatmul.bf16.gmra.mxu0 %v881
        %v1242 = vpop.f32.mrf.mxu0
        %v1243 = vadd.f32 0.0, %v1242
        %v1244 = vpop.f32.mrf.mxu0
        %v1245 = vadd.f32 0.0, %v1244
        %1246 = vmatmul.bf16.gmra.mxu0 %v884
        %v1247 = vpop.f32.mrf.mxu0
        %v1248 = vadd.f32 0.0, %v1247
        %v1249 = vpop.f32.mrf.mxu0
        %v1250 = vadd.f32 0.0, %v1249
        %1251 = vmatmul.bf16.gmra.mxu0 %v887
        %v1252 = vpop.f32.mrf.mxu0
        %v1253 = vadd.f32 0.0, %v1252
        %v1254 = vpop.f32.mrf.mxu0
        %v1255 = vadd.f32 0.0, %v1254
        %1256 = vmatmul.bf16.gmra.mxu0 %v890
        %v1257 = vpop.f32.mrf.mxu0
        %v1258 = vadd.f32 0.0, %v1257
        %v1259 = vpop.f32.mrf.mxu0
        %v1260 = vadd.f32 0.0, %v1259
        %1261 = vmatmul.bf16.gmra.mxu0 %v893
        %v1262 = vpop.f32.mrf.mxu0
        %v1263 = vadd.f32 0.0, %v1262
        %v1264 = vpop.f32.mrf.mxu0
        %v1265 = vadd.f32 0.0, %v1264
        %1266 = vmatmul.bf16.gmra.mxu0 %v896
        %v1267 = vpop.f32.mrf.mxu0
        %v1268 = vadd.f32 0.0, %v1267
        %v1269 = vpop.f32.mrf.mxu0
        %v1270 = vadd.f32 0.0, %v1269
        %1271 = vmatmul.bf16.gmra.mxu0 %v899
        %v1272 = vpop.f32.mrf.mxu0
        %v1273 = vadd.f32 0.0, %v1272
        %v1274 = vpop.f32.mrf.mxu0
        %v1275 = vadd.f32 0.0, %v1274
        %1276 = vmatmul.bf16.gmra.mxu0 %v902
        %v1277 = vpop.f32.mrf.mxu0
        %v1278 = vadd.f32 0.0, %v1277
        %v1279 = vpop.f32.mrf.mxu0
        %v1280 = vadd.f32 0.0, %v1279
        %1281 = vmatmul.bf16.gmra.mxu0 %v905
        %v1282 = vpop.f32.mrf.mxu0
        %v1283 = vadd.f32 0.0, %v1282
        %v1284 = vpop.f32.mrf.mxu0
        %v1285 = vadd.f32 0.0, %v1284
        %1286 = vmatmul.bf16.gmra.mxu0 %v908
        %v1287 = vpop.f32.mrf.mxu0
        %v1288 = vadd.f32 0.0, %v1287
        %v1289 = vpop.f32.mrf.mxu0
        %v1290 = vadd.f32 0.0, %v1289
        %1291 = vmatmul.bf16.gmra.mxu0 %v911
        %v1292 = vpop.f32.mrf.mxu0
        %v1293 = vadd.f32 0.0, %v1292
        %v1294 = vpop.f32.mrf.mxu0
        %v1295 = vadd.f32 0.0, %v1294
        %1296 = vmatmul.bf16.gmra.mxu0 %v914
        %v1297 = vpop.f32.mrf.mxu0
        %v1298 = vadd.f32 0.0, %v1297
        %v1299 = vpop.f32.mrf.mxu0
        %v1300 = vadd.f32 0.0, %v1299
        %1301 = vmatmul.bf16.gmra.mxu0 %v917
        %v1302 = vpop.f32.mrf.mxu0
        %v1303 = vadd.f32 0.0, %v1302
        %v1304 = vpop.f32.mrf.mxu0
        %v1305 = vadd.f32 0.0, %v1304
        %1306 = vmatmul.bf16.gmra.mxu0 %v920
        %v1307 = vpop.f32.mrf.mxu0
        %v1308 = vadd.f32 0.0, %v1307
        %v1309 = vpop.f32.mrf.mxu0
        %v1310 = vadd.f32 0.0, %v1309
        %1311 = vmatmul.bf16.gmra.mxu0 %v923
        %v1312 = vpop.f32.mrf.mxu0
        %v1313 = vadd.f32 0.0, %v1312
        %v1314 = vpop.f32.mrf.mxu0
        %v1315 = vadd.f32 0.0, %v1314
        %1316 = vmatmul.bf16.gmra.mxu0 %v926
        %v1317 = vpop.f32.mrf.mxu0
        %v1318 = vadd.f32 0.0, %v1317
        %v1319 = vpop.f32.mrf.mxu0
        %v1320 = vadd.f32 0.0, %v1319
        %1321 = vmatmul.bf16.gmra.mxu0 %v929
        %v1322 = vpop.f32.mrf.mxu0
        %v1323 = vadd.f32 0.0, %v1322
        %v1324 = vpop.f32.mrf.mxu0
        %v1325 = vadd.f32 0.0, %v1324
        %1326 = vmatmul.bf16.gmra.mxu0 %v932
        %v1327 = vpop.f32.mrf.mxu0
        %v1328 = vadd.f32 0.0, %v1327
        %v1329 = vpop.f32.mrf.mxu0
        %v1330 = vadd.f32 0.0, %v1329
        %1331 = vmatmul.bf16.gmra.mxu0 %v935
        %v1332 = vpop.f32.mrf.mxu0
        %v1333 = vadd.f32 0.0, %v1332
        %v1334 = vpop.f32.mrf.mxu0
        %v1335 = vadd.f32 0.0, %v1334
        %1336 = vmatmul.bf16.gmra.mxu0 %v938
        %v1337 = vpop.f32.mrf.mxu0
        %v1338 = vadd.f32 0.0, %v1337
        %v1339 = vpop.f32.mrf.mxu0
        %v1340 = vadd.f32 0.0, %v1339
        %1341 = vmatmul.bf16.gmra.mxu0 %v941
        %v1342 = vpop.f32.mrf.mxu0
        %v1343 = vadd.f32 0.0, %v1342
        %v1344 = vpop.f32.mrf.mxu0
        %v1345 = vadd.f32 0.0, %v1344
        %1346 = vmatmul.bf16.gmra.mxu0 %v944
        %v1347 = vpop.f32.mrf.mxu0
        %v1348 = vadd.f32 0.0, %v1347
        %v1349 = vpop.f32.mrf.mxu0
        %v1350 = vadd.f32 0.0, %v1349
        %1351 = vmatmul.bf16.gmra.mxu0 %v947
        %v1352 = vpop.f32.mrf.mxu0
        %v1353 = vadd.f32 0.0, %v1352
        %v1354 = vpop.f32.mrf.mxu0
        %v1355 = vadd.f32 0.0, %v1354
        %1356 = vmatmul.bf16.gmra.mxu0 %v950
        %v1357 = vpop.f32.mrf.mxu0
        %v1358 = vadd.f32 0.0, %v1357
        %v1359 = vpop.f32.mrf.mxu0
        %v1360 = vadd.f32 0.0, %v1359
        %1361 = vmatmul.bf16.gmra.mxu0 %v953
        %v1362 = vpop.f32.mrf.mxu0
        %v1363 = vadd.f32 0.0, %v1362
        %v1364 = vpop.f32.mrf.mxu0
        %v1365 = vadd.f32 0.0, %v1364
        %1366 = vmatmul.bf16.gmra.mxu0 %v956
        %v1367 = vpop.f32.mrf.mxu0
        %v1368 = vadd.f32 0.0, %v1367
        %v1369 = vpop.f32.mrf.mxu0
        %v1370 = vadd.f32 0.0, %v1369
        %1371 = vmatmul.bf16.gmra.mxu0 %v959
        %v1372 = vpop.f32.mrf.mxu0
        %v1373 = vadd.f32 0.0, %v1372
        %v1374 = vpop.f32.mrf.mxu0
        %v1375 = vadd.f32 0.0, %v1374
        %1376 = vmatmul.bf16.gmra.mxu0 %v962
        %v1377 = vpop.f32.mrf.mxu0
        %v1378 = vpop.f32.mrf.mxu0
        %1379 = vmatmul.bf16.gmra.mxu0 %v965
        %v1380 = vpop.f32.mrf.mxu0
        %v1381 = vpop.f32.mrf.mxu0
        %1382 = vmatmul.bf16.gmra.mxu0 %v968
        %v1383 = vpop.f32.mrf.mxu0
        %v1384 = vpop.f32.mrf.mxu0
        %1385 = vmatmul.bf16.gmra.mxu0 %v971
        %v1386 = vpop.f32.mrf.mxu0
        %v1387 = vpop.f32.mrf.mxu0
        %1388 = vmatmul.bf16.gmra.mxu0 %v974
        %v1389 = vpop.f32.mrf.mxu0
        %v1390 = vpop.f32.mrf.mxu0
        %1391 = vdwg.mxu0
        %1392 = vmatpush.bf16.msra.mxu0 %v1190
        %1393 = vmatpush.bf16.msra.mxu0 %v1189
        %1394 = vmatpush.bf16.msra.mxu0 %v1188
        %1395 = vmatpush.bf16.msra.mxu0 %v1187
        %1396 = vmatpush.bf16.msra.mxu0 %v1186
        %1397 = vmatpush.bf16.msra.mxu0 %v1185
        %1398 = vmatpush.bf16.msra.mxu0 %v1184
        %1399 = vmatpush.bf16.msra.mxu0 %v1183
        %1400 = vmatmul.bf16.gmra.mxu0 %v876
        %v1401 = vpop.f32.mrf.mxu0
        %v1402 = vadd.f32 %v1233, %v1401
        %v1403 = vpop.f32.mrf.mxu0
        %v1404 = vadd.f32 %v1235, %v1403
        %1405 = vmatmul.bf16.gmra.mxu0 %v879
        %v1406 = vpop.f32.mrf.mxu0
        %v1407 = vadd.f32 %v1238, %v1406
        %v1408 = vpop.f32.mrf.mxu0
        %v1409 = vadd.f32 %v1240, %v1408
        %1410 = vmatmul.bf16.gmra.mxu0 %v882
        %v1411 = vpop.f32.mrf.mxu0
        %v1412 = vadd.f32 %v1243, %v1411
        %v1413 = vpop.f32.mrf.mxu0
        %v1414 = vadd.f32 %v1245, %v1413
        %1415 = vmatmul.bf16.gmra.mxu0 %v885
        %v1416 = vpop.f32.mrf.mxu0
        %v1417 = vadd.f32 %v1248, %v1416
        %v1418 = vpop.f32.mrf.mxu0
        %v1419 = vadd.f32 %v1250, %v1418
        %1420 = vmatmul.bf16.gmra.mxu0 %v888
        %v1421 = vpop.f32.mrf.mxu0
        %v1422 = vadd.f32 %v1253, %v1421
        %v1423 = vpop.f32.mrf.mxu0
        %v1424 = vadd.f32 %v1255, %v1423
        %1425 = vmatmul.bf16.gmra.mxu0 %v891
        %v1426 = vpop.f32.mrf.mxu0
        %v1427 = vadd.f32 %v1258, %v1426
        %v1428 = vpop.f32.mrf.mxu0
        %v1429 = vadd.f32 %v1260, %v1428
        %1430 = vmatmul.bf16.gmra.mxu0 %v894
        %v1431 = vpop.f32.mrf.mxu0
        %v1432 = vadd.f32 %v1263, %v1431
        %v1433 = vpop.f32.mrf.mxu0
        %v1434 = vadd.f32 %v1265, %v1433
        %1435 = vmatmul.bf16.gmra.mxu0 %v897
        %v1436 = vpop.f32.mrf.mxu0
        %v1437 = vadd.f32 %v1268, %v1436
        %v1438 = vpop.f32.mrf.mxu0
        %v1439 = vadd.f32 %v1270, %v1438
        %1440 = vmatmul.bf16.gmra.mxu0 %v900
        %v1441 = vpop.f32.mrf.mxu0
        %v1442 = vadd.f32 %v1273, %v1441
        %v1443 = vpop.f32.mrf.mxu0
        %v1444 = vadd.f32 %v1275, %v1443
        %1445 = vmatmul.bf16.gmra.mxu0 %v903
        %v1446 = vpop.f32.mrf.mxu0
        %v1447 = vadd.f32 %v1278, %v1446
        %v1448 = vpop.f32.mrf.mxu0
        %v1449 = vadd.f32 %v1280, %v1448
        %1450 = vmatmul.bf16.gmra.mxu0 %v906
        %v1451 = vpop.f32.mrf.mxu0
        %v1452 = vadd.f32 %v1283, %v1451
        %v1453 = vpop.f32.mrf.mxu0
        %v1454 = vadd.f32 %v1285, %v1453
        %1455 = vmatmul.bf16.gmra.mxu0 %v909
        %v1456 = vpop.f32.mrf.mxu0
        %v1457 = vadd.f32 %v1288, %v1456
        %v1458 = vpop.f32.mrf.mxu0
        %v1459 = vadd.f32 %v1290, %v1458
        %1460 = vmatmul.bf16.gmra.mxu0 %v912
        %v1461 = vpop.f32.mrf.mxu0
        %v1462 = vadd.f32 %v1293, %v1461
        %v1463 = vpop.f32.mrf.mxu0
        %v1464 = vadd.f32 %v1295, %v1463
        %1465 = vmatmul.bf16.gmra.mxu0 %v915
        %v1466 = vpop.f32.mrf.mxu0
        %v1467 = vadd.f32 %v1298, %v1466
        %v1468 = vpop.f32.mrf.mxu0
        %v1469 = vadd.f32 %v1300, %v1468
        %1470 = vmatmul.bf16.gmra.mxu0 %v918
        %v1471 = vpop.f32.mrf.mxu0
        %v1472 = vadd.f32 %v1303, %v1471
        %v1473 = vpop.f32.mrf.mxu0
        %v1474 = vadd.f32 %v1305, %v1473
        %1475 = vmatmul.bf16.gmra.mxu0 %v921
        %v1476 = vpop.f32.mrf.mxu0
        %v1477 = vadd.f32 %v1308, %v1476
        %v1478 = vpop.f32.mrf.mxu0
        %v1479 = vadd.f32 %v1310, %v1478
        %1480 = vmatmul.bf16.gmra.mxu0 %v924
        %v1481 = vpop.f32.mrf.mxu0
        %v1482 = vadd.f32 %v1313, %v1481
        %v1483 = vpop.f32.mrf.mxu0
        %v1484 = vadd.f32 %v1315, %v1483
        %1485 = vmatmul.bf16.gmra.mxu0 %v927
        %v1486 = vpop.f32.mrf.mxu0
        %v1487 = vadd.f32 %v1318, %v1486
        %v1488 = vpop.f32.mrf.mxu0
        %v1489 = vadd.f32 %v1320, %v1488
        %1490 = vmatmul.bf16.gmra.mxu0 %v930
        %v1491 = vpop.f32.mrf.mxu0
        %v1492 = vadd.f32 %v1323, %v1491
        %v1493 = vpop.f32.mrf.mxu0
        %v1494 = vadd.f32 %v1325, %v1493
        %1495 = vmatmul.bf16.gmra.mxu0 %v933
        %v1496 = vpop.f32.mrf.mxu0
        %v1497 = vadd.f32 %v1328, %v1496
        %v1498 = vpop.f32.mrf.mxu0
        %v1499 = vadd.f32 %v1330, %v1498
        %1500 = vmatmul.bf16.gmra.mxu0 %v936
        %v1501 = vpop.f32.mrf.mxu0
        %v1502 = vadd.f32 %v1333, %v1501
        %v1503 = vpop.f32.mrf.mxu0
        %v1504 = vadd.f32 %v1335, %v1503
        %1505 = vmatmul.bf16.gmra.mxu0 %v939
        %v1506 = vpop.f32.mrf.mxu0
        %v1507 = vadd.f32 %v1338, %v1506
        %v1508 = vpop.f32.mrf.mxu0
        %v1509 = vadd.f32 %v1340, %v1508
        %1510 = vmatmul.bf16.gmra.mxu0 %v942
        %v1511 = vpop.f32.mrf.mxu0
        %v1512 = vadd.f32 %v1343, %v1511
        %v1513 = vpop.f32.mrf.mxu0
        %v1514 = vadd.f32 %v1345, %v1513
        %1515 = vmatmul.bf16.gmra.mxu0 %v945
        %v1516 = vpop.f32.mrf.mxu0
        %v1517 = vadd.f32 %v1348, %v1516
        %v1518 = vpop.f32.mrf.mxu0
        %v1519 = vadd.f32 %v1350, %v1518
        %1520 = vmatmul.bf16.gmra.mxu0 %v948
        %v1521 = vpop.f32.mrf.mxu0
        %v1522 = vadd.f32 %v1353, %v1521
        %v1523 = vpop.f32.mrf.mxu0
        %v1524 = vadd.f32 %v1355, %v1523
        %1525 = vmatmul.bf16.gmra.mxu0 %v951
        %v1526 = vpop.f32.mrf.mxu0
        %v1527 = vadd.f32 %v1358, %v1526
        %v1528 = vpop.f32.mrf.mxu0
        %v1529 = vadd.f32 %v1360, %v1528
        %1530 = vmatmul.bf16.gmra.mxu0 %v954
        %v1531 = vpop.f32.mrf.mxu0
        %v1532 = vadd.f32 %v1363, %v1531
        %v1533 = vpop.f32.mrf.mxu0
        %v1534 = vadd.f32 %v1365, %v1533
        %1535 = vmatmul.bf16.gmra.mxu0 %v957
        %v1536 = vpop.f32.mrf.mxu0
        %v1537 = vadd.f32 %v1368, %v1536
        %v1538 = vpop.f32.mrf.mxu0
        %v1539 = vadd.f32 %v1370, %v1538
        %1540 = vmatmul.bf16.gmra.mxu0 %v960
        %v1541 = vpop.f32.mrf.mxu0
        %v1542 = vadd.f32 %v1373, %v1541
        %v1543 = vpop.f32.mrf.mxu0
        %v1544 = vadd.f32 %v1375, %v1543
        %1545 = vmatmul.bf16.gmra.mxu0 %v963
        %v1546 = vpop.f32.mrf.mxu0
        %v1547 = vpop.f32.mrf.mxu0
        %1548 = vmatmul.bf16.gmra.mxu0 %v966
        %v1549 = vpop.f32.mrf.mxu0
        %v1550 = vpop.f32.mrf.mxu0
        %1551 = vmatmul.bf16.gmra.mxu0 %v969
        %v1552 = vpop.f32.mrf.mxu0
        %v1553 = vpop.f32.mrf.mxu0
        %1554 = vmatmul.bf16.gmra.mxu0 %v972
        %v1555 = vpop.f32.mrf.mxu0
        %v1556 = vpop.f32.mrf.mxu0
        %1557 = vmatmul.bf16.gmra.mxu0 %v975
        %v1558 = vpop.f32.mrf.mxu0
        %v1559 = vpop.f32.mrf.mxu0
        %1560 = vdwg.mxu0
        %1561 = vmatpush.bf16.msra.mxu0 %v1198
        %1562 = vmatpush.bf16.msra.mxu0 %v1197
        %1563 = vmatpush.bf16.msra.mxu0 %v1196
        %1564 = vmatpush.bf16.msra.mxu0 %v1195
        %1565 = vmatpush.bf16.msra.mxu0 %v1194
        %1566 = vmatpush.bf16.msra.mxu0 %v1193
        %1567 = vmatpush.bf16.msra.mxu0 %v1192
        %1568 = vmatpush.bf16.msra.mxu0 %v1191
        %1569 = vmatmul.bf16.gmra.mxu0 %v877
        %v1570 = vpop.f32.mrf.mxu0
        %v1571 = vadd.f32 %v1402, %v1570
        %v1572 = vpop.f32.mrf.mxu0
        %v1573 = vadd.f32 %v1404, %v1572
        %1574 = vmatmul.bf16.gmra.mxu0 %v880
        %v1575 = vpop.f32.mrf.mxu0
        %v1576 = vadd.f32 %v1407, %v1575
        %v1577 = vpop.f32.mrf.mxu0
        %v1578 = vadd.f32 %v1409, %v1577
        %1579 = vmatmul.bf16.gmra.mxu0 %v883
        %v1580 = vpop.f32.mrf.mxu0
        %v1581 = vadd.f32 %v1412, %v1580
        %v1582 = vpop.f32.mrf.mxu0
        %v1583 = vadd.f32 %v1414, %v1582
        %1584 = vmatmul.bf16.gmra.mxu0 %v886
        %v1585 = vpop.f32.mrf.mxu0
        %v1586 = vadd.f32 %v1417, %v1585
        %v1587 = vpop.f32.mrf.mxu0
        %v1588 = vadd.f32 %v1419, %v1587
        %1589 = vmatmul.bf16.gmra.mxu0 %v889
        %v1590 = vpop.f32.mrf.mxu0
        %v1591 = vadd.f32 %v1422, %v1590
        %v1592 = vpop.f32.mrf.mxu0
        %v1593 = vadd.f32 %v1424, %v1592
        %1594 = vmatmul.bf16.gmra.mxu0 %v892
        %v1595 = vpop.f32.mrf.mxu0
        %v1596 = vadd.f32 %v1427, %v1595
        %v1597 = vpop.f32.mrf.mxu0
        %v1598 = vadd.f32 %v1429, %v1597
        %1599 = vmatmul.bf16.gmra.mxu0 %v895
        %v1600 = vpop.f32.mrf.mxu0
        %v1601 = vadd.f32 %v1432, %v1600
        %v1602 = vpop.f32.mrf.mxu0
        %v1603 = vadd.f32 %v1434, %v1602
        %1604 = vmatmul.bf16.gmra.mxu0 %v898
        %v1605 = vpop.f32.mrf.mxu0
        %v1606 = vadd.f32 %v1437, %v1605
        %v1607 = vpop.f32.mrf.mxu0
        %v1608 = vadd.f32 %v1439, %v1607
        %1609 = vmatmul.bf16.gmra.mxu0 %v901
        %v1610 = vpop.f32.mrf.mxu0
        %v1611 = vadd.f32 %v1442, %v1610
        %v1612 = vpop.f32.mrf.mxu0
        %v1613 = vadd.f32 %v1444, %v1612
        %1614 = vmatmul.bf16.gmra.mxu0 %v904
        %v1615 = vpop.f32.mrf.mxu0
        %v1616 = vadd.f32 %v1447, %v1615
        %v1617 = vpop.f32.mrf.mxu0
        %v1618 = vadd.f32 %v1449, %v1617
        %1619 = vmatmul.bf16.gmra.mxu0 %v907
        %v1620 = vpop.f32.mrf.mxu0
        %v1621 = vadd.f32 %v1452, %v1620
        %v1622 = vpop.f32.mrf.mxu0
        %v1623 = vadd.f32 %v1454, %v1622
        %1624 = vmatmul.bf16.gmra.mxu0 %v910
        %v1625 = vpop.f32.mrf.mxu0
        %v1626 = vadd.f32 %v1457, %v1625
        %v1627 = vpop.f32.mrf.mxu0
        %v1628 = vadd.f32 %v1459, %v1627
        %1629 = vmatmul.bf16.gmra.mxu0 %v913
        %v1630 = vpop.f32.mrf.mxu0
        %v1631 = vadd.f32 %v1462, %v1630
        %v1632 = vpop.f32.mrf.mxu0
        %v1633 = vadd.f32 %v1464, %v1632
        %1634 = vmatmul.bf16.gmra.mxu0 %v916
        %v1635 = vpop.f32.mrf.mxu0
        %v1636 = vadd.f32 %v1467, %v1635
        %v1637 = vpop.f32.mrf.mxu0
        %v1638 = vadd.f32 %v1469, %v1637
        %1639 = vmatmul.bf16.gmra.mxu0 %v919
        %v1640 = vpop.f32.mrf.mxu0
        %v1641 = vadd.f32 %v1472, %v1640
        %v1642 = vpop.f32.mrf.mxu0
        %v1643 = vadd.f32 %v1474, %v1642
        %1644 = vmatmul.bf16.gmra.mxu0 %v922
        %v1645 = vpop.f32.mrf.mxu0
        %v1646 = vadd.f32 %v1477, %v1645
        %v1647 = vpop.f32.mrf.mxu0
        %v1648 = vadd.f32 %v1479, %v1647
        %1649 = vmatmul.bf16.gmra.mxu0 %v925
        %v1650 = vpop.f32.mrf.mxu0
        %v1651 = vadd.f32 %v1482, %v1650
        %v1652 = vpop.f32.mrf.mxu0
        %v1653 = vadd.f32 %v1484, %v1652
        %1654 = vmatmul.bf16.gmra.mxu0 %v928
        %v1655 = vpop.f32.mrf.mxu0
        %v1656 = vadd.f32 %v1487, %v1655
        %v1657 = vpop.f32.mrf.mxu0
        %v1658 = vadd.f32 %v1489, %v1657
        %1659 = vmatmul.bf16.gmra.mxu0 %v931
        %v1660 = vpop.f32.mrf.mxu0
        %v1661 = vadd.f32 %v1492, %v1660
        %v1662 = vpop.f32.mrf.mxu0
        %v1663 = vadd.f32 %v1494, %v1662
        %1664 = vmatmul.bf16.gmra.mxu0 %v934
        %v1665 = vpop.f32.mrf.mxu0
        %v1666 = vadd.f32 %v1497, %v1665
        %v1667 = vpop.f32.mrf.mxu0
        %v1668 = vadd.f32 %v1499, %v1667
        %1669 = vmatmul.bf16.gmra.mxu0 %v937
        %v1670 = vpop.f32.mrf.mxu0
        %v1671 = vadd.f32 %v1502, %v1670
        %v1672 = vpop.f32.mrf.mxu0
        %v1673 = vadd.f32 %v1504, %v1672
        %1674 = vmatmul.bf16.gmra.mxu0 %v940
        %v1675 = vpop.f32.mrf.mxu0
        %v1676 = vadd.f32 %v1507, %v1675
        %v1677 = vpop.f32.mrf.mxu0
        %v1678 = vadd.f32 %v1509, %v1677
        %1679 = vmatmul.bf16.gmra.mxu0 %v943
        %v1680 = vpop.f32.mrf.mxu0
        %v1681 = vadd.f32 %v1512, %v1680
        %v1682 = vpop.f32.mrf.mxu0
        %v1683 = vadd.f32 %v1514, %v1682
        %1684 = vmatmul.bf16.gmra.mxu0 %v946
        %v1685 = vpop.f32.mrf.mxu0
        %v1686 = vadd.f32 %v1517, %v1685
        %v1687 = vpop.f32.mrf.mxu0
        %v1688 = vadd.f32 %v1519, %v1687
        %1689 = vmatmul.bf16.gmra.mxu0 %v949
        %v1690 = vpop.f32.mrf.mxu0
        %v1691 = vadd.f32 %v1522, %v1690
        %v1692 = vpop.f32.mrf.mxu0
        %v1693 = vadd.f32 %v1524, %v1692
        %1694 = vmatmul.bf16.gmra.mxu0 %v952
        %v1695 = vpop.f32.mrf.mxu0
        %v1696 = vadd.f32 %v1527, %v1695
        %v1697 = vpop.f32.mrf.mxu0
        %v1698 = vadd.f32 %v1529, %v1697
        %1699 = vmatmul.bf16.gmra.mxu0 %v955
        %v1700 = vpop.f32.mrf.mxu0
        %v1701 = vadd.f32 %v1532, %v1700
        %v1702 = vpop.f32.mrf.mxu0
        %v1703 = vadd.f32 %v1534, %v1702
        %1704 = vmatmul.bf16.gmra.mxu0 %v958
        %v1705 = vpop.f32.mrf.mxu0
        %v1706 = vadd.f32 %v1537, %v1705
        %v1707 = vpop.f32.mrf.mxu0
        %v1708 = vadd.f32 %v1539, %v1707
        %1709 = vmatmul.bf16.gmra.mxu0 %v961
        %v1710 = vpop.f32.mrf.mxu0
        %v1711 = vadd.f32 %v1542, %v1710
        %v1712 = vpop.f32.mrf.mxu0
        %v1713 = vadd.f32 %v1544, %v1712
        %1714 = vmatmul.bf16.gmra.mxu0 %v964
        %v1715 = vpop.f32.mrf.mxu0
        %v1716 = vpop.f32.mrf.mxu0
        %1717 = vmatmul.bf16.gmra.mxu0 %v967
        %v1718 = vpop.f32.mrf.mxu0
        %v1719 = vpop.f32.mrf.mxu0
        %1720 = vmatmul.bf16.gmra.mxu0 %v970
        %v1721 = vpop.f32.mrf.mxu0
        %v1722 = vpop.f32.mrf.mxu0
        %1723 = vmatmul.bf16.gmra.mxu0 %v973
        %v1724 = vpop.f32.mrf.mxu0
        %v1725 = vpop.f32.mrf.mxu0
        %1726 = vmatmul.bf16.gmra.mxu0 %v976
        %v1727 = vpop.f32.mrf.mxu0
        %v1728 = vpop.f32.mrf.mxu0
        %1729 = vdwg.mxu0
        %vm1730 = vcmp.ge.f32.partialorder %v1571, 0.0
        %vm1731 = vcmp.ge.f32.partialorder %v1573, 0.0
        %vm1732 = vcmp.ge.f32.partialorder %v1576, 0.0
        %vm1733 = vcmp.ge.f32.partialorder %v1578, 0.0
        %vm1734 = vcmp.ge.f32.partialorder %v1581, 0.0
        %vm1735 = vcmp.ge.f32.partialorder %v1583, 0.0
        %vm1736 = vcmp.ge.f32.partialorder %v1586, 0.0
        %vm1737 = vcmp.ge.f32.partialorder %v1588, 0.0
        %vm1738 = vcmp.ge.f32.partialorder %v1591, 0.0
        %vm1739 = vcmp.ge.f32.partialorder %v1593, 0.0
        %vm1740 = vcmp.ge.f32.partialorder %v1596, 0.0
        %vm1741 = vcmp.ge.f32.partialorder %v1598, 0.0
        %vm1742 = vcmp.ge.f32.partialorder %v1601, 0.0
        %vm1743 = vcmp.ge.f32.partialorder %v1603, 0.0
        %vm1744 = vcmp.ge.f32.partialorder %v1606, 0.0
        %vm1745 = vcmp.ge.f32.partialorder %v1608, 0.0
        %vm1746 = vcmp.ge.f32.partialorder %v1611, 0.0
        %vm1747 = vcmp.ge.f32.partialorder %v1613, 0.0
        %vm1748 = vcmp.ge.f32.partialorder %v1616, 0.0
        %vm1749 = vcmp.ge.f32.partialorder %v1618, 0.0
        %vm1750 = vcmp.ge.f32.partialorder %v1621, 0.0
        %vm1751 = vcmp.ge.f32.partialorder %v1623, 0.0
        %vm1752 = vcmp.ge.f32.partialorder %v1626, 0.0
        %vm1753 = vcmp.ge.f32.partialorder %v1628, 0.0
        %vm1754 = vcmp.ge.f32.partialorder %v1631, 0.0
        %vm1755 = vcmp.ge.f32.partialorder %v1633, 0.0
        %vm1756 = vcmp.ge.f32.partialorder %v1636, 0.0
        %vm1757 = vcmp.ge.f32.partialorder %v1638, 0.0
        %vm1758 = vcmp.ge.f32.partialorder %v1641, 0.0
        %vm1759 = vcmp.ge.f32.partialorder %v1643, 0.0
        %vm1760 = vcmp.ge.f32.partialorder %v1646, 0.0
        %vm1761 = vcmp.ge.f32.partialorder %v1648, 0.0
        %vm1762 = vcmp.ge.f32.partialorder %v1651, 0.0
        %vm1763 = vcmp.ge.f32.partialorder %v1653, 0.0
        %vm1764 = vcmp.ge.f32.partialorder %v1656, 0.0
        %vm1765 = vcmp.ge.f32.partialorder %v1658, 0.0
        %vm1766 = vcmp.ge.f32.partialorder %v1661, 0.0
        %vm1767 = vcmp.ge.f32.partialorder %v1663, 0.0
        %vm1768 = vcmp.ge.f32.partialorder %v1666, 0.0
        %vm1769 = vcmp.ge.f32.partialorder %v1668, 0.0
        %vm1770 = vcmp.ge.f32.partialorder %v1671, 0.0
        %vm1771 = vcmp.ge.f32.partialorder %v1673, 0.0
        %vm1772 = vcmp.ge.f32.partialorder %v1676, 0.0
        %vm1773 = vcmp.ge.f32.partialorder %v1678, 0.0
        %vm1774 = vcmp.ge.f32.partialorder %v1681, 0.0
        %vm1775 = vcmp.ge.f32.partialorder %v1683, 0.0
        %vm1776 = vcmp.ge.f32.partialorder %v1686, 0.0
        %vm1777 = vcmp.ge.f32.partialorder %v1688, 0.0
        %vm1778 = vcmp.ge.f32.partialorder %v1691, 0.0
        %vm1779 = vcmp.ge.f32.partialorder %v1693, 0.0
        %vm1780 = vcmp.ge.f32.partialorder %v1696, 0.0
        %vm1781 = vcmp.ge.f32.partialorder %v1698, 0.0
        %vm1782 = vcmp.ge.f32.partialorder %v1701, 0.0
        %vm1783 = vcmp.ge.f32.partialorder %v1703, 0.0
        %vm1784 = vcmp.ge.f32.partialorder %v1706, 0.0
        %vm1785 = vcmp.ge.f32.partialorder %v1708, 0.0
        %vm1786 = vcmp.ge.f32.partialorder %v1711, 0.0
        %vm1787 = vcmp.ge.f32.partialorder %v1713, 0.0
        %v1788 = vmul.f32 %v1571, 0.01
        %v1789 = vmul.f32 %v1573, 0.01
        %v1790 = vmul.f32 %v1576, 0.01
        %v1791 = vmul.f32 %v1578, 0.01
        %v1792 = vmul.f32 %v1581, 0.01
        %v1793 = vmul.f32 %v1583, 0.01
        %v1794 = vmul.f32 %v1586, 0.01
        %v1795 = vmul.f32 %v1588, 0.01
        %v1796 = vmul.f32 %v1591, 0.01
        %v1797 = vmul.f32 %v1593, 0.01
        %v1798 = vmul.f32 %v1596, 0.01
        %v1799 = vmul.f32 %v1598, 0.01
        %v1800 = vmul.f32 %v1601, 0.01
        %v1801 = vmul.f32 %v1603, 0.01
        %v1802 = vmul.f32 %v1606, 0.01
        %v1803 = vmul.f32 %v1608, 0.01
        %v1804 = vmul.f32 %v1611, 0.01
        %v1805 = vmul.f32 %v1613, 0.01
        %v1806 = vmul.f32 %v1616, 0.01
        %v1807 = vmul.f32 %v1618, 0.01
        %v1808 = vmul.f32 %v1621, 0.01
        %v1809 = vmul.f32 %v1623, 0.01
        %v1810 = vmul.f32 %v1626, 0.01
        %v1811 = vmul.f32 %v1628, 0.01
        %v1812 = vmul.f32 %v1631, 0.01
        %v1813 = vmul.f32 %v1633, 0.01
        %v1814 = vmul.f32 %v1636, 0.01
        %v1815 = vmul.f32 %v1638, 0.01
        %v1816 = vmul.f32 %v1641, 0.01
        %v1817 = vmul.f32 %v1643, 0.01
        %v1818 = vmul.f32 %v1646, 0.01
        %v1819 = vmul.f32 %v1648, 0.01
        %v1820 = vmul.f32 %v1651, 0.01
        %v1821 = vmul.f32 %v1653, 0.01
        %v1822 = vmul.f32 %v1656, 0.01
        %v1823 = vmul.f32 %v1658, 0.01
        %v1824 = vmul.f32 %v1661, 0.01
        %v1825 = vmul.f32 %v1663, 0.01
        %v1826 = vmul.f32 %v1666, 0.01
        %v1827 = vmul.f32 %v1668, 0.01
        %v1828 = vmul.f32 %v1671, 0.01
        %v1829 = vmul.f32 %v1673, 0.01
        %v1830 = vmul.f32 %v1676, 0.01
        %v1831 = vmul.f32 %v1678, 0.01
        %v1832 = vmul.f32 %v1681, 0.01
        %v1833 = vmul.f32 %v1683, 0.01
        %v1834 = vmul.f32 %v1686, 0.01
        %v1835 = vmul.f32 %v1688, 0.01
        %v1836 = vmul.f32 %v1691, 0.01
        %v1837 = vmul.f32 %v1693, 0.01
        %v1838 = vmul.f32 %v1696, 0.01
        %v1839 = vmul.f32 %v1698, 0.01
        %v1840 = vmul.f32 %v1701, 0.01
        %v1841 = vmul.f32 %v1703, 0.01
        %v1842 = vmul.f32 %v1706, 0.01
        %v1843 = vmul.f32 %v1708, 0.01
        %v1844 = vmul.f32 %v1711, 0.01
        %v1845 = vmul.f32 %v1713, 0.01
        %v1846 = vsel %vm1730, %v1571, %v1788
        %v1847 = vsel %vm1731, %v1573, %v1789
        %v1848 = vsel %vm1732, %v1576, %v1790
        %v1849 = vsel %vm1733, %v1578, %v1791
        %v1850 = vsel %vm1734, %v1581, %v1792
        %v1851 = vsel %vm1735, %v1583, %v1793
        %v1852 = vsel %vm1736, %v1586, %v1794
        %v1853 = vsel %vm1737, %v1588, %v1795
        %v1854 = vsel %vm1738, %v1591, %v1796
        %v1855 = vsel %vm1739, %v1593, %v1797
        %v1856 = vsel %vm1740, %v1596, %v1798
        %v1857 = vsel %vm1741, %v1598, %v1799
        %v1858 = vsel %vm1742, %v1601, %v1800
        %v1859 = vsel %vm1743, %v1603, %v1801
        %v1860 = vsel %vm1744, %v1606, %v1802
        %v1861 = vsel %vm1745, %v1608, %v1803
        %v1862 = vsel %vm1746, %v1611, %v1804
        %v1863 = vsel %vm1747, %v1613, %v1805
        %v1864 = vsel %vm1748, %v1616, %v1806
        %v1865 = vsel %vm1749, %v1618, %v1807
        %v1866 = vsel %vm1750, %v1621, %v1808
        %v1867 = vsel %vm1751, %v1623, %v1809
        %v1868 = vsel %vm1752, %v1626, %v1810
        %v1869 = vsel %vm1753, %v1628, %v1811
        %v1870 = vsel %vm1754, %v1631, %v1812
        %v1871 = vsel %vm1755, %v1633, %v1813
        %v1872 = vsel %vm1756, %v1636, %v1814
        %v1873 = vsel %vm1757, %v1638, %v1815
        %v1874 = vsel %vm1758, %v1641, %v1816
        %v1875 = vsel %vm1759, %v1643, %v1817
        %v1876 = vsel %vm1760, %v1646, %v1818
        %v1877 = vsel %vm1761, %v1648, %v1819
        %v1878 = vsel %vm1762, %v1651, %v1820
        %v1879 = vsel %vm1763, %v1653, %v1821
        %v1880 = vsel %vm1764, %v1656, %v1822
        %v1881 = vsel %vm1765, %v1658, %v1823
        %v1882 = vsel %vm1766, %v1661, %v1824
        %v1883 = vsel %vm1767, %v1663, %v1825
        %v1884 = vsel %vm1768, %v1666, %v1826
        %v1885 = vsel %vm1769, %v1668, %v1827
        %v1886 = vsel %vm1770, %v1671, %v1828
        %v1887 = vsel %vm1771, %v1673, %v1829
        %v1888 = vsel %vm1772, %v1676, %v1830
        %v1889 = vsel %vm1773, %v1678, %v1831
        %v1890 = vsel %vm1774, %v1681, %v1832
        %v1891 = vsel %vm1775, %v1683, %v1833
        %v1892 = vsel %vm1776, %v1686, %v1834
        %v1893 = vsel %vm1777, %v1688, %v1835
        %v1894 = vsel %vm1778, %v1691, %v1836
        %v1895 = vsel %vm1779, %v1693, %v1837
        %v1896 = vsel %vm1780, %v1696, %v1838
        %v1897 = vsel %vm1781, %v1698, %v1839
        %v1898 = vsel %vm1782, %v1701, %v1840
        %v1899 = vsel %vm1783, %v1703, %v1841
        %v1900 = vsel %vm1784, %v1706, %v1842
        %v1901 = vsel %vm1785, %v1708, %v1843
        %v1902 = vsel %vm1786, %v1711, %v1844
        %v1903 = vsel %vm1787, %v1713, %v1845
        %v1904 = vld [vmem:[%s8] sm:$0xff]
        %v1905 = vld [vmem:[%s8 + $0x8] sm:$0xff]
        %v1906 = vld [vmem:[%s8 + $0x10] sm:$0x3f]
        %v1907 = vld [vmem:[%s9] sm:$0xff]
        %vm1912 = vcmask 1040384
        %v1913 = vrot.slane %v1848, 7
        %v1914 = vrot.slane %v1849, 7
        %v1915 = vsel %vm1912, %v1913, %v1914
        %v1916 = vrot.slane %v1850, 7
        %v1917 = vsel %vm1912, %v1914, %v1916
        %v1918 = vrot.slane %v1851, 7
        %v1919 = vsel %vm1912, %v1916, %v1918
        %v1923 = vmax.f32 %v1846, %v1915
        %v1924 = vmax.f32 %v1847, %v1917
        %v1925 = vmax.f32 %v1848, %v1919
        %vm1926 = vcmask 187392
        %v1928 = vsel %vm1926, %v1904, 0
        %v1931 = vsel %vm1926, %v1905, 0
        %v1934 = vsel %vm1926, %v1906, 0
        %vm1936 = vcmask 1046528
        %v1938 = vsel %vm1936, %v1925, 0
        %1940 = vmatpush.msra.mxu0 0.0
        %1941 = vmatpush.msra.mxu0 0.0
        %1942 = vmatpush.msra.mxu0 0.0
        %1943 = vmatpush.msra.mxu0 0.0
        %1944 = vmatpush.msra.mxu0 0.0
        %1945 = vmatpush.msra.mxu0 0.0
        %1946 = vmatpush.msra.mxu0 0.0
        %1947 = vmatpush.msra.mxu0 0.0
        %1948 = vmatpush.msra.mxu0 0.0
        %1949 = vmatpush.msra.mxu0 0.0
        %1950 = vmatpush.msra.mxu0 0.0
        %1951 = vmatpush.msra.mxu0 0.0
        %1952 = vmatpush.msra.mxu0 0.0
        %1953 = vmatpush.msra.mxu0 %v1938
        %1954 = vmatpush.msra.mxu0 %v1924
        %1955 = vmatpush.msra.mxu0 %v1923
        %1956 = vmatmul.f32.gmra.mxu0 %v1928
        %v1957 = vpop.f32.mrf.mxu0
        %v1958 = vadd.f32 0.0, %v1957
        %1959 = vmatmul.f32.gmra.mxu0 %v1931
        %v1960 = vpop.f32.mrf.mxu0
        %v1961 = vadd.f32 0.0, %v1960
        %1962 = vmatmul.f32.gmra.mxu0 %v1934
        %v1963 = vpop.f32.mrf.mxu0
        %v1964 = vadd.f32 0.0, %v1963
        %1965 = vdwg.mxu0
        %vm1968 = vcmask 1044480
        %v1969 = vrot.slane %v1961, 3
        %v1970 = vrot.slane %v1964, 3
        %v1971 = vsel %vm1968, %v1969, %v1970
        %v1974 = vmax.f32 %v1958, %v1971
        %v1975 = vmax.f32 %v1961, %v1970
        %v1980 = vrot.slane %v1854, 7
        %v1981 = vrot.slane %v1855, 7
        %v1982 = vsel %vm1912, %v1980, %v1981
        %v1983 = vrot.slane %v1856, 7
        %v1984 = vsel %vm1912, %v1981, %v1983
        %v1985 = vrot.slane %v1857, 7
        %v1986 = vsel %vm1912, %v1983, %v1985
        %v1991 = vmax.f32 %v1851, %v1980
        %v1992 = vmax.f32 %v1852, %v1982
        %v1993 = vmax.f32 %v1853, %v1984
        %v1994 = vmax.f32 %v1854, %v1986
        %vm1999 = vcmask 1041408
        %v2000 = vrot.slane %v1991, 6
        %v2001 = vrot.slane %v1992, 6
        %v2002 = vsel %vm1999, %v2000, %v2001
        %v2003 = vrot.slane %v1993, 6
        %v2004 = vsel %vm1999, %v2001, %v2003
        %v2005 = vrot.slane %v1994, 6
        %v2006 = vsel %vm1999, %v2003, %v2005
        %v2009 = vsel %vm1936, %v2006, 0
        %2011 = vmatpush.msra.mxu0 0.0
        %2012 = vmatpush.msra.mxu0 0.0
        %2013 = vmatpush.msra.mxu0 0.0
        %2014 = vmatpush.msra.mxu0 0.0
        %2015 = vmatpush.msra.mxu0 0.0
        %2016 = vmatpush.msra.mxu0 0.0
        %2017 = vmatpush.msra.mxu0 0.0
        %2018 = vmatpush.msra.mxu0 0.0
        %2019 = vmatpush.msra.mxu0 0.0
        %2020 = vmatpush.msra.mxu0 0.0
        %2021 = vmatpush.msra.mxu0 0.0
        %2022 = vmatpush.msra.mxu0 0.0
        %2023 = vmatpush.msra.mxu0 0.0
        %2024 = vmatpush.msra.mxu0 %v2009
        %2025 = vmatpush.msra.mxu0 %v2004
        %2026 = vmatpush.msra.mxu0 %v2002
        %2027 = vmatmul.f32.gmra.mxu0 %v1928
        %v2028 = vpop.f32.mrf.mxu0
        %v2029 = vadd.f32 0.0, %v2028
        %2030 = vmatmul.f32.gmra.mxu0 %v1931
        %v2031 = vpop.f32.mrf.mxu0
        %v2032 = vadd.f32 0.0, %v2031
        %2033 = vmatmul.f32.gmra.mxu0 %v1934
        %v2034 = vpop.f32.mrf.mxu0
        %v2035 = vadd.f32 0.0, %v2034
        %2036 = vdwg.mxu0
        %v2039 = vrot.slane %v2032, 3
        %v2040 = vrot.slane %v2035, 3
        %v2041 = vsel %vm1968, %v2039, %v2040
        %v2044 = vmax.f32 %v2029, %v2041
        %v2045 = vmax.f32 %v2032, %v2040
        %v2050 = vrot.slane %v1860, 7
        %v2051 = vrot.slane %v1861, 7
        %v2052 = vsel %vm1912, %v2050, %v2051
        %v2053 = vrot.slane %v1862, 7
        %v2054 = vsel %vm1912, %v2051, %v2053
        %v2055 = vrot.slane %v1863, 7
        %v2056 = vsel %vm1912, %v2053, %v2055
        %v2061 = vmax.f32 %v1857, %v2050
        %v2062 = vmax.f32 %v1858, %v2052
        %v2063 = vmax.f32 %v1859, %v2054
        %v2064 = vmax.f32 %v1860, %v2056
        %vm2069 = vcmask 1043456
        %v2070 = vrot.slane %v2061, 4
        %v2071 = vrot.slane %v2062, 4
        %v2072 = vsel %vm2069, %v2070, %v2071
        %v2073 = vrot.slane %v2063, 4
        %v2074 = vsel %vm2069, %v2071, %v2073
        %v2075 = vrot.slane %v2064, 4
        %v2076 = vsel %vm2069, %v2073, %v2075
        %v2079 = vsel %vm1936, %v2076, 0
        %2081 = vmatpush.msra.mxu0 0.0
        %2082 = vmatpush.msra.mxu0 0.0
        %2083 = vmatpush.msra.mxu0 0.0
        %2084 = vmatpush.msra.mxu0 0.0
        %2085 = vmatpush.msra.mxu0 0.0
        %2086 = vmatpush.msra.mxu0 0.0
        %2087 = vmatpush.msra.mxu0 0.0
        %2088 = vmatpush.msra.mxu0 0.0
        %2089 = vmatpush.msra.mxu0 0.0
        %2090 = vmatpush.msra.mxu0 0.0
        %2091 = vmatpush.msra.mxu0 0.0
        %2092 = vmatpush.msra.mxu0 0.0
        %2093 = vmatpush.msra.mxu0 0.0
        %2094 = vmatpush.msra.mxu0 %v2079
        %2095 = vmatpush.msra.mxu0 %v2074
        %2096 = vmatpush.msra.mxu0 %v2072
        %2097 = vmatmul.f32.gmra.mxu0 %v1928
        %v2098 = vpop.f32.mrf.mxu0
        %v2099 = vadd.f32 0.0, %v2098
        %2100 = vmatmul.f32.gmra.mxu0 %v1931
        %v2101 = vpop.f32.mrf.mxu0
        %v2102 = vadd.f32 0.0, %v2101
        %2103 = vmatmul.f32.gmra.mxu0 %v1934
        %v2104 = vpop.f32.mrf.mxu0
        %v2105 = vadd.f32 0.0, %v2104
        %2106 = vdwg.mxu0
        %v2109 = vrot.slane %v2102, 3
        %v2110 = vrot.slane %v2105, 3
        %v2111 = vsel %vm1968, %v2109, %v2110
        %v2114 = vmax.f32 %v2099, %v2111
        %v2115 = vmax.f32 %v2102, %v2110
        %v2119 = vrot.slane %v1866, 7
        %v2120 = vrot.slane %v1867, 7
        %v2121 = vsel %vm1912, %v2119, %v2120
        %v2122 = vrot.slane %v1868, 7
        %v2123 = vsel %vm1912, %v2120, %v2122
        %v2128 = vmax.f32 %v1863, %v2119
        %v2129 = vmax.f32 %v1864, %v2121
        %v2130 = vmax.f32 %v1865, %v2123
        %v2131 = vmax.f32 %v1866, %v2122
        %vm2136 = vcmask 1045504
        %v2137 = vrot.slane %v2128, 2
        %v2138 = vrot.slane %v2129, 2
        %v2139 = vsel %vm2136, %v2137, %v2138
        %v2140 = vrot.slane %v2130, 2
        %v2141 = vsel %vm2136, %v2138, %v2140
        %v2142 = vrot.slane %v2131, 2
        %v2143 = vsel %vm2136, %v2140, %v2142
        %v2146 = vsel %vm1936, %v2143, 0
        %2148 = vmatpush.msra.mxu0 0.0
        %2149 = vmatpush.msra.mxu0 0.0
        %2150 = vmatpush.msra.mxu0 0.0
        %2151 = vmatpush.msra.mxu0 0.0
        %2152 = vmatpush.msra.mxu0 0.0
        %2153 = vmatpush.msra.mxu0 0.0
        %2154 = vmatpush.msra.mxu0 0.0
        %2155 = vmatpush.msra.mxu0 0.0
        %2156 = vmatpush.msra.mxu0 0.0
        %2157 = vmatpush.msra.mxu0 0.0
        %2158 = vmatpush.msra.mxu0 0.0
        %2159 = vmatpush.msra.mxu0 0.0
        %2160 = vmatpush.msra.mxu0 0.0
        %2161 = vmatpush.msra.mxu0 %v2146
        %2162 = vmatpush.msra.mxu0 %v2141
        %2163 = vmatpush.msra.mxu0 %v2139
        %2164 = vmatmul.f32.gmra.mxu0 %v1928
        %v2165 = vpop.f32.mrf.mxu0
        %v2166 = vadd.f32 0.0, %v2165
        %2167 = vmatmul.f32.gmra.mxu0 %v1931
        %v2168 = vpop.f32.mrf.mxu0
        %v2169 = vadd.f32 0.0, %v2168
        %2170 = vmatmul.f32.gmra.mxu0 %v1934
        %v2171 = vpop.f32.mrf.mxu0
        %v2172 = vadd.f32 0.0, %v2171
        %2173 = vdwg.mxu0
        %v2176 = vrot.slane %v2169, 3
        %v2177 = vrot.slane %v2172, 3
        %v2178 = vsel %vm1968, %v2176, %v2177
        %v2181 = vmax.f32 %v2166, %v2178
        %v2182 = vmax.f32 %v2169, %v2177
        %v2187 = vrot.slane %v1871, 7
        %v2188 = vrot.slane %v1872, 7
        %v2189 = vsel %vm1912, %v2187, %v2188
        %v2190 = vrot.slane %v1873, 7
        %v2191 = vsel %vm1912, %v2188, %v2190
        %v2192 = vrot.slane %v1874, 7
        %v2193 = vsel %vm1912, %v2190, %v2192
        %v2197 = vmax.f32 %v1869, %v2189
        %v2198 = vmax.f32 %v1870, %v2191
        %v2199 = vmax.f32 %v1871, %v2193
        %v2201 = vsel %vm1936, %v2199, 0
        %2203 = vmatpush.msra.mxu0 0.0
        %2204 = vmatpush.msra.mxu0 0.0
        %2205 = vmatpush.msra.mxu0 0.0
        %2206 = vmatpush.msra.mxu0 0.0
        %2207 = vmatpush.msra.mxu0 0.0
        %2208 = vmatpush.msra.mxu0 0.0
        %2209 = vmatpush.msra.mxu0 0.0
        %2210 = vmatpush.msra.mxu0 0.0
        %2211 = vmatpush.msra.mxu0 0.0
        %2212 = vmatpush.msra.mxu0 0.0
        %2213 = vmatpush.msra.mxu0 0.0
        %2214 = vmatpush.msra.mxu0 0.0
        %2215 = vmatpush.msra.mxu0 0.0
        %2216 = vmatpush.msra.mxu0 %v2201
        %2217 = vmatpush.msra.mxu0 %v2198
        %2218 = vmatpush.msra.mxu0 %v2197
        %2219 = vmatmul.f32.gmra.mxu0 %v1928
        %v2220 = vpop.f32.mrf.mxu0
        %v2221 = vadd.f32 0.0, %v2220
        %2222 = vmatmul.f32.gmra.mxu0 %v1931
        %v2223 = vpop.f32.mrf.mxu0
        %v2224 = vadd.f32 0.0, %v2223
        %2225 = vmatmul.f32.gmra.mxu0 %v1934
        %v2226 = vpop.f32.mrf.mxu0
        %v2227 = vadd.f32 0.0, %v2226
        %2228 = vdwg.mxu0
        %v2231 = vrot.slane %v2224, 3
        %v2232 = vrot.slane %v2227, 3
        %v2233 = vsel %vm1968, %v2231, %v2232
        %v2236 = vmax.f32 %v2221, %v2233
        %v2237 = vmax.f32 %v2224, %v2232
        %v2242 = vrot.slane %v1877, 7
        %v2243 = vrot.slane %v1878, 7
        %v2244 = vsel %vm1912, %v2242, %v2243
        %v2245 = vrot.slane %v1879, 7
        %v2246 = vsel %vm1912, %v2243, %v2245
        %v2247 = vrot.slane %v1880, 7
        %v2248 = vsel %vm1912, %v2245, %v2247
        %v2253 = vmax.f32 %v1874, %v2242
        %v2254 = vmax.f32 %v1875, %v2244
        %v2255 = vmax.f32 %v1876, %v2246
        %v2256 = vmax.f32 %v1877, %v2248
        %v2261 = vrot.slane %v2253, 6
        %v2262 = vrot.slane %v2254, 6
        %v2263 = vsel %vm1999, %v2261, %v2262
        %v2264 = vrot.slane %v2255, 6
        %v2265 = vsel %vm1999, %v2262, %v2264
        %v2266 = vrot.slane %v2256, 6
        %v2267 = vsel %vm1999, %v2264, %v2266
        %v2270 = vsel %vm1936, %v2267, 0
        %2272 = vmatpush.msra.mxu0 0.0
        %2273 = vmatpush.msra.mxu0 0.0
        %2274 = vmatpush.msra.mxu0 0.0
        %2275 = vmatpush.msra.mxu0 0.0
        %2276 = vmatpush.msra.mxu0 0.0
        %2277 = vmatpush.msra.mxu0 0.0
        %2278 = vmatpush.msra.mxu0 0.0
        %2279 = vmatpush.msra.mxu0 0.0
        %2280 = vmatpush.msra.mxu0 0.0
        %2281 = vmatpush.msra.mxu0 0.0
        %2282 = vmatpush.msra.mxu0 0.0
        %2283 = vmatpush.msra.mxu0 0.0
        %2284 = vmatpush.msra.mxu0 0.0
        %2285 = vmatpush.msra.mxu0 %v2270
        %2286 = vmatpush.msra.mxu0 %v2265
        %2287 = vmatpush.msra.mxu0 %v2263
        %2288 = vmatmul.f32.gmra.mxu0 %v1928
        %v2289 = vpop.f32.mrf.mxu0
        %v2290 = vadd.f32 0.0, %v2289
        %2291 = vmatmul.f32.gmra.mxu0 %v1931
        %v2292 = vpop.f32.mrf.mxu0
        %v2293 = vadd.f32 0.0, %v2292
        %2294 = vmatmul.f32.gmra.mxu0 %v1934
        %v2295 = vpop.f32.mrf.mxu0
        %v2296 = vadd.f32 0.0, %v2295
        %2297 = vdwg.mxu0
        %v2300 = vrot.slane %v2293, 3
        %v2301 = vrot.slane %v2296, 3
        %v2302 = vsel %vm1968, %v2300, %v2301
        %v2305 = vmax.f32 %v2290, %v2302
        %v2306 = vmax.f32 %v2293, %v2301
        %v2311 = vrot.slane %v1883, 7
        %v2312 = vrot.slane %v1884, 7
        %v2313 = vsel %vm1912, %v2311, %v2312
        %v2314 = vrot.slane %v1885, 7
        %v2315 = vsel %vm1912, %v2312, %v2314
        %v2316 = vrot.slane %v1886, 7
        %v2317 = vsel %vm1912, %v2314, %v2316
        %v2322 = vmax.f32 %v1880, %v2311
        %v2323 = vmax.f32 %v1881, %v2313
        %v2324 = vmax.f32 %v1882, %v2315
        %v2325 = vmax.f32 %v1883, %v2317
        %v2330 = vrot.slane %v2322, 4
        %v2331 = vrot.slane %v2323, 4
        %v2332 = vsel %vm2069, %v2330, %v2331
        %v2333 = vrot.slane %v2324, 4
        %v2334 = vsel %vm2069, %v2331, %v2333
        %v2335 = vrot.slane %v2325, 4
        %v2336 = vsel %vm2069, %v2333, %v2335
        %v2339 = vsel %vm1936, %v2336, 0
        %2341 = vmatpush.msra.mxu0 0.0
        %2342 = vmatpush.msra.mxu0 0.0
        %2343 = vmatpush.msra.mxu0 0.0
        %2344 = vmatpush.msra.mxu0 0.0
        %2345 = vmatpush.msra.mxu0 0.0
        %2346 = vmatpush.msra.mxu0 0.0
        %2347 = vmatpush.msra.mxu0 0.0
        %2348 = vmatpush.msra.mxu0 0.0
        %2349 = vmatpush.msra.mxu0 0.0
        %2350 = vmatpush.msra.mxu0 0.0
        %2351 = vmatpush.msra.mxu0 0.0
        %2352 = vmatpush.msra.mxu0 0.0
        %2353 = vmatpush.msra.mxu0 0.0
        %2354 = vmatpush.msra.mxu0 %v2339
        %2355 = vmatpush.msra.mxu0 %v2334
        %2356 = vmatpush.msra.mxu0 %v2332
        %2357 = vmatmul.f32.gmra.mxu0 %v1928
        %v2358 = vpop.f32.mrf.mxu0
        %v2359 = vadd.f32 0.0, %v2358
        %2360 = vmatmul.f32.gmra.mxu0 %v1931
        %v2361 = vpop.f32.mrf.mxu0
        %v2362 = vadd.f32 0.0, %v2361
        %2363 = vmatmul.f32.gmra.mxu0 %v1934
        %v2364 = vpop.f32.mrf.mxu0
        %v2365 = vadd.f32 0.0, %v2364
        %2366 = vdwg.mxu0
        %v2369 = vrot.slane %v2362, 3
        %v2370 = vrot.slane %v2365, 3
        %v2371 = vsel %vm1968, %v2369, %v2370
        %v2374 = vmax.f32 %v2359, %v2371
        %v2375 = vmax.f32 %v2362, %v2370
        %v2379 = vrot.slane %v1889, 7
        %v2380 = vrot.slane %v1890, 7
        %v2381 = vsel %vm1912, %v2379, %v2380
        %v2382 = vrot.slane %v1891, 7
        %v2383 = vsel %vm1912, %v2380, %v2382
        %v2388 = vmax.f32 %v1886, %v2379
        %v2389 = vmax.f32 %v1887, %v2381
        %v2390 = vmax.f32 %v1888, %v2383
        %v2391 = vmax.f32 %v1889, %v2382
        %v2396 = vrot.slane %v2388, 2
        %v2397 = vrot.slane %v2389, 2
        %v2398 = vsel %vm2136, %v2396, %v2397
        %v2399 = vrot.slane %v2390, 2
        %v2400 = vsel %vm2136, %v2397, %v2399
        %v2401 = vrot.slane %v2391, 2
        %v2402 = vsel %vm2136, %v2399, %v2401
        %v2405 = vsel %vm1936, %v2402, 0
        %2407 = vmatpush.msra.mxu0 0.0
        %2408 = vmatpush.msra.mxu0 0.0
        %2409 = vmatpush.msra.mxu0 0.0
        %2410 = vmatpush.msra.mxu0 0.0
        %2411 = vmatpush.msra.mxu0 0.0
        %2412 = vmatpush.msra.mxu0 0.0
        %2413 = vmatpush.msra.mxu0 0.0
        %2414 = vmatpush.msra.mxu0 0.0
        %2415 = vmatpush.msra.mxu0 0.0
        %2416 = vmatpush.msra.mxu0 0.0
        %2417 = vmatpush.msra.mxu0 0.0
        %2418 = vmatpush.msra.mxu0 0.0
        %2419 = vmatpush.msra.mxu0 0.0
        %2420 = vmatpush.msra.mxu0 %v2405
        %2421 = vmatpush.msra.mxu0 %v2400
        %2422 = vmatpush.msra.mxu0 %v2398
        %2423 = vmatmul.f32.gmra.mxu0 %v1928
        %v2424 = vpop.f32.mrf.mxu0
        %v2425 = vadd.f32 0.0, %v2424
        %2426 = vmatmul.f32.gmra.mxu0 %v1931
        %v2427 = vpop.f32.mrf.mxu0
        %v2428 = vadd.f32 0.0, %v2427
        %2429 = vmatmul.f32.gmra.mxu0 %v1934
        %v2430 = vpop.f32.mrf.mxu0
        %v2431 = vadd.f32 0.0, %v2430
        %2432 = vdwg.mxu0
        %v2435 = vrot.slane %v2428, 3
        %v2436 = vrot.slane %v2431, 3
        %v2437 = vsel %vm1968, %v2435, %v2436
        %v2440 = vmax.f32 %v2425, %v2437
        %v2441 = vmax.f32 %v2428, %v2436
        %v2446 = vrot.slane %v1894, 7
        %v2447 = vrot.slane %v1895, 7
        %v2448 = vsel %vm1912, %v2446, %v2447
        %v2449 = vrot.slane %v1896, 7
        %v2450 = vsel %vm1912, %v2447, %v2449
        %v2451 = vrot.slane %v1897, 7
        %v2452 = vsel %vm1912, %v2449, %v2451
        %v2456 = vmax.f32 %v1892, %v2448
        %v2457 = vmax.f32 %v1893, %v2450
        %v2458 = vmax.f32 %v1894, %v2452
        %v2460 = vsel %vm1936, %v2458, 0
        %2462 = vmatpush.msra.mxu0 0.0
        %2463 = vmatpush.msra.mxu0 0.0
        %2464 = vmatpush.msra.mxu0 0.0
        %2465 = vmatpush.msra.mxu0 0.0
        %2466 = vmatpush.msra.mxu0 0.0
        %2467 = vmatpush.msra.mxu0 0.0
        %2468 = vmatpush.msra.mxu0 0.0
        %2469 = vmatpush.msra.mxu0 0.0
        %2470 = vmatpush.msra.mxu0 0.0
        %2471 = vmatpush.msra.mxu0 0.0
        %2472 = vmatpush.msra.mxu0 0.0
        %2473 = vmatpush.msra.mxu0 0.0
        %2474 = vmatpush.msra.mxu0 0.0
        %2475 = vmatpush.msra.mxu0 %v2460
        %2476 = vmatpush.msra.mxu0 %v2457
        %2477 = vmatpush.msra.mxu0 %v2456
        %2478 = vmatmul.f32.gmra.mxu0 %v1928
        %v2479 = vpop.f32.mrf.mxu0
        %v2480 = vadd.f32 0.0, %v2479
        %2481 = vmatmul.f32.gmra.mxu0 %v1931
        %v2482 = vpop.f32.mrf.mxu0
        %v2483 = vadd.f32 0.0, %v2482
        %2484 = vmatmul.f32.gmra.mxu0 %v1934
        %v2485 = vpop.f32.mrf.mxu0
        %v2486 = vadd.f32 0.0, %v2485
        %2487 = vdwg.mxu0
        %v2490 = vrot.slane %v2483, 3
        %v2491 = vrot.slane %v2486, 3
        %v2492 = vsel %vm1968, %v2490, %v2491
        %v2495 = vmax.f32 %v2480, %v2492
        %v2496 = vmax.f32 %v2483, %v2491
        %v2501 = vrot.slane %v1900, 7
        %v2502 = vrot.slane %v1901, 7
        %v2503 = vsel %vm1912, %v2501, %v2502
        %v2504 = vrot.slane %v1902, 7
        %v2505 = vsel %vm1912, %v2502, %v2504
        %v2506 = vrot.slane %v1903, 7
        %v2507 = vsel %vm1912, %v2504, %v2506
        %v2512 = vmax.f32 %v1897, %v2501
        %v2513 = vmax.f32 %v1898, %v2503
        %v2514 = vmax.f32 %v1899, %v2505
        %v2515 = vmax.f32 %v1900, %v2507
        %v2520 = vrot.slane %v2512, 6
        %v2521 = vrot.slane %v2513, 6
        %v2522 = vsel %vm1999, %v2520, %v2521
        %v2523 = vrot.slane %v2514, 6
        %v2524 = vsel %vm1999, %v2521, %v2523
        %v2525 = vrot.slane %v2515, 6
        %v2526 = vsel %vm1999, %v2523, %v2525
        %v2529 = vsel %vm1936, %v2526, 0
        %2531 = vmatpush.msra.mxu0 0.0
        %2532 = vmatpush.msra.mxu0 0.0
        %2533 = vmatpush.msra.mxu0 0.0
        %2534 = vmatpush.msra.mxu0 0.0
        %2535 = vmatpush.msra.mxu0 0.0
        %2536 = vmatpush.msra.mxu0 0.0
        %2537 = vmatpush.msra.mxu0 0.0
        %2538 = vmatpush.msra.mxu0 0.0
        %2539 = vmatpush.msra.mxu0 0.0
        %2540 = vmatpush.msra.mxu0 0.0
        %2541 = vmatpush.msra.mxu0 0.0
        %2542 = vmatpush.msra.mxu0 0.0
        %2543 = vmatpush.msra.mxu0 0.0
        %2544 = vmatpush.msra.mxu0 %v2529
        %2545 = vmatpush.msra.mxu0 %v2524
        %2546 = vmatpush.msra.mxu0 %v2522
        %2547 = vmatmul.f32.gmra.mxu0 %v1928
        %v2548 = vpop.f32.mrf.mxu0
        %v2549 = vadd.f32 0.0, %v2548
        %2550 = vmatmul.f32.gmra.mxu0 %v1931
        %v2551 = vpop.f32.mrf.mxu0
        %v2552 = vadd.f32 0.0, %v2551
        %2553 = vmatmul.f32.gmra.mxu0 %v1934
        %v2554 = vpop.f32.mrf.mxu0
        %v2555 = vadd.f32 0.0, %v2554
        %2556 = vdwg.mxu0
        %v2559 = vrot.slane %v2552, 3
        %v2560 = vrot.slane %v2555, 3
        %v2561 = vsel %vm1968, %v2559, %v2560
        %v2564 = vmax.f32 %v2549, %v2561
        %v2565 = vmax.f32 %v2552, %v2560
        %v2566 = vld [vmem:[%s3] sm:$0x1]
        %v2567 = vpack.c.bf16 %v1975, %v1974
        %v2568 = vld [vmem:[%s2] sm:$0xf]
        %s2569 = scalar_lea.vmem %s2, 4
        %v2570 = vld [vmem:[%s2569] sm:$0xf]
        %v2572 = vshrl.u32 %v2567, 16
        %v2574 = vshll.u32 %v2567, 16
        %v2576 = vrot.slane %v2574, 1
        %v2577 = vor.u32 %v2572, %v2576
        %vm2578 = vcmask 64512
        %v2580 = vsel %vm2578, %v2577, 0
        %v2583 = vsel %vm2069, %v2570, 0
        %2585 = vmatpush.bf16.msra.mxu0 0
        %2586 = vmatpush.bf16.msra.mxu0 0
        %2587 = vmatpush.bf16.msra.mxu0 0
        %2588 = vmatpush.bf16.msra.mxu0 0
        %2589 = vmatpush.bf16.msra.mxu0 0
        %2590 = vmatpush.bf16.msra.mxu0 0
        %2591 = vmatpush.bf16.msra.mxu0 0
        %2592 = vmatpush.bf16.msra.mxu0 %v2583
        %2593 = vmatmul.bf16.gmra.mxu0 %v2580
        %v2594 = vpop.f32.mrf.mxu0
        %v2595 = vadd.f32 0.0, %v2594
        %v2596 = vpop.f32.mrf.mxu0
        %v2597 = vadd.f32 0.0, %v2596
        %2598 = vdwg.mxu0
        %v2599 = vsel %vm2578, %v2567, 0
        %v2602 = vsel %vm2069, %v2568, 0
        %2604 = vmatpush.bf16.msra.mxu0 0
        %2605 = vmatpush.bf16.msra.mxu0 0
        %2606 = vmatpush.bf16.msra.mxu0 0
        %2607 = vmatpush.bf16.msra.mxu0 0
        %2608 = vmatpush.bf16.msra.mxu0 0
        %2609 = vmatpush.bf16.msra.mxu0 0
        %2610 = vmatpush.bf16.msra.mxu0 0
        %2611 = vmatpush.bf16.msra.mxu0 %v2602
        %2612 = vmatmul.bf16.gmra.mxu0 %v2599
        %v2613 = vpop.f32.mrf.mxu0
        %v2614 = vadd.f32 %v2595, %v2613
        %v2615 = vpop.f32.mrf.mxu0
        %v2616 = vadd.f32 %v2597, %v2615
        %2617 = vdwg.mxu0
        %s2618 = scalar_lea.vmem %s2, 8
        %v2619 = vld [vmem:[%s2618] sm:$0xf]
        %v2621 = vrot.slane %v2567, 1
        %v2623 = vsel %vm2578, %v2621, 0
        %v2626 = vsel %vm2069, %v2619, 0
        %2628 = vmatpush.bf16.msra.mxu0 0
        %2629 = vmatpush.bf16.msra.mxu0 0
        %2630 = vmatpush.bf16.msra.mxu0 0
        %2631 = vmatpush.bf16.msra.mxu0 0
        %2632 = vmatpush.bf16.msra.mxu0 0
        %2633 = vmatpush.bf16.msra.mxu0 0
        %2634 = vmatpush.bf16.msra.mxu0 0
        %2635 = vmatpush.bf16.msra.mxu0 %v2626
        %2636 = vmatmul.bf16.gmra.mxu0 %v2623
        %v2637 = vpop.f32.mrf.mxu0
        %v2638 = vadd.f32 0.0, %v2637
        %v2639 = vpop.f32.mrf.mxu0
        %v2640 = vadd.f32 0.0, %v2639
        %2641 = vdwg.mxu0
        %v2642 = vadd.f32 %v2614, %v2638
        %v2643 = vadd.f32 %v2616, %v2640
        %v2644 = vpack.c.bf16 %v2045, %v2044
        %s2645 = scalar_lea.vmem %s2, 12
        %v2646 = vld [vmem:[%s2645] sm:$0xf]
        %v2648 = vsel %vm2578, %v2644, 0
        %v2651 = vsel %vm2069, %v2646, 0
        %2653 = vmatpush.bf16.msra.mxu0 0
        %2654 = vmatpush.bf16.msra.mxu0 0
        %2655 = vmatpush.bf16.msra.mxu0 0
        %2656 = vmatpush.bf16.msra.mxu0 0
        %2657 = vmatpush.bf16.msra.mxu0 0
        %2658 = vmatpush.bf16.msra.mxu0 0
        %2659 = vmatpush.bf16.msra.mxu0 0
        %2660 = vmatpush.bf16.msra.mxu0 %v2651
        %2661 = vmatmul.bf16.gmra.mxu0 %v2648
        %v2662 = vpop.f32.mrf.mxu0
        %v2663 = vadd.f32 0.0, %v2662
        %v2664 = vpop.f32.mrf.mxu0
        %v2665 = vadd.f32 0.0, %v2664
        %2666 = vdwg.mxu0
        %v2667 = vadd.f32 %v2642, %v2663
        %v2668 = vadd.f32 %v2643, %v2665
        %s2669 = scalar_lea.vmem %s2, 16
        %v2670 = vld [vmem:[%s2669] sm:$0xf]
        %v2671 = vshrl.u32 %v2644, 16
        %v2673 = vshll.u32 %v2644, 16
        %v2675 = vrot.slane %v2673, 1
        %v2676 = vor.u32 %v2671, %v2675
        %v2678 = vsel %vm2578, %v2676, 0
        %v2681 = vsel %vm2069, %v2670, 0
        %2683 = vmatpush.bf16.msra.mxu0 0
        %2684 = vmatpush.bf16.msra.mxu0 0
        %2685 = vmatpush.bf16.msra.mxu0 0
        %2686 = vmatpush.bf16.msra.mxu0 0
        %2687 = vmatpush.bf16.msra.mxu0 0
        %2688 = vmatpush.bf16.msra.mxu0 0
        %2689 = vmatpush.bf16.msra.mxu0 0
        %2690 = vmatpush.bf16.msra.mxu0 %v2681
        %2691 = vmatmul.bf16.gmra.mxu0 %v2678
        %v2692 = vpop.f32.mrf.mxu0
        %v2693 = vadd.f32 0.0, %v2692
        %v2694 = vpop.f32.mrf.mxu0
        %v2695 = vadd.f32 0.0, %v2694
        %2696 = vdwg.mxu0
        %v2697 = vadd.f32 %v2667, %v2693
        %v2698 = vadd.f32 %v2668, %v2695
        %s2699 = scalar_lea.vmem %s2, 20
        %v2700 = vld [vmem:[%s2699] sm:$0xf]
        %v2702 = vrot.slane %v2644, 1
        %v2704 = vsel %vm2578, %v2702, 0
        %v2707 = vsel %vm2069, %v2700, 0
        %2709 = vmatpush.bf16.msra.mxu0 0
        %2710 = vmatpush.bf16.msra.mxu0 0
        %2711 = vmatpush.bf16.msra.mxu0 0
        %2712 = vmatpush.bf16.msra.mxu0 0
        %2713 = vmatpush.bf16.msra.mxu0 0
        %2714 = vmatpush.bf16.msra.mxu0 0
        %2715 = vmatpush.bf16.msra.mxu0 0
        %2716 = vmatpush.bf16.msra.mxu0 %v2707
        %2717 = vmatmul.bf16.gmra.mxu0 %v2704
        %v2718 = vpop.f32.mrf.mxu0
        %v2719 = vadd.f32 0.0, %v2718
        %v2720 = vpop.f32.mrf.mxu0
        %v2721 = vadd.f32 0.0, %v2720
        %2722 = vdwg.mxu0
        %v2723 = vadd.f32 %v2697, %v2719
        %v2724 = vadd.f32 %v2698, %v2721
        %v2725 = vpack.c.bf16 %v2115, %v2114
        %s2726 = scalar_lea.vmem %s2, 24
        %v2727 = vld [vmem:[%s2726] sm:$0xf]
        %v2729 = vsel %vm2578, %v2725, 0
        %v2732 = vsel %vm2069, %v2727, 0
        %2734 = vmatpush.bf16.msra.mxu0 0
        %2735 = vmatpush.bf16.msra.mxu0 0
        %2736 = vmatpush.bf16.msra.mxu0 0
        %2737 = vmatpush.bf16.msra.mxu0 0
        %2738 = vmatpush.bf16.msra.mxu0 0
        %2739 = vmatpush.bf16.msra.mxu0 0
        %2740 = vmatpush.bf16.msra.mxu0 0
        %2741 = vmatpush.bf16.msra.mxu0 %v2732
        %2742 = vmatmul.bf16.gmra.mxu0 %v2729
        %v2743 = vpop.f32.mrf.mxu0
        %v2744 = vadd.f32 0.0, %v2743
        %v2745 = vpop.f32.mrf.mxu0
        %v2746 = vadd.f32 0.0, %v2745
        %2747 = vdwg.mxu0
        %v2748 = vadd.f32 %v2723, %v2744
        %v2749 = vadd.f32 %v2724, %v2746
        %s2750 = scalar_lea.vmem %s2, 28
        %v2751 = vld [vmem:[%s2750] sm:$0xf]
        %v2752 = vshrl.u32 %v2725, 16
        %v2754 = vshll.u32 %v2725, 16
        %v2756 = vrot.slane %v2754, 1
        %v2757 = vor.u32 %v2752, %v2756
        %v2759 = vsel %vm2578, %v2757, 0
        %v2762 = vsel %vm2069, %v2751, 0
        %2764 = vmatpush.bf16.msra.mxu0 0
        %2765 = vmatpush.bf16.msra.mxu0 0
        %2766 = vmatpush.bf16.msra.mxu0 0
        %2767 = vmatpush.bf16.msra.mxu0 0
        %2768 = vmatpush.bf16.msra.mxu0 0
        %2769 = vmatpush.bf16.msra.mxu0 0
        %2770 = vmatpush.bf16.msra.mxu0 0
        %2771 = vmatpush.bf16.msra.mxu0 %v2762
        %2772 = vmatmul.bf16.gmra.mxu0 %v2759
        %v2773 = vpop.f32.mrf.mxu0
        %v2774 = vadd.f32 0.0, %v2773
        %v2775 = vpop.f32.mrf.mxu0
        %v2776 = vadd.f32 0.0, %v2775
        %2777 = vdwg.mxu0
        %v2778 = vadd.f32 %v2748, %v2774
        %v2779 = vadd.f32 %v2749, %v2776
        %s2780 = scalar_lea.vmem %s2, 32
        %v2781 = vld [vmem:[%s2780] sm:$0xf]
        %v2783 = vrot.slane %v2725, 1
        %v2785 = vsel %vm2578, %v2783, 0
        %v2788 = vsel %vm2069, %v2781, 0
        %2790 = vmatpush.bf16.msra.mxu0 0
        %2791 = vmatpush.bf16.msra.mxu0 0
        %2792 = vmatpush.bf16.msra.mxu0 0
        %2793 = vmatpush.bf16.msra.mxu0 0
        %2794 = vmatpush.bf16.msra.mxu0 0
        %2795 = vmatpush.bf16.msra.mxu0 0
        %2796 = vmatpush.bf16.msra.mxu0 0
        %2797 = vmatpush.bf16.msra.mxu0 %v2788
        %2798 = vmatmul.bf16.gmra.mxu0 %v2785
        %v2799 = vpop.f32.mrf.mxu0
        %v2800 = vadd.f32 0.0, %v2799
        %v2801 = vpop.f32.mrf.mxu0
        %v2802 = vadd.f32 0.0, %v2801
        %2803 = vdwg.mxu0
        %v2804 = vadd.f32 %v2778, %v2800
        %v2805 = vadd.f32 %v2779, %v2802
        %v2807 = vperm.slane %v2566, 0
        %v2809 = vadd.f32 %v2804, %v2807
        %v2810 = vadd.f32 %v2805, %v2807
        %vm2811 = vcmp.ge.f32.partialorder %v2809, 0.0
        %vm2812 = vcmp.ge.f32.partialorder %v2810, 0.0
        %v2813 = vmul.f32 %v2809, 0.01
        %v2814 = vmul.f32 %v2810, 0.01
        %v2815 = vsel %vm2811, %v2809, %v2813
        %v2816 = vsel %vm2812, %v2810, %v2814
        %vm2817 = vcmask 72704
        %v2819 = vsel %vm2817, %v1907, 0
        %v2822 = vsel %vm1912, %v2816, 0
        %2824 = vmatpush.msra.mxu0 0.0
        %2825 = vmatpush.msra.mxu0 0.0
        %2826 = vmatpush.msra.mxu0 0.0
        %2827 = vmatpush.msra.mxu0 0.0
        %2828 = vmatpush.msra.mxu0 0.0
        %2829 = vmatpush.msra.mxu0 0.0
        %2830 = vmatpush.msra.mxu0 0.0
        %2831 = vmatpush.msra.mxu0 0.0
        %2832 = vmatpush.msra.mxu0 0.0
        %2833 = vmatpush.msra.mxu0 0.0
        %2834 = vmatpush.msra.mxu0 0.0
        %2835 = vmatpush.msra.mxu0 0.0
        %2836 = vmatpush.msra.mxu0 0.0
        %2837 = vmatpush.msra.mxu0 0.0
        %2838 = vmatpush.msra.mxu0 %v2822
        %2839 = vmatpush.msra.mxu0 %v2815
        %2840 = vmatmul.f32.gmra.mxu0 %v2819
        %v2841 = vpop.f32.mrf.mxu0
        %v2842 = vadd.f32 0.0, %v2841
        %2843 = vdwg.mxu0
        %v2845 = vrot.slane %v2842, 4
        %v2847 = vmax.f32 %v2842, %v2845
        %2848 = vmatpush.bf16.msra.mxu0 0
        %2849 = vmatpush.bf16.msra.mxu0 0
        %2850 = vmatpush.bf16.msra.mxu0 0
        %2851 = vmatpush.bf16.msra.mxu0 0
        %2852 = vmatpush.bf16.msra.mxu0 0
        %2853 = vmatpush.bf16.msra.mxu0 0
        %2854 = vmatpush.bf16.msra.mxu0 0
        %2855 = vmatpush.bf16.msra.mxu0 %v2583
        %2856 = vmatmul.bf16.gmra.mxu0 %v2678
        %v2857 = vpop.f32.mrf.mxu0
        %v2858 = vadd.f32 0.0, %v2857
        %v2859 = vpop.f32.mrf.mxu0
        %v2860 = vadd.f32 0.0, %v2859
        %2861 = vdwg.mxu0
        %2862 = vmatpush.bf16.msra.mxu0 0
        %2863 = vmatpush.bf16.msra.mxu0 0
        %2864 = vmatpush.bf16.msra.mxu0 0
        %2865 = vmatpush.bf16.msra.mxu0 0
        %2866 = vmatpush.bf16.msra.mxu0 0
        %2867 = vmatpush.bf16.msra.mxu0 0
        %2868 = vmatpush.bf16.msra.mxu0 0
        %2869 = vmatpush.bf16.msra.mxu0 %v2602
        %2870 = vmatmul.bf16.gmra.mxu0 %v2648
        %v2871 = vpop.f32.mrf.mxu0
        %v2872 = vadd.f32 %v2858, %v2871
        %v2873 = vpop.f32.mrf.mxu0
        %v2874 = vadd.f32 %v2860, %v2873
        %2875 = vdwg.mxu0
        %2876 = vmatpush.bf16.msra.mxu0 0
        %2877 = vmatpush.bf16.msra.mxu0 0
        %2878 = vmatpush.bf16.msra.mxu0 0
        %2879 = vmatpush.bf16.msra.mxu0 0
        %2880 = vmatpush.bf16.msra.mxu0 0
        %2881 = vmatpush.bf16.msra.mxu0 0
        %2882 = vmatpush.bf16.msra.mxu0 0
        %2883 = vmatpush.bf16.msra.mxu0 %v2626
        %2884 = vmatmul.bf16.gmra.mxu0 %v2704
        %v2885 = vpop.f32.mrf.mxu0
        %v2886 = vadd.f32 0.0, %v2885
        %v2887 = vpop.f32.mrf.mxu0
        %v2888 = vadd.f32 0.0, %v2887
        %2889 = vdwg.mxu0
        %v2890 = vadd.f32 %v2872, %v2886
        %v2891 = vadd.f32 %v2874, %v2888
        %2892 = vmatpush.bf16.msra.mxu0 0
        %2893 = vmatpush.bf16.msra.mxu0 0
        %2894 = vmatpush.bf16.msra.mxu0 0
        %2895 = vmatpush.bf16.msra.mxu0 0
        %2896 = vmatpush.bf16.msra.mxu0 0
        %2897 = vmatpush.bf16.msra.mxu0 0
        %2898 = vmatpush.bf16.msra.mxu0 0
        %2899 = vmatpush.bf16.msra.mxu0 %v2651
        %2900 = vmatmul.bf16.gmra.mxu0 %v2729
        %v2901 = vpop.f32.mrf.mxu0
        %v2902 = vadd.f32 0.0, %v2901
        %v2903 = vpop.f32.mrf.mxu0
        %v2904 = vadd.f32 0.0, %v2903
        %2905 = vdwg.mxu0
        %v2906 = vadd.f32 %v2890, %v2902
        %v2907 = vadd.f32 %v2891, %v2904
        %2908 = vmatpush.bf16.msra.mxu0 0
        %2909 = vmatpush.bf16.msra.mxu0 0
        %2910 = vmatpush.bf16.msra.mxu0 0
        %2911 = vmatpush.bf16.msra.mxu0 0
        %2912 = vmatpush.bf16.msra.mxu0 0
        %2913 = vmatpush.bf16.msra.mxu0 0
        %2914 = vmatpush.bf16.msra.mxu0 0
        %2915 = vmatpush.bf16.msra.mxu0 %v2681
        %2916 = vmatmul.bf16.gmra.mxu0 %v2759
        %v2917 = vpop.f32.mrf.mxu0
        %v2918 = vadd.f32 0.0, %v2917
        %v2919 = vpop.f32.mrf.mxu0
        %v2920 = vadd.f32 0.0, %v2919
        %2921 = vdwg.mxu0
        %v2922 = vadd.f32 %v2906, %v2918
        %v2923 = vadd.f32 %v2907, %v2920
        %2924 = vmatpush.bf16.msra.mxu0 0
        %2925 = vmatpush.bf16.msra.mxu0 0
        %2926 = vmatpush.bf16.msra.mxu0 0
        %2927 = vmatpush.bf16.msra.mxu0 0
        %2928 = vmatpush.bf16.msra.mxu0 0
        %2929 = vmatpush.bf16.msra.mxu0 0
        %2930 = vmatpush.bf16.msra.mxu0 0
        %2931 = vmatpush.bf16.msra.mxu0 %v2707
        %2932 = vmatmul.bf16.gmra.mxu0 %v2785
        %v2933 = vpop.f32.mrf.mxu0
        %v2934 = vadd.f32 0.0, %v2933
        %v2935 = vpop.f32.mrf.mxu0
        %v2936 = vadd.f32 0.0, %v2935
        %2937 = vdwg.mxu0
        %v2938 = vadd.f32 %v2922, %v2934
        %v2939 = vadd.f32 %v2923, %v2936
        %v2940 = vpack.c.bf16 %v2182, %v2181
        %v2942 = vsel %vm2578, %v2940, 0
        %2944 = vmatpush.bf16.msra.mxu0 0
        %2945 = vmatpush.bf16.msra.mxu0 0
        %2946 = vmatpush.bf16.msra.mxu0 0
        %2947 = vmatpush.bf16.msra.mxu0 0
        %2948 = vmatpush.bf16.msra.mxu0 0
        %2949 = vmatpush.bf16.msra.mxu0 0
        %2950 = vmatpush.bf16.msra.mxu0 0
        %2951 = vmatpush.bf16.msra.mxu0 %v2732
        %2952 = vmatmul.bf16.gmra.mxu0 %v2942
        %v2953 = vpop.f32.mrf.mxu0
        %v2954 = vadd.f32 0.0, %v2953
        %v2955 = vpop.f32.mrf.mxu0
        %v2956 = vadd.f32 0.0, %v2955
        %2957 = vdwg.mxu0
        %v2958 = vadd.f32 %v2938, %v2954
        %v2959 = vadd.f32 %v2939, %v2956
        %v2960 = vshrl.u32 %v2940, 16
        %v2962 = vshll.u32 %v2940, 16
        %v2964 = vrot.slane %v2962, 1
        %v2965 = vor.u32 %v2960, %v2964
        %v2967 = vsel %vm2578, %v2965, 0
        %2969 = vmatpush.bf16.msra.mxu0 0
        %2970 = vmatpush.bf16.msra.mxu0 0
        %2971 = vmatpush.bf16.msra.mxu0 0
        %2972 = vmatpush.bf16.msra.mxu0 0
        %2973 = vmatpush.bf16.msra.mxu0 0
        %2974 = vmatpush.bf16.msra.mxu0 0
        %2975 = vmatpush.bf16.msra.mxu0 0
        %2976 = vmatpush.bf16.msra.mxu0 %v2762
        %2977 = vmatmul.bf16.gmra.mxu0 %v2967
        %v2978 = vpop.f32.mrf.mxu0
        %v2979 = vadd.f32 0.0, %v2978
        %v2980 = vpop.f32.mrf.mxu0
        %v2981 = vadd.f32 0.0, %v2980
        %2982 = vdwg.mxu0
        %v2983 = vadd.f32 %v2958, %v2979
        %v2984 = vadd.f32 %v2959, %v2981
        %v2986 = vrot.slane %v2940, 1
        %v2988 = vsel %vm2578, %v2986, 0
        %2990 = vmatpush.bf16.msra.mxu0 0
        %2991 = vmatpush.bf16.msra.mxu0 0
        %2992 = vmatpush.bf16.msra.mxu0 0
        %2993 = vmatpush.bf16.msra.mxu0 0
        %2994 = vmatpush.bf16.msra.mxu0 0
        %2995 = vmatpush.bf16.msra.mxu0 0
        %2996 = vmatpush.bf16.msra.mxu0 0
        %2997 = vmatpush.bf16.msra.mxu0 %v2788
        %2998 = vmatmul.bf16.gmra.mxu0 %v2988
        %v2999 = vpop.f32.mrf.mxu0
        %v3000 = vadd.f32 0.0, %v2999
        %v3001 = vpop.f32.mrf.mxu0
        %v3002 = vadd.f32 0.0, %v3001
        %3003 = vdwg.mxu0
        %v3004 = vadd.f32 %v2983, %v3000
        %v3005 = vadd.f32 %v2984, %v3002
        %v3006 = vadd.f32 %v3004, %v2807
        %v3007 = vadd.f32 %v3005, %v2807
        %vm3008 = vcmp.ge.f32.partialorder %v3006, 0.0
        %vm3009 = vcmp.ge.f32.partialorder %v3007, 0.0
        %v3010 = vmul.f32 %v3006, 0.01
        %v3011 = vmul.f32 %v3007, 0.01
        %v3012 = vsel %vm3008, %v3006, %v3010
        %v3013 = vsel %vm3009, %v3007, %v3011
        %v3015 = vsel %vm1912, %v3013, 0
        %3017 = vmatpush.msra.mxu0 0.0
        %3018 = vmatpush.msra.mxu0 0.0
        %3019 = vmatpush.msra.mxu0 0.0
        %3020 = vmatpush.msra.mxu0 0.0
        %3021 = vmatpush.msra.mxu0 0.0
        %3022 = vmatpush.msra.mxu0 0.0
        %3023 = vmatpush.msra.mxu0 0.0
        %3024 = vmatpush.msra.mxu0 0.0
        %3025 = vmatpush.msra.mxu0 0.0
        %3026 = vmatpush.msra.mxu0 0.0
        %3027 = vmatpush.msra.mxu0 0.0
        %3028 = vmatpush.msra.mxu0 0.0
        %3029 = vmatpush.msra.mxu0 0.0
        %3030 = vmatpush.msra.mxu0 0.0
        %3031 = vmatpush.msra.mxu0 %v3015
        %3032 = vmatpush.msra.mxu0 %v3012
        %3033 = vmatmul.f32.gmra.mxu0 %v2819
        %v3034 = vpop.f32.mrf.mxu0
        %v3035 = vadd.f32 0.0, %v3034
        %3036 = vdwg.mxu0
        %v3038 = vrot.slane %v3035, 4
        %v3040 = vmax.f32 %v3035, %v3038
        %v3041 = vmax.f32 %v2847, %v3040
        %3042 = vmatpush.bf16.msra.mxu0 0
        %3043 = vmatpush.bf16.msra.mxu0 0
        %3044 = vmatpush.bf16.msra.mxu0 0
        %3045 = vmatpush.bf16.msra.mxu0 0
        %3046 = vmatpush.bf16.msra.mxu0 0
        %3047 = vmatpush.bf16.msra.mxu0 0
        %3048 = vmatpush.bf16.msra.mxu0 0
        %3049 = vmatpush.bf16.msra.mxu0 %v2583
        %3050 = vmatmul.bf16.gmra.mxu0 %v2759
        %v3051 = vpop.f32.mrf.mxu0
        %v3052 = vadd.f32 0.0, %v3051
        %v3053 = vpop.f32.mrf.mxu0
        %v3054 = vadd.f32 0.0, %v3053
        %3055 = vdwg.mxu0
        %3056 = vmatpush.bf16.msra.mxu0 0
        %3057 = vmatpush.bf16.msra.mxu0 0
        %3058 = vmatpush.bf16.msra.mxu0 0
        %3059 = vmatpush.bf16.msra.mxu0 0
        %3060 = vmatpush.bf16.msra.mxu0 0
        %3061 = vmatpush.bf16.msra.mxu0 0
        %3062 = vmatpush.bf16.msra.mxu0 0
        %3063 = vmatpush.bf16.msra.mxu0 %v2602
        %3064 = vmatmul.bf16.gmra.mxu0 %v2729
        %v3065 = vpop.f32.mrf.mxu0
        %v3066 = vadd.f32 %v3052, %v3065
        %v3067 = vpop.f32.mrf.mxu0
        %v3068 = vadd.f32 %v3054, %v3067
        %3069 = vdwg.mxu0
        %3070 = vmatpush.bf16.msra.mxu0 0
        %3071 = vmatpush.bf16.msra.mxu0 0
        %3072 = vmatpush.bf16.msra.mxu0 0
        %3073 = vmatpush.bf16.msra.mxu0 0
        %3074 = vmatpush.bf16.msra.mxu0 0
        %3075 = vmatpush.bf16.msra.mxu0 0
        %3076 = vmatpush.bf16.msra.mxu0 0
        %3077 = vmatpush.bf16.msra.mxu0 %v2626
        %3078 = vmatmul.bf16.gmra.mxu0 %v2785
        %v3079 = vpop.f32.mrf.mxu0
        %v3080 = vadd.f32 0.0, %v3079
        %v3081 = vpop.f32.mrf.mxu0
        %v3082 = vadd.f32 0.0, %v3081
        %3083 = vdwg.mxu0
        %v3084 = vadd.f32 %v3066, %v3080
        %v3085 = vadd.f32 %v3068, %v3082
        %3086 = vmatpush.bf16.msra.mxu0 0
        %3087 = vmatpush.bf16.msra.mxu0 0
        %3088 = vmatpush.bf16.msra.mxu0 0
        %3089 = vmatpush.bf16.msra.mxu0 0
        %3090 = vmatpush.bf16.msra.mxu0 0
        %3091 = vmatpush.bf16.msra.mxu0 0
        %3092 = vmatpush.bf16.msra.mxu0 0
        %3093 = vmatpush.bf16.msra.mxu0 %v2651
        %3094 = vmatmul.bf16.gmra.mxu0 %v2942
        %v3095 = vpop.f32.mrf.mxu0
        %v3096 = vadd.f32 0.0, %v3095
        %v3097 = vpop.f32.mrf.mxu0
        %v3098 = vadd.f32 0.0, %v3097
        %3099 = vdwg.mxu0
        %v3100 = vadd.f32 %v3084, %v3096
        %v3101 = vadd.f32 %v3085, %v3098
        %3102 = vmatpush.bf16.msra.mxu0 0
        %3103 = vmatpush.bf16.msra.mxu0 0
        %3104 = vmatpush.bf16.msra.mxu0 0
        %3105 = vmatpush.bf16.msra.mxu0 0
        %3106 = vmatpush.bf16.msra.mxu0 0
        %3107 = vmatpush.bf16.msra.mxu0 0
        %3108 = vmatpush.bf16.msra.mxu0 0
        %3109 = vmatpush.bf16.msra.mxu0 %v2681
        %3110 = vmatmul.bf16.gmra.mxu0 %v2967
        %v3111 = vpop.f32.mrf.mxu0
        %v3112 = vadd.f32 0.0, %v3111
        %v3113 = vpop.f32.mrf.mxu0
        %v3114 = vadd.f32 0.0, %v3113
        %3115 = vdwg.mxu0
        %v3116 = vadd.f32 %v3100, %v3112
        %v3117 = vadd.f32 %v3101, %v3114
        %3118 = vmatpush.bf16.msra.mxu0 0
        %3119 = vmatpush.bf16.msra.mxu0 0
        %3120 = vmatpush.bf16.msra.mxu0 0
        %3121 = vmatpush.bf16.msra.mxu0 0
        %3122 = vmatpush.bf16.msra.mxu0 0
        %3123 = vmatpush.bf16.msra.mxu0 0
        %3124 = vmatpush.bf16.msra.mxu0 0
        %3125 = vmatpush.bf16.msra.mxu0 %v2707
        %3126 = vmatmul.bf16.gmra.mxu0 %v2988
        %v3127 = vpop.f32.mrf.mxu0
        %v3128 = vadd.f32 0.0, %v3127
        %v3129 = vpop.f32.mrf.mxu0
        %v3130 = vadd.f32 0.0, %v3129
        %3131 = vdwg.mxu0
        %v3132 = vadd.f32 %v3116, %v3128
        %v3133 = vadd.f32 %v3117, %v3130
        %v3134 = vpack.c.bf16 %v2237, %v2236
        %v3136 = vsel %vm2578, %v3134, 0
        %3138 = vmatpush.bf16.msra.mxu0 0
        %3139 = vmatpush.bf16.msra.mxu0 0
        %3140 = vmatpush.bf16.msra.mxu0 0
        %3141 = vmatpush.bf16.msra.mxu0 0
        %3142 = vmatpush.bf16.msra.mxu0 0
        %3143 = vmatpush.bf16.msra.mxu0 0
        %3144 = vmatpush.bf16.msra.mxu0 0
        %3145 = vmatpush.bf16.msra.mxu0 %v2732
        %3146 = vmatmul.bf16.gmra.mxu0 %v3136
        %v3147 = vpop.f32.mrf.mxu0
        %v3148 = vadd.f32 0.0, %v3147
        %v3149 = vpop.f32.mrf.mxu0
        %v3150 = vadd.f32 0.0, %v3149
        %3151 = vdwg.mxu0
        %v3152 = vadd.f32 %v3132, %v3148
        %v3153 = vadd.f32 %v3133, %v3150
        %v3154 = vshrl.u32 %v3134, 16
        %v3156 = vshll.u32 %v3134, 16
        %v3158 = vrot.slane %v3156, 1
        %v3159 = vor.u32 %v3154, %v3158
        %v3161 = vsel %vm2578, %v3159, 0
        %3163 = vmatpush.bf16.msra.mxu0 0
        %3164 = vmatpush.bf16.msra.mxu0 0
        %3165 = vmatpush.bf16.msra.mxu0 0
        %3166 = vmatpush.bf16.msra.mxu0 0
        %3167 = vmatpush.bf16.msra.mxu0 0
        %3168 = vmatpush.bf16.msra.mxu0 0
        %3169 = vmatpush.bf16.msra.mxu0 0
        %3170 = vmatpush.bf16.msra.mxu0 %v2762
        %3171 = vmatmul.bf16.gmra.mxu0 %v3161
        %v3172 = vpop.f32.mrf.mxu0
        %v3173 = vadd.f32 0.0, %v3172
        %v3174 = vpop.f32.mrf.mxu0
        %v3175 = vadd.f32 0.0, %v3174
        %3176 = vdwg.mxu0
        %v3177 = vadd.f32 %v3152, %v3173
        %v3178 = vadd.f32 %v3153, %v3175
        %v3180 = vrot.slane %v3134, 1
        %v3182 = vsel %vm2578, %v3180, 0
        %3184 = vmatpush.bf16.msra.mxu0 0
        %3185 = vmatpush.bf16.msra.mxu0 0
        %3186 = vmatpush.bf16.msra.mxu0 0
        %3187 = vmatpush.bf16.msra.mxu0 0
        %3188 = vmatpush.bf16.msra.mxu0 0
        %3189 = vmatpush.bf16.msra.mxu0 0
        %3190 = vmatpush.bf16.msra.mxu0 0
        %3191 = vmatpush.bf16.msra.mxu0 %v2788
        %3192 = vmatmul.bf16.gmra.mxu0 %v3182
        %v3193 = vpop.f32.mrf.mxu0
        %v3194 = vadd.f32 0.0, %v3193
        %v3195 = vpop.f32.mrf.mxu0
        %v3196 = vadd.f32 0.0, %v3195
        %3197 = vdwg.mxu0
        %v3198 = vadd.f32 %v3177, %v3194
        %v3199 = vadd.f32 %v3178, %v3196
        %v3200 = vadd.f32 %v3198, %v2807
        %v3201 = vadd.f32 %v3199, %v2807
        %vm3202 = vcmp.ge.f32.partialorder %v3200, 0.0
        %vm3203 = vcmp.ge.f32.partialorder %v3201, 0.0
        %v3204 = vmul.f32 %v3200, 0.01
        %v3205 = vmul.f32 %v3201, 0.01
        %v3206 = vsel %vm3202, %v3200, %v3204
        %v3207 = vsel %vm3203, %v3201, %v3205
        %v3209 = vsel %vm1912, %v3207, 0
        %3211 = vmatpush.msra.mxu0 0.0
        %3212 = vmatpush.msra.mxu0 0.0
        %3213 = vmatpush.msra.mxu0 0.0
        %3214 = vmatpush.msra.mxu0 0.0
        %3215 = vmatpush.msra.mxu0 0.0
        %3216 = vmatpush.msra.mxu0 0.0
        %3217 = vmatpush.msra.mxu0 0.0
        %3218 = vmatpush.msra.mxu0 0.0
        %3219 = vmatpush.msra.mxu0 0.0
        %3220 = vmatpush.msra.mxu0 0.0
        %3221 = vmatpush.msra.mxu0 0.0
        %3222 = vmatpush.msra.mxu0 0.0
        %3223 = vmatpush.msra.mxu0 0.0
        %3224 = vmatpush.msra.mxu0 0.0
        %3225 = vmatpush.msra.mxu0 %v3209
        %3226 = vmatpush.msra.mxu0 %v3206
        %3227 = vmatmul.f32.gmra.mxu0 %v2819
        %v3228 = vpop.f32.mrf.mxu0
        %v3229 = vadd.f32 0.0, %v3228
        %3230 = vdwg.mxu0
        %v3232 = vrot.slane %v3229, 4
        %v3234 = vmax.f32 %v3229, %v3232
        %3235 = vmatpush.bf16.msra.mxu0 0
        %3236 = vmatpush.bf16.msra.mxu0 0
        %3237 = vmatpush.bf16.msra.mxu0 0
        %3238 = vmatpush.bf16.msra.mxu0 0
        %3239 = vmatpush.bf16.msra.mxu0 0
        %3240 = vmatpush.bf16.msra.mxu0 0
        %3241 = vmatpush.bf16.msra.mxu0 0
        %3242 = vmatpush.bf16.msra.mxu0 %v2583
        %3243 = vmatmul.bf16.gmra.mxu0 %v2967
        %v3244 = vpop.f32.mrf.mxu0
        %v3245 = vadd.f32 0.0, %v3244
        %v3246 = vpop.f32.mrf.mxu0
        %v3247 = vadd.f32 0.0, %v3246
        %3248 = vdwg.mxu0
        %3249 = vmatpush.bf16.msra.mxu0 0
        %3250 = vmatpush.bf16.msra.mxu0 0
        %3251 = vmatpush.bf16.msra.mxu0 0
        %3252 = vmatpush.bf16.msra.mxu0 0
        %3253 = vmatpush.bf16.msra.mxu0 0
        %3254 = vmatpush.bf16.msra.mxu0 0
        %3255 = vmatpush.bf16.msra.mxu0 0
        %3256 = vmatpush.bf16.msra.mxu0 %v2602
        %3257 = vmatmul.bf16.gmra.mxu0 %v2942
        %v3258 = vpop.f32.mrf.mxu0
        %v3259 = vadd.f32 %v3245, %v3258
        %v3260 = vpop.f32.mrf.mxu0
        %v3261 = vadd.f32 %v3247, %v3260
        %3262 = vdwg.mxu0
        %3263 = vmatpush.bf16.msra.mxu0 0
        %3264 = vmatpush.bf16.msra.mxu0 0
        %3265 = vmatpush.bf16.msra.mxu0 0
        %3266 = vmatpush.bf16.msra.mxu0 0
        %3267 = vmatpush.bf16.msra.mxu0 0
        %3268 = vmatpush.bf16.msra.mxu0 0
        %3269 = vmatpush.bf16.msra.mxu0 0
        %3270 = vmatpush.bf16.msra.mxu0 %v2626
        %3271 = vmatmul.bf16.gmra.mxu0 %v2988
        %v3272 = vpop.f32.mrf.mxu0
        %v3273 = vadd.f32 0.0, %v3272
        %v3274 = vpop.f32.mrf.mxu0
        %v3275 = vadd.f32 0.0, %v3274
        %3276 = vdwg.mxu0
        %v3277 = vadd.f32 %v3259, %v3273
        %v3278 = vadd.f32 %v3261, %v3275
        %3279 = vmatpush.bf16.msra.mxu0 0
        %3280 = vmatpush.bf16.msra.mxu0 0
        %3281 = vmatpush.bf16.msra.mxu0 0
        %3282 = vmatpush.bf16.msra.mxu0 0
        %3283 = vmatpush.bf16.msra.mxu0 0
        %3284 = vmatpush.bf16.msra.mxu0 0
        %3285 = vmatpush.bf16.msra.mxu0 0
        %3286 = vmatpush.bf16.msra.mxu0 %v2651
        %3287 = vmatmul.bf16.gmra.mxu0 %v3136
        %v3288 = vpop.f32.mrf.mxu0
        %v3289 = vadd.f32 0.0, %v3288
        %v3290 = vpop.f32.mrf.mxu0
        %v3291 = vadd.f32 0.0, %v3290
        %3292 = vdwg.mxu0
        %v3293 = vadd.f32 %v3277, %v3289
        %v3294 = vadd.f32 %v3278, %v3291
        %3295 = vmatpush.bf16.msra.mxu0 0
        %3296 = vmatpush.bf16.msra.mxu0 0
        %3297 = vmatpush.bf16.msra.mxu0 0
        %3298 = vmatpush.bf16.msra.mxu0 0
        %3299 = vmatpush.bf16.msra.mxu0 0
        %3300 = vmatpush.bf16.msra.mxu0 0
        %3301 = vmatpush.bf16.msra.mxu0 0
        %3302 = vmatpush.bf16.msra.mxu0 %v2681
        %3303 = vmatmul.bf16.gmra.mxu0 %v3161
        %v3304 = vpop.f32.mrf.mxu0
        %v3305 = vadd.f32 0.0, %v3304
        %v3306 = vpop.f32.mrf.mxu0
        %v3307 = vadd.f32 0.0, %v3306
        %3308 = vdwg.mxu0
        %v3309 = vadd.f32 %v3293, %v3305
        %v3310 = vadd.f32 %v3294, %v3307
        %3311 = vmatpush.bf16.msra.mxu0 0
        %3312 = vmatpush.bf16.msra.mxu0 0
        %3313 = vmatpush.bf16.msra.mxu0 0
        %3314 = vmatpush.bf16.msra.mxu0 0
        %3315 = vmatpush.bf16.msra.mxu0 0
        %3316 = vmatpush.bf16.msra.mxu0 0
        %3317 = vmatpush.bf16.msra.mxu0 0
        %3318 = vmatpush.bf16.msra.mxu0 %v2707
        %3319 = vmatmul.bf16.gmra.mxu0 %v3182
        %v3320 = vpop.f32.mrf.mxu0
        %v3321 = vadd.f32 0.0, %v3320
        %v3322 = vpop.f32.mrf.mxu0
        %v3323 = vadd.f32 0.0, %v3322
        %3324 = vdwg.mxu0
        %v3325 = vadd.f32 %v3309, %v3321
        %v3326 = vadd.f32 %v3310, %v3323
        %v3327 = vpack.c.bf16 %v2306, %v2305
        %v3329 = vsel %vm2578, %v3327, 0
        %3331 = vmatpush.bf16.msra.mxu0 0
        %3332 = vmatpush.bf16.msra.mxu0 0
        %3333 = vmatpush.bf16.msra.mxu0 0
        %3334 = vmatpush.bf16.msra.mxu0 0
        %3335 = vmatpush.bf16.msra.mxu0 0
        %3336 = vmatpush.bf16.msra.mxu0 0
        %3337 = vmatpush.bf16.msra.mxu0 0
        %3338 = vmatpush.bf16.msra.mxu0 %v2732
        %3339 = vmatmul.bf16.gmra.mxu0 %v3329
        %v3340 = vpop.f32.mrf.mxu0
        %v3341 = vadd.f32 0.0, %v3340
        %v3342 = vpop.f32.mrf.mxu0
        %v3343 = vadd.f32 0.0, %v3342
        %3344 = vdwg.mxu0
        %v3345 = vadd.f32 %v3325, %v3341
        %v3346 = vadd.f32 %v3326, %v3343
        %v3347 = vshrl.u32 %v3327, 16
        %v3349 = vshll.u32 %v3327, 16
        %v3351 = vrot.slane %v3349, 1
        %v3352 = vor.u32 %v3347, %v3351
        %v3354 = vsel %vm2578, %v3352, 0
        %3356 = vmatpush.bf16.msra.mxu0 0
        %3357 = vmatpush.bf16.msra.mxu0 0
        %3358 = vmatpush.bf16.msra.mxu0 0
        %3359 = vmatpush.bf16.msra.mxu0 0
        %3360 = vmatpush.bf16.msra.mxu0 0
        %3361 = vmatpush.bf16.msra.mxu0 0
        %3362 = vmatpush.bf16.msra.mxu0 0
        %3363 = vmatpush.bf16.msra.mxu0 %v2762
        %3364 = vmatmul.bf16.gmra.mxu0 %v3354
        %v3365 = vpop.f32.mrf.mxu0
        %v3366 = vadd.f32 0.0, %v3365
        %v3367 = vpop.f32.mrf.mxu0
        %v3368 = vadd.f32 0.0, %v3367
        %3369 = vdwg.mxu0
        %v3370 = vadd.f32 %v3345, %v3366
        %v3371 = vadd.f32 %v3346, %v3368
        %v3373 = vrot.slane %v3327, 1
        %v3375 = vsel %vm2578, %v3373, 0
        %3377 = vmatpush.bf16.msra.mxu0 0
        %3378 = vmatpush.bf16.msra.mxu0 0
        %3379 = vmatpush.bf16.msra.mxu0 0
        %3380 = vmatpush.bf16.msra.mxu0 0
        %3381 = vmatpush.bf16.msra.mxu0 0
        %3382 = vmatpush.bf16.msra.mxu0 0
        %3383 = vmatpush.bf16.msra.mxu0 0
        %3384 = vmatpush.bf16.msra.mxu0 %v2788
        %3385 = vmatmul.bf16.gmra.mxu0 %v3375
        %v3386 = vpop.f32.mrf.mxu0
        %v3387 = vadd.f32 0.0, %v3386
        %v3388 = vpop.f32.mrf.mxu0
        %v3389 = vadd.f32 0.0, %v3388
        %3390 = vdwg.mxu0
        %v3391 = vadd.f32 %v3370, %v3387
        %v3392 = vadd.f32 %v3371, %v3389
        %v3393 = vadd.f32 %v3391, %v2807
        %v3394 = vadd.f32 %v3392, %v2807
        %vm3395 = vcmp.ge.f32.partialorder %v3393, 0.0
        %vm3396 = vcmp.ge.f32.partialorder %v3394, 0.0
        %v3397 = vmul.f32 %v3393, 0.01
        %v3398 = vmul.f32 %v3394, 0.01
        %v3399 = vsel %vm3395, %v3393, %v3397
        %v3400 = vsel %vm3396, %v3394, %v3398
        %v3402 = vsel %vm1912, %v3400, 0
        %3404 = vmatpush.msra.mxu0 0.0
        %3405 = vmatpush.msra.mxu0 0.0
        %3406 = vmatpush.msra.mxu0 0.0
        %3407 = vmatpush.msra.mxu0 0.0
        %3408 = vmatpush.msra.mxu0 0.0
        %3409 = vmatpush.msra.mxu0 0.0
        %3410 = vmatpush.msra.mxu0 0.0
        %3411 = vmatpush.msra.mxu0 0.0
        %3412 = vmatpush.msra.mxu0 0.0
        %3413 = vmatpush.msra.mxu0 0.0
        %3414 = vmatpush.msra.mxu0 0.0
        %3415 = vmatpush.msra.mxu0 0.0
        %3416 = vmatpush.msra.mxu0 0.0
        %3417 = vmatpush.msra.mxu0 0.0
        %3418 = vmatpush.msra.mxu0 %v3402
        %3419 = vmatpush.msra.mxu0 %v3399
        %3420 = vmatmul.f32.gmra.mxu0 %v2819
        %v3421 = vpop.f32.mrf.mxu0
        %v3422 = vadd.f32 0.0, %v3421
        %3423 = vdwg.mxu0
        %v3425 = vrot.slane %v3422, 4
        %v3427 = vmax.f32 %v3422, %v3425
        %v3428 = vmax.f32 %v3234, %v3427
        %3429 = vmatpush.bf16.msra.mxu0 0
        %3430 = vmatpush.bf16.msra.mxu0 0
        %3431 = vmatpush.bf16.msra.mxu0 0
        %3432 = vmatpush.bf16.msra.mxu0 0
        %3433 = vmatpush.bf16.msra.mxu0 0
        %3434 = vmatpush.bf16.msra.mxu0 0
        %3435 = vmatpush.bf16.msra.mxu0 0
        %3436 = vmatpush.bf16.msra.mxu0 %v2583
        %3437 = vmatmul.bf16.gmra.mxu0 %v3161
        %v3438 = vpop.f32.mrf.mxu0
        %v3439 = vadd.f32 0.0, %v3438
        %v3440 = vpop.f32.mrf.mxu0
        %v3441 = vadd.f32 0.0, %v3440
        %3442 = vdwg.mxu0
        %3443 = vmatpush.bf16.msra.mxu0 0
        %3444 = vmatpush.bf16.msra.mxu0 0
        %3445 = vmatpush.bf16.msra.mxu0 0
        %3446 = vmatpush.bf16.msra.mxu0 0
        %3447 = vmatpush.bf16.msra.mxu0 0
        %3448 = vmatpush.bf16.msra.mxu0 0
        %3449 = vmatpush.bf16.msra.mxu0 0
        %3450 = vmatpush.bf16.msra.mxu0 %v2602
        %3451 = vmatmul.bf16.gmra.mxu0 %v3136
        %v3452 = vpop.f32.mrf.mxu0
        %v3453 = vadd.f32 %v3439, %v3452
        %v3454 = vpop.f32.mrf.mxu0
        %v3455 = vadd.f32 %v3441, %v3454
        %3456 = vdwg.mxu0
        %3457 = vmatpush.bf16.msra.mxu0 0
        %3458 = vmatpush.bf16.msra.mxu0 0
        %3459 = vmatpush.bf16.msra.mxu0 0
        %3460 = vmatpush.bf16.msra.mxu0 0
        %3461 = vmatpush.bf16.msra.mxu0 0
        %3462 = vmatpush.bf16.msra.mxu0 0
        %3463 = vmatpush.bf16.msra.mxu0 0
        %3464 = vmatpush.bf16.msra.mxu0 %v2626
        %3465 = vmatmul.bf16.gmra.mxu0 %v3182
        %v3466 = vpop.f32.mrf.mxu0
        %v3467 = vadd.f32 0.0, %v3466
        %v3468 = vpop.f32.mrf.mxu0
        %v3469 = vadd.f32 0.0, %v3468
        %3470 = vdwg.mxu0
        %v3471 = vadd.f32 %v3453, %v3467
        %v3472 = vadd.f32 %v3455, %v3469
        %3473 = vmatpush.bf16.msra.mxu0 0
        %3474 = vmatpush.bf16.msra.mxu0 0
        %3475 = vmatpush.bf16.msra.mxu0 0
        %3476 = vmatpush.bf16.msra.mxu0 0
        %3477 = vmatpush.bf16.msra.mxu0 0
        %3478 = vmatpush.bf16.msra.mxu0 0
        %3479 = vmatpush.bf16.msra.mxu0 0
        %3480 = vmatpush.bf16.msra.mxu0 %v2651
        %3481 = vmatmul.bf16.gmra.mxu0 %v3329
        %v3482 = vpop.f32.mrf.mxu0
        %v3483 = vadd.f32 0.0, %v3482
        %v3484 = vpop.f32.mrf.mxu0
        %v3485 = vadd.f32 0.0, %v3484
        %3486 = vdwg.mxu0
        %v3487 = vadd.f32 %v3471, %v3483
        %v3488 = vadd.f32 %v3472, %v3485
        %3489 = vmatpush.bf16.msra.mxu0 0
        %3490 = vmatpush.bf16.msra.mxu0 0
        %3491 = vmatpush.bf16.msra.mxu0 0
        %3492 = vmatpush.bf16.msra.mxu0 0
        %3493 = vmatpush.bf16.msra.mxu0 0
        %3494 = vmatpush.bf16.msra.mxu0 0
        %3495 = vmatpush.bf16.msra.mxu0 0
        %3496 = vmatpush.bf16.msra.mxu0 %v2681
        %3497 = vmatmul.bf16.gmra.mxu0 %v3354
        %v3498 = vpop.f32.mrf.mxu0
        %v3499 = vadd.f32 0.0, %v3498
        %v3500 = vpop.f32.mrf.mxu0
        %v3501 = vadd.f32 0.0, %v3500
        %3502 = vdwg.mxu0
        %v3503 = vadd.f32 %v3487, %v3499
        %v3504 = vadd.f32 %v3488, %v3501
        %3505 = vmatpush.bf16.msra.mxu0 0
        %3506 = vmatpush.bf16.msra.mxu0 0
        %3507 = vmatpush.bf16.msra.mxu0 0
        %3508 = vmatpush.bf16.msra.mxu0 0
        %3509 = vmatpush.bf16.msra.mxu0 0
        %3510 = vmatpush.bf16.msra.mxu0 0
        %3511 = vmatpush.bf16.msra.mxu0 0
        %3512 = vmatpush.bf16.msra.mxu0 %v2707
        %3513 = vmatmul.bf16.gmra.mxu0 %v3375
        %v3514 = vpop.f32.mrf.mxu0
        %v3515 = vadd.f32 0.0, %v3514
        %v3516 = vpop.f32.mrf.mxu0
        %v3517 = vadd.f32 0.0, %v3516
        %3518 = vdwg.mxu0
        %v3519 = vadd.f32 %v3503, %v3515
        %v3520 = vadd.f32 %v3504, %v3517
        %v3521 = vpack.c.bf16 %v2375, %v2374
        %v3523 = vsel %vm2578, %v3521, 0
        %3525 = vmatpush.bf16.msra.mxu0 0
        %3526 = vmatpush.bf16.msra.mxu0 0
        %3527 = vmatpush.bf16.msra.mxu0 0
        %3528 = vmatpush.bf16.msra.mxu0 0
        %3529 = vmatpush.bf16.msra.mxu0 0
        %3530 = vmatpush.bf16.msra.mxu0 0
        %3531 = vmatpush.bf16.msra.mxu0 0
        %3532 = vmatpush.bf16.msra.mxu0 %v2732
        %3533 = vmatmul.bf16.gmra.mxu0 %v3523
        %v3534 = vpop.f32.mrf.mxu0
        %v3535 = vadd.f32 0.0, %v3534
        %v3536 = vpop.f32.mrf.mxu0
        %v3537 = vadd.f32 0.0, %v3536
        %3538 = vdwg.mxu0
        %v3539 = vadd.f32 %v3519, %v3535
        %v3540 = vadd.f32 %v3520, %v3537
        %v3541 = vshrl.u32 %v3521, 16
        %v3543 = vshll.u32 %v3521, 16
        %v3545 = vrot.slane %v3543, 1
        %v3546 = vor.u32 %v3541, %v3545
        %v3548 = vsel %vm2578, %v3546, 0
        %3550 = vmatpush.bf16.msra.mxu0 0
        %3551 = vmatpush.bf16.msra.mxu0 0
        %3552 = vmatpush.bf16.msra.mxu0 0
        %3553 = vmatpush.bf16.msra.mxu0 0
        %3554 = vmatpush.bf16.msra.mxu0 0
        %3555 = vmatpush.bf16.msra.mxu0 0
        %3556 = vmatpush.bf16.msra.mxu0 0
        %3557 = vmatpush.bf16.msra.mxu0 %v2762
        %3558 = vmatmul.bf16.gmra.mxu0 %v3548
        %v3559 = vpop.f32.mrf.mxu0
        %v3560 = vadd.f32 0.0, %v3559
        %v3561 = vpop.f32.mrf.mxu0
        %v3562 = vadd.f32 0.0, %v3561
        %3563 = vdwg.mxu0
        %v3564 = vadd.f32 %v3539, %v3560
        %v3565 = vadd.f32 %v3540, %v3562
        %v3567 = vrot.slane %v3521, 1
        %v3569 = vsel %vm2578, %v3567, 0
        %3571 = vmatpush.bf16.msra.mxu0 0
        %3572 = vmatpush.bf16.msra.mxu0 0
        %3573 = vmatpush.bf16.msra.mxu0 0
        %3574 = vmatpush.bf16.msra.mxu0 0
        %3575 = vmatpush.bf16.msra.mxu0 0
        %3576 = vmatpush.bf16.msra.mxu0 0
        %3577 = vmatpush.bf16.msra.mxu0 0
        %3578 = vmatpush.bf16.msra.mxu0 %v2788
        %3579 = vmatmul.bf16.gmra.mxu0 %v3569
        %v3580 = vpop.f32.mrf.mxu0
        %v3581 = vadd.f32 0.0, %v3580
        %v3582 = vpop.f32.mrf.mxu0
        %v3583 = vadd.f32 0.0, %v3582
        %3584 = vdwg.mxu0
        %v3585 = vadd.f32 %v3564, %v3581
        %v3586 = vadd.f32 %v3565, %v3583
        %v3587 = vadd.f32 %v3585, %v2807
        %v3588 = vadd.f32 %v3586, %v2807
        %vm3589 = vcmp.ge.f32.partialorder %v3587, 0.0
        %vm3590 = vcmp.ge.f32.partialorder %v3588, 0.0
        %v3591 = vmul.f32 %v3587, 0.01
        %v3592 = vmul.f32 %v3588, 0.01
        %v3593 = vsel %vm3589, %v3587, %v3591
        %v3594 = vsel %vm3590, %v3588, %v3592
        %v3596 = vsel %vm1912, %v3594, 0
        %3598 = vmatpush.msra.mxu0 0.0
        %3599 = vmatpush.msra.mxu0 0.0
        %3600 = vmatpush.msra.mxu0 0.0
        %3601 = vmatpush.msra.mxu0 0.0
        %3602 = vmatpush.msra.mxu0 0.0
        %3603 = vmatpush.msra.mxu0 0.0
        %3604 = vmatpush.msra.mxu0 0.0
        %3605 = vmatpush.msra.mxu0 0.0
        %3606 = vmatpush.msra.mxu0 0.0
        %3607 = vmatpush.msra.mxu0 0.0
        %3608 = vmatpush.msra.mxu0 0.0
        %3609 = vmatpush.msra.mxu0 0.0
        %3610 = vmatpush.msra.mxu0 0.0
        %3611 = vmatpush.msra.mxu0 0.0
        %3612 = vmatpush.msra.mxu0 %v3596
        %3613 = vmatpush.msra.mxu0 %v3593
        %3614 = vmatmul.f32.gmra.mxu0 %v2819
        %v3615 = vpop.f32.mrf.mxu0
        %v3616 = vadd.f32 0.0, %v3615
        %3617 = vdwg.mxu0
        %v3619 = vrot.slane %v3616, 4
        %v3621 = vmax.f32 %v3616, %v3619
        %3622 = vmatpush.bf16.msra.mxu0 0
        %3623 = vmatpush.bf16.msra.mxu0 0
        %3624 = vmatpush.bf16.msra.mxu0 0
        %3625 = vmatpush.bf16.msra.mxu0 0
        %3626 = vmatpush.bf16.msra.mxu0 0
        %3627 = vmatpush.bf16.msra.mxu0 0
        %3628 = vmatpush.bf16.msra.mxu0 0
        %3629 = vmatpush.bf16.msra.mxu0 %v2583
        %3630 = vmatmul.bf16.gmra.mxu0 %v3354
        %v3631 = vpop.f32.mrf.mxu0
        %v3632 = vadd.f32 0.0, %v3631
        %v3633 = vpop.f32.mrf.mxu0
        %v3634 = vadd.f32 0.0, %v3633
        %3635 = vdwg.mxu0
        %3636 = vmatpush.bf16.msra.mxu0 0
        %3637 = vmatpush.bf16.msra.mxu0 0
        %3638 = vmatpush.bf16.msra.mxu0 0
        %3639 = vmatpush.bf16.msra.mxu0 0
        %3640 = vmatpush.bf16.msra.mxu0 0
        %3641 = vmatpush.bf16.msra.mxu0 0
        %3642 = vmatpush.bf16.msra.mxu0 0
        %3643 = vmatpush.bf16.msra.mxu0 %v2602
        %3644 = vmatmul.bf16.gmra.mxu0 %v3329
        %v3645 = vpop.f32.mrf.mxu0
        %v3646 = vadd.f32 %v3632, %v3645
        %v3647 = vpop.f32.mrf.mxu0
        %v3648 = vadd.f32 %v3634, %v3647
        %3649 = vdwg.mxu0
        %3650 = vmatpush.bf16.msra.mxu0 0
        %3651 = vmatpush.bf16.msra.mxu0 0
        %3652 = vmatpush.bf16.msra.mxu0 0
        %3653 = vmatpush.bf16.msra.mxu0 0
        %3654 = vmatpush.bf16.msra.mxu0 0
        %3655 = vmatpush.bf16.msra.mxu0 0
        %3656 = vmatpush.bf16.msra.mxu0 0
        %3657 = vmatpush.bf16.msra.mxu0 %v2626
        %3658 = vmatmul.bf16.gmra.mxu0 %v3375
        %v3659 = vpop.f32.mrf.mxu0
        %v3660 = vadd.f32 0.0, %v3659
        %v3661 = vpop.f32.mrf.mxu0
        %v3662 = vadd.f32 0.0, %v3661
        %3663 = vdwg.mxu0
        %v3664 = vadd.f32 %v3646, %v3660
        %v3665 = vadd.f32 %v3648, %v3662
        %3666 = vmatpush.bf16.msra.mxu0 0
        %3667 = vmatpush.bf16.msra.mxu0 0
        %3668 = vmatpush.bf16.msra.mxu0 0
        %3669 = vmatpush.bf16.msra.mxu0 0
        %3670 = vmatpush.bf16.msra.mxu0 0
        %3671 = vmatpush.bf16.msra.mxu0 0
        %3672 = vmatpush.bf16.msra.mxu0 0
        %3673 = vmatpush.bf16.msra.mxu0 %v2651
        %3674 = vmatmul.bf16.gmra.mxu0 %v3523
        %v3675 = vpop.f32.mrf.mxu0
        %v3676 = vadd.f32 0.0, %v3675
        %v3677 = vpop.f32.mrf.mxu0
        %v3678 = vadd.f32 0.0, %v3677
        %3679 = vdwg.mxu0
        %v3680 = vadd.f32 %v3664, %v3676
        %v3681 = vadd.f32 %v3665, %v3678
        %3682 = vmatpush.bf16.msra.mxu0 0
        %3683 = vmatpush.bf16.msra.mxu0 0
        %3684 = vmatpush.bf16.msra.mxu0 0
        %3685 = vmatpush.bf16.msra.mxu0 0
        %3686 = vmatpush.bf16.msra.mxu0 0
        %3687 = vmatpush.bf16.msra.mxu0 0
        %3688 = vmatpush.bf16.msra.mxu0 0
        %3689 = vmatpush.bf16.msra.mxu0 %v2681
        %3690 = vmatmul.bf16.gmra.mxu0 %v3548
        %v3691 = vpop.f32.mrf.mxu0
        %v3692 = vadd.f32 0.0, %v3691
        %v3693 = vpop.f32.mrf.mxu0
        %v3694 = vadd.f32 0.0, %v3693
        %3695 = vdwg.mxu0
        %v3696 = vadd.f32 %v3680, %v3692
        %v3697 = vadd.f32 %v3681, %v3694
        %3698 = vmatpush.bf16.msra.mxu0 0
        %3699 = vmatpush.bf16.msra.mxu0 0
        %3700 = vmatpush.bf16.msra.mxu0 0
        %3701 = vmatpush.bf16.msra.mxu0 0
        %3702 = vmatpush.bf16.msra.mxu0 0
        %3703 = vmatpush.bf16.msra.mxu0 0
        %3704 = vmatpush.bf16.msra.mxu0 0
        %3705 = vmatpush.bf16.msra.mxu0 %v2707
        %3706 = vmatmul.bf16.gmra.mxu0 %v3569
        %v3707 = vpop.f32.mrf.mxu0
        %v3708 = vadd.f32 0.0, %v3707
        %v3709 = vpop.f32.mrf.mxu0
        %v3710 = vadd.f32 0.0, %v3709
        %3711 = vdwg.mxu0
        %v3712 = vadd.f32 %v3696, %v3708
        %v3713 = vadd.f32 %v3697, %v3710
        %v3714 = vpack.c.bf16 %v2441, %v2440
        %v3716 = vsel %vm2578, %v3714, 0
        %3718 = vmatpush.bf16.msra.mxu0 0
        %3719 = vmatpush.bf16.msra.mxu0 0
        %3720 = vmatpush.bf16.msra.mxu0 0
        %3721 = vmatpush.bf16.msra.mxu0 0
        %3722 = vmatpush.bf16.msra.mxu0 0
        %3723 = vmatpush.bf16.msra.mxu0 0
        %3724 = vmatpush.bf16.msra.mxu0 0
        %3725 = vmatpush.bf16.msra.mxu0 %v2732
        %3726 = vmatmul.bf16.gmra.mxu0 %v3716
        %v3727 = vpop.f32.mrf.mxu0
        %v3728 = vadd.f32 0.0, %v3727
        %v3729 = vpop.f32.mrf.mxu0
        %v3730 = vadd.f32 0.0, %v3729
        %3731 = vdwg.mxu0
        %v3732 = vadd.f32 %v3712, %v3728
        %v3733 = vadd.f32 %v3713, %v3730
        %v3734 = vshrl.u32 %v3714, 16
        %v3736 = vshll.u32 %v3714, 16
        %v3738 = vrot.slane %v3736, 1
        %v3739 = vor.u32 %v3734, %v3738
        %v3741 = vsel %vm2578, %v3739, 0
        %3743 = vmatpush.bf16.msra.mxu0 0
        %3744 = vmatpush.bf16.msra.mxu0 0
        %3745 = vmatpush.bf16.msra.mxu0 0
        %3746 = vmatpush.bf16.msra.mxu0 0
        %3747 = vmatpush.bf16.msra.mxu0 0
        %3748 = vmatpush.bf16.msra.mxu0 0
        %3749 = vmatpush.bf16.msra.mxu0 0
        %3750 = vmatpush.bf16.msra.mxu0 %v2762
        %3751 = vmatmul.bf16.gmra.mxu0 %v3741
        %v3752 = vpop.f32.mrf.mxu0
        %v3753 = vadd.f32 0.0, %v3752
        %v3754 = vpop.f32.mrf.mxu0
        %v3755 = vadd.f32 0.0, %v3754
        %3756 = vdwg.mxu0
        %v3757 = vadd.f32 %v3732, %v3753
        %v3758 = vadd.f32 %v3733, %v3755
        %v3760 = vrot.slane %v3714, 1
        %v3762 = vsel %vm2578, %v3760, 0
        %3764 = vmatpush.bf16.msra.mxu0 0
        %3765 = vmatpush.bf16.msra.mxu0 0
        %3766 = vmatpush.bf16.msra.mxu0 0
        %3767 = vmatpush.bf16.msra.mxu0 0
        %3768 = vmatpush.bf16.msra.mxu0 0
        %3769 = vmatpush.bf16.msra.mxu0 0
        %3770 = vmatpush.bf16.msra.mxu0 0
        %3771 = vmatpush.bf16.msra.mxu0 %v2788
        %3772 = vmatmul.bf16.gmra.mxu0 %v3762
        %v3773 = vpop.f32.mrf.mxu0
        %v3774 = vadd.f32 0.0, %v3773
        %v3775 = vpop.f32.mrf.mxu0
        %v3776 = vadd.f32 0.0, %v3775
        %3777 = vdwg.mxu0
        %v3778 = vadd.f32 %v3757, %v3774
        %v3779 = vadd.f32 %v3758, %v3776
        %v3780 = vadd.f32 %v3778, %v2807
        %v3781 = vadd.f32 %v3779, %v2807
        %vm3782 = vcmp.ge.f32.partialorder %v3780, 0.0
        %vm3783 = vcmp.ge.f32.partialorder %v3781, 0.0
        %v3784 = vmul.f32 %v3780, 0.01
        %v3785 = vmul.f32 %v3781, 0.01
        %v3786 = vsel %vm3782, %v3780, %v3784
        %v3787 = vsel %vm3783, %v3781, %v3785
        %v3789 = vsel %vm1912, %v3787, 0
        %3791 = vmatpush.msra.mxu0 0.0
        %3792 = vmatpush.msra.mxu0 0.0
        %3793 = vmatpush.msra.mxu0 0.0
        %3794 = vmatpush.msra.mxu0 0.0
        %3795 = vmatpush.msra.mxu0 0.0
        %3796 = vmatpush.msra.mxu0 0.0
        %3797 = vmatpush.msra.mxu0 0.0
        %3798 = vmatpush.msra.mxu0 0.0
        %3799 = vmatpush.msra.mxu0 0.0
        %3800 = vmatpush.msra.mxu0 0.0
        %3801 = vmatpush.msra.mxu0 0.0
        %3802 = vmatpush.msra.mxu0 0.0
        %3803 = vmatpush.msra.mxu0 0.0
        %3804 = vmatpush.msra.mxu0 0.0
        %3805 = vmatpush.msra.mxu0 %v3789
        %3806 = vmatpush.msra.mxu0 %v3786
        %3807 = vmatmul.f32.gmra.mxu0 %v2819
        %v3808 = vpop.f32.mrf.mxu0
        %v3809 = vadd.f32 0.0, %v3808
        %3810 = vdwg.mxu0
        %v3812 = vrot.slane %v3809, 4
        %v3814 = vmax.f32 %v3809, %v3812
        %v3815 = vmax.f32 %v3621, %v3814
        %3816 = vmatpush.bf16.msra.mxu0 0
        %3817 = vmatpush.bf16.msra.mxu0 0
        %3818 = vmatpush.bf16.msra.mxu0 0
        %3819 = vmatpush.bf16.msra.mxu0 0
        %3820 = vmatpush.bf16.msra.mxu0 0
        %3821 = vmatpush.bf16.msra.mxu0 0
        %3822 = vmatpush.bf16.msra.mxu0 0
        %3823 = vmatpush.bf16.msra.mxu0 %v2583
        %3824 = vmatmul.bf16.gmra.mxu0 %v3548
        %v3825 = vpop.f32.mrf.mxu0
        %v3826 = vadd.f32 0.0, %v3825
        %v3827 = vpop.f32.mrf.mxu0
        %v3828 = vadd.f32 0.0, %v3827
        %3829 = vdwg.mxu0
        %3830 = vmatpush.bf16.msra.mxu0 0
        %3831 = vmatpush.bf16.msra.mxu0 0
        %3832 = vmatpush.bf16.msra.mxu0 0
        %3833 = vmatpush.bf16.msra.mxu0 0
        %3834 = vmatpush.bf16.msra.mxu0 0
        %3835 = vmatpush.bf16.msra.mxu0 0
        %3836 = vmatpush.bf16.msra.mxu0 0
        %3837 = vmatpush.bf16.msra.mxu0 %v2602
        %3838 = vmatmul.bf16.gmra.mxu0 %v3523
        %v3839 = vpop.f32.mrf.mxu0
        %v3840 = vadd.f32 %v3826, %v3839
        %v3841 = vpop.f32.mrf.mxu0
        %v3842 = vadd.f32 %v3828, %v3841
        %3843 = vdwg.mxu0
        %3844 = vmatpush.bf16.msra.mxu0 0
        %3845 = vmatpush.bf16.msra.mxu0 0
        %3846 = vmatpush.bf16.msra.mxu0 0
        %3847 = vmatpush.bf16.msra.mxu0 0
        %3848 = vmatpush.bf16.msra.mxu0 0
        %3849 = vmatpush.bf16.msra.mxu0 0
        %3850 = vmatpush.bf16.msra.mxu0 0
        %3851 = vmatpush.bf16.msra.mxu0 %v2626
        %3852 = vmatmul.bf16.gmra.mxu0 %v3569
        %v3853 = vpop.f32.mrf.mxu0
        %v3854 = vadd.f32 0.0, %v3853
        %v3855 = vpop.f32.mrf.mxu0
        %v3856 = vadd.f32 0.0, %v3855
        %3857 = vdwg.mxu0
        %v3858 = vadd.f32 %v3840, %v3854
        %v3859 = vadd.f32 %v3842, %v3856
        %3860 = vmatpush.bf16.msra.mxu0 0
        %3861 = vmatpush.bf16.msra.mxu0 0
        %3862 = vmatpush.bf16.msra.mxu0 0
        %3863 = vmatpush.bf16.msra.mxu0 0
        %3864 = vmatpush.bf16.msra.mxu0 0
        %3865 = vmatpush.bf16.msra.mxu0 0
        %3866 = vmatpush.bf16.msra.mxu0 0
        %3867 = vmatpush.bf16.msra.mxu0 %v2651
        %3868 = vmatmul.bf16.gmra.mxu0 %v3716
        %v3869 = vpop.f32.mrf.mxu0
        %v3870 = vadd.f32 0.0, %v3869
        %v3871 = vpop.f32.mrf.mxu0
        %v3872 = vadd.f32 0.0, %v3871
        %3873 = vdwg.mxu0
        %v3874 = vadd.f32 %v3858, %v3870
        %v3875 = vadd.f32 %v3859, %v3872
        %3876 = vmatpush.bf16.msra.mxu0 0
        %3877 = vmatpush.bf16.msra.mxu0 0
        %3878 = vmatpush.bf16.msra.mxu0 0
        %3879 = vmatpush.bf16.msra.mxu0 0
        %3880 = vmatpush.bf16.msra.mxu0 0
        %3881 = vmatpush.bf16.msra.mxu0 0
        %3882 = vmatpush.bf16.msra.mxu0 0
        %3883 = vmatpush.bf16.msra.mxu0 %v2681
        %3884 = vmatmul.bf16.gmra.mxu0 %v3741
        %v3885 = vpop.f32.mrf.mxu0
        %v3886 = vadd.f32 0.0, %v3885
        %v3887 = vpop.f32.mrf.mxu0
        %v3888 = vadd.f32 0.0, %v3887
        %3889 = vdwg.mxu0
        %v3890 = vadd.f32 %v3874, %v3886
        %v3891 = vadd.f32 %v3875, %v3888
        %3892 = vmatpush.bf16.msra.mxu0 0
        %3893 = vmatpush.bf16.msra.mxu0 0
        %3894 = vmatpush.bf16.msra.mxu0 0
        %3895 = vmatpush.bf16.msra.mxu0 0
        %3896 = vmatpush.bf16.msra.mxu0 0
        %3897 = vmatpush.bf16.msra.mxu0 0
        %3898 = vmatpush.bf16.msra.mxu0 0
        %3899 = vmatpush.bf16.msra.mxu0 %v2707
        %3900 = vmatmul.bf16.gmra.mxu0 %v3762
        %v3901 = vpop.f32.mrf.mxu0
        %v3902 = vadd.f32 0.0, %v3901
        %v3903 = vpop.f32.mrf.mxu0
        %v3904 = vadd.f32 0.0, %v3903
        %3905 = vdwg.mxu0
        %v3906 = vadd.f32 %v3890, %v3902
        %v3907 = vadd.f32 %v3891, %v3904
        %v3908 = vpack.c.bf16 %v2496, %v2495
        %v3910 = vsel %vm2578, %v3908, 0
        %3912 = vmatpush.bf16.msra.mxu0 0
        %3913 = vmatpush.bf16.msra.mxu0 0
        %3914 = vmatpush.bf16.msra.mxu0 0
        %3915 = vmatpush.bf16.msra.mxu0 0
        %3916 = vmatpush.bf16.msra.mxu0 0
        %3917 = vmatpush.bf16.msra.mxu0 0
        %3918 = vmatpush.bf16.msra.mxu0 0
        %3919 = vmatpush.bf16.msra.mxu0 %v2732
        %3920 = vmatmul.bf16.gmra.mxu0 %v3910
        %v3921 = vpop.f32.mrf.mxu0
        %v3922 = vadd.f32 0.0, %v3921
        %v3923 = vpop.f32.mrf.mxu0
        %v3924 = vadd.f32 0.0, %v3923
        %3925 = vdwg.mxu0
        %v3926 = vadd.f32 %v3906, %v3922
        %v3927 = vadd.f32 %v3907, %v3924
        %v3928 = vshrl.u32 %v3908, 16
        %v3930 = vshll.u32 %v3908, 16
        %v3932 = vrot.slane %v3930, 1
        %v3933 = vor.u32 %v3928, %v3932
        %v3935 = vsel %vm2578, %v3933, 0
        %3937 = vmatpush.bf16.msra.mxu0 0
        %3938 = vmatpush.bf16.msra.mxu0 0
        %3939 = vmatpush.bf16.msra.mxu0 0
        %3940 = vmatpush.bf16.msra.mxu0 0
        %3941 = vmatpush.bf16.msra.mxu0 0
        %3942 = vmatpush.bf16.msra.mxu0 0
        %3943 = vmatpush.bf16.msra.mxu0 0
        %3944 = vmatpush.bf16.msra.mxu0 %v2762
        %3945 = vmatmul.bf16.gmra.mxu0 %v3935
        %v3946 = vpop.f32.mrf.mxu0
        %v3947 = vadd.f32 0.0, %v3946
        %v3948 = vpop.f32.mrf.mxu0
        %v3949 = vadd.f32 0.0, %v3948
        %3950 = vdwg.mxu0
        %v3951 = vadd.f32 %v3926, %v3947
        %v3952 = vadd.f32 %v3927, %v3949
        %v3954 = vrot.slane %v3908, 1
        %v3956 = vsel %vm2578, %v3954, 0
        %3958 = vmatpush.bf16.msra.mxu0 0
        %3959 = vmatpush.bf16.msra.mxu0 0
        %3960 = vmatpush.bf16.msra.mxu0 0
        %3961 = vmatpush.bf16.msra.mxu0 0
        %3962 = vmatpush.bf16.msra.mxu0 0
        %3963 = vmatpush.bf16.msra.mxu0 0
        %3964 = vmatpush.bf16.msra.mxu0 0
        %3965 = vmatpush.bf16.msra.mxu0 %v2788
        %3966 = vmatmul.bf16.gmra.mxu0 %v3956
        %v3967 = vpop.f32.mrf.mxu0
        %v3968 = vadd.f32 0.0, %v3967
        %v3969 = vpop.f32.mrf.mxu0
        %v3970 = vadd.f32 0.0, %v3969
        %3971 = vdwg.mxu0
        %v3972 = vadd.f32 %v3951, %v3968
        %v3973 = vadd.f32 %v3952, %v3970
        %v3974 = vadd.f32 %v3972, %v2807
        %v3975 = vadd.f32 %v3973, %v2807
        %vm3976 = vcmp.ge.f32.partialorder %v3974, 0.0
        %vm3977 = vcmp.ge.f32.partialorder %v3975, 0.0
        %v3978 = vmul.f32 %v3974, 0.01
        %v3979 = vmul.f32 %v3975, 0.01
        %v3980 = vsel %vm3976, %v3974, %v3978
        %v3981 = vsel %vm3977, %v3975, %v3979
        %v3983 = vsel %vm1912, %v3981, 0
        %3985 = vmatpush.msra.mxu0 0.0
        %3986 = vmatpush.msra.mxu0 0.0
        %3987 = vmatpush.msra.mxu0 0.0
        %3988 = vmatpush.msra.mxu0 0.0
        %3989 = vmatpush.msra.mxu0 0.0
        %3990 = vmatpush.msra.mxu0 0.0
        %3991 = vmatpush.msra.mxu0 0.0
        %3992 = vmatpush.msra.mxu0 0.0
        %3993 = vmatpush.msra.mxu0 0.0
        %3994 = vmatpush.msra.mxu0 0.0
        %3995 = vmatpush.msra.mxu0 0.0
        %3996 = vmatpush.msra.mxu0 0.0
        %3997 = vmatpush.msra.mxu0 0.0
        %3998 = vmatpush.msra.mxu0 0.0
        %3999 = vmatpush.msra.mxu0 %v3983
        %4000 = vmatpush.msra.mxu0 %v3980
        %4001 = vmatmul.f32.gmra.mxu0 %v2819
        %v4002 = vpop.f32.mrf.mxu0
        %v4003 = vadd.f32 0.0, %v4002
        %4004 = vdwg.mxu0
        %v4006 = vrot.slane %v4003, 4
        %v4008 = vmax.f32 %v4003, %v4006
        %4009 = vmatpush.bf16.msra.mxu0 0
        %4010 = vmatpush.bf16.msra.mxu0 0
        %4011 = vmatpush.bf16.msra.mxu0 0
        %4012 = vmatpush.bf16.msra.mxu0 0
        %4013 = vmatpush.bf16.msra.mxu0 0
        %4014 = vmatpush.bf16.msra.mxu0 0
        %4015 = vmatpush.bf16.msra.mxu0 0
        %4016 = vmatpush.bf16.msra.mxu0 %v2583
        %4017 = vmatmul.bf16.gmra.mxu0 %v3741
        %v4018 = vpop.f32.mrf.mxu0
        %v4019 = vadd.f32 0.0, %v4018
        %v4020 = vpop.f32.mrf.mxu0
        %v4021 = vadd.f32 0.0, %v4020
        %4022 = vdwg.mxu0
        %4023 = vmatpush.bf16.msra.mxu0 0
        %4024 = vmatpush.bf16.msra.mxu0 0
        %4025 = vmatpush.bf16.msra.mxu0 0
        %4026 = vmatpush.bf16.msra.mxu0 0
        %4027 = vmatpush.bf16.msra.mxu0 0
        %4028 = vmatpush.bf16.msra.mxu0 0
        %4029 = vmatpush.bf16.msra.mxu0 0
        %4030 = vmatpush.bf16.msra.mxu0 %v2602
        %4031 = vmatmul.bf16.gmra.mxu0 %v3716
        %v4032 = vpop.f32.mrf.mxu0
        %v4033 = vadd.f32 %v4019, %v4032
        %v4034 = vpop.f32.mrf.mxu0
        %v4035 = vadd.f32 %v4021, %v4034
        %4036 = vdwg.mxu0
        %4037 = vmatpush.bf16.msra.mxu0 0
        %4038 = vmatpush.bf16.msra.mxu0 0
        %4039 = vmatpush.bf16.msra.mxu0 0
        %4040 = vmatpush.bf16.msra.mxu0 0
        %4041 = vmatpush.bf16.msra.mxu0 0
        %4042 = vmatpush.bf16.msra.mxu0 0
        %4043 = vmatpush.bf16.msra.mxu0 0
        %4044 = vmatpush.bf16.msra.mxu0 %v2626
        %4045 = vmatmul.bf16.gmra.mxu0 %v3762
        %v4046 = vpop.f32.mrf.mxu0
        %v4047 = vadd.f32 0.0, %v4046
        %v4048 = vpop.f32.mrf.mxu0
        %v4049 = vadd.f32 0.0, %v4048
        %4050 = vdwg.mxu0
        %v4051 = vadd.f32 %v4033, %v4047
        %v4052 = vadd.f32 %v4035, %v4049
        %4053 = vmatpush.bf16.msra.mxu0 0
        %4054 = vmatpush.bf16.msra.mxu0 0
        %4055 = vmatpush.bf16.msra.mxu0 0
        %4056 = vmatpush.bf16.msra.mxu0 0
        %4057 = vmatpush.bf16.msra.mxu0 0
        %4058 = vmatpush.bf16.msra.mxu0 0
        %4059 = vmatpush.bf16.msra.mxu0 0
        %4060 = vmatpush.bf16.msra.mxu0 %v2651
        %4061 = vmatmul.bf16.gmra.mxu0 %v3910
        %v4062 = vpop.f32.mrf.mxu0
        %v4063 = vadd.f32 0.0, %v4062
        %v4064 = vpop.f32.mrf.mxu0
        %v4065 = vadd.f32 0.0, %v4064
        %4066 = vdwg.mxu0
        %v4067 = vadd.f32 %v4051, %v4063
        %v4068 = vadd.f32 %v4052, %v4065
        %4069 = vmatpush.bf16.msra.mxu0 0
        %4070 = vmatpush.bf16.msra.mxu0 0
        %4071 = vmatpush.bf16.msra.mxu0 0
        %4072 = vmatpush.bf16.msra.mxu0 0
        %4073 = vmatpush.bf16.msra.mxu0 0
        %4074 = vmatpush.bf16.msra.mxu0 0
        %4075 = vmatpush.bf16.msra.mxu0 0
        %4076 = vmatpush.bf16.msra.mxu0 %v2681
        %4077 = vmatmul.bf16.gmra.mxu0 %v3935
        %v4078 = vpop.f32.mrf.mxu0
        %v4079 = vadd.f32 0.0, %v4078
        %v4080 = vpop.f32.mrf.mxu0
        %v4081 = vadd.f32 0.0, %v4080
        %4082 = vdwg.mxu0
        %v4083 = vadd.f32 %v4067, %v4079
        %v4084 = vadd.f32 %v4068, %v4081
        %4085 = vmatpush.bf16.msra.mxu0 0
        %4086 = vmatpush.bf16.msra.mxu0 0
        %4087 = vmatpush.bf16.msra.mxu0 0
        %4088 = vmatpush.bf16.msra.mxu0 0
        %4089 = vmatpush.bf16.msra.mxu0 0
        %4090 = vmatpush.bf16.msra.mxu0 0
        %4091 = vmatpush.bf16.msra.mxu0 0
        %4092 = vmatpush.bf16.msra.mxu0 %v2707
        %4093 = vmatmul.bf16.gmra.mxu0 %v3956
        %v4094 = vpop.f32.mrf.mxu0
        %v4095 = vadd.f32 0.0, %v4094
        %v4096 = vpop.f32.mrf.mxu0
        %v4097 = vadd.f32 0.0, %v4096
        %4098 = vdwg.mxu0
        %v4099 = vadd.f32 %v4083, %v4095
        %v4100 = vadd.f32 %v4084, %v4097
        %v4101 = vpack.c.bf16 %v2565, %v2564
        %v4103 = vsel %vm2578, %v4101, 0
        %4105 = vmatpush.bf16.msra.mxu0 0
        %4106 = vmatpush.bf16.msra.mxu0 0
        %4107 = vmatpush.bf16.msra.mxu0 0
        %4108 = vmatpush.bf16.msra.mxu0 0
        %4109 = vmatpush.bf16.msra.mxu0 0
        %4110 = vmatpush.bf16.msra.mxu0 0
        %4111 = vmatpush.bf16.msra.mxu0 0
        %4112 = vmatpush.bf16.msra.mxu0 %v2732
        %4113 = vmatmul.bf16.gmra.mxu0 %v4103
        %v4114 = vpop.f32.mrf.mxu0
        %v4115 = vadd.f32 0.0, %v4114
        %v4116 = vpop.f32.mrf.mxu0
        %v4117 = vadd.f32 0.0, %v4116
        %4118 = vdwg.mxu0
        %v4119 = vadd.f32 %v4099, %v4115
        %v4120 = vadd.f32 %v4100, %v4117
        %v4121 = vshrl.u32 %v4101, 16
        %v4123 = vshll.u32 %v4101, 16
        %v4125 = vrot.slane %v4123, 1
        %v4126 = vor.u32 %v4121, %v4125
        %v4128 = vsel %vm2578, %v4126, 0
        %4130 = vmatpush.bf16.msra.mxu0 0
        %4131 = vmatpush.bf16.msra.mxu0 0
        %4132 = vmatpush.bf16.msra.mxu0 0
        %4133 = vmatpush.bf16.msra.mxu0 0
        %4134 = vmatpush.bf16.msra.mxu0 0
        %4135 = vmatpush.bf16.msra.mxu0 0
        %4136 = vmatpush.bf16.msra.mxu0 0
        %4137 = vmatpush.bf16.msra.mxu0 %v2762
        %4138 = vmatmul.bf16.gmra.mxu0 %v4128
        %v4139 = vpop.f32.mrf.mxu0
        %v4140 = vadd.f32 0.0, %v4139
        %v4141 = vpop.f32.mrf.mxu0
        %v4142 = vadd.f32 0.0, %v4141
        %4143 = vdwg.mxu0
        %v4144 = vadd.f32 %v4119, %v4140
        %v4145 = vadd.f32 %v4120, %v4142
        %v4147 = vrot.slane %v4101, 1
        %v4149 = vsel %vm2578, %v4147, 0
        %4151 = vmatpush.bf16.msra.mxu0 0
        %4152 = vmatpush.bf16.msra.mxu0 0
        %4153 = vmatpush.bf16.msra.mxu0 0
        %4154 = vmatpush.bf16.msra.mxu0 0
        %4155 = vmatpush.bf16.msra.mxu0 0
        %4156 = vmatpush.bf16.msra.mxu0 0
        %4157 = vmatpush.bf16.msra.mxu0 0
        %4158 = vmatpush.bf16.msra.mxu0 %v2788
        %4159 = vmatmul.bf16.gmra.mxu0 %v4149
        %v4160 = vpop.f32.mrf.mxu0
        %v4161 = vadd.f32 0.0, %v4160
        %v4162 = vpop.f32.mrf.mxu0
        %v4163 = vadd.f32 0.0, %v4162
        %4164 = vdwg.mxu0
        %v4165 = vadd.f32 %v4144, %v4161
        %v4166 = vadd.f32 %v4145, %v4163
        %v4167 = vadd.f32 %v4165, %v2807
        %v4168 = vadd.f32 %v4166, %v2807
        %vm4169 = vcmp.ge.f32.partialorder %v4167, 0.0
        %vm4170 = vcmp.ge.f32.partialorder %v4168, 0.0
        %v4171 = vmul.f32 %v4167, 0.01
        %v4172 = vmul.f32 %v4168, 0.01
        %v4173 = vsel %vm4169, %v4167, %v4171
        %v4174 = vsel %vm4170, %v4168, %v4172
        %v4176 = vsel %vm1912, %v4174, 0
        %4178 = vmatpush.msra.mxu0 0.0
        %4179 = vmatpush.msra.mxu0 0.0
        %4180 = vmatpush.msra.mxu0 0.0
        %4181 = vmatpush.msra.mxu0 0.0
        %4182 = vmatpush.msra.mxu0 0.0
        %4183 = vmatpush.msra.mxu0 0.0
        %4184 = vmatpush.msra.mxu0 0.0
        %4185 = vmatpush.msra.mxu0 0.0
        %4186 = vmatpush.msra.mxu0 0.0
        %4187 = vmatpush.msra.mxu0 0.0
        %4188 = vmatpush.msra.mxu0 0.0
        %4189 = vmatpush.msra.mxu0 0.0
        %4190 = vmatpush.msra.mxu0 0.0
        %4191 = vmatpush.msra.mxu0 0.0
        %4192 = vmatpush.msra.mxu0 %v4176
        %4193 = vmatpush.msra.mxu0 %v4173
        %4194 = vmatmul.f32.gmra.mxu0 %v2819
        %v4195 = vpop.f32.mrf.mxu0
        %v4196 = vadd.f32 0.0, %v4195
        %4197 = vdwg.mxu0
        %v4199 = vrot.slane %v4196, 4
        %v4201 = vmax.f32 %v4196, %v4199
        %v4202 = vmax.f32 %v4008, %v4201
        %v4203 = vld [vmem:[%s5] sm:$0x1]
        %v4204 = vpack.c.bf16 %v3041, %v3041
        %v4205 = vld [vmem:[%s4] sm:$0xf]
        %v4206 = vld [vmem:[%s4 + $0x4] sm:$0xf]
        %v4209 = vunpack.c.l.b16 %v4205
        %v4210 = vunpack.c.l.b16 %v4206
        %v4211 = vpack.c.b16 %v4210, %v4209
        %vm4213 = vcmask 130048
        %v4215 = vsel %vm4213, %v4204, 0
        %4217 = vmatpush.bf16.msra.mxu0 0
        %4218 = vmatpush.bf16.msra.mxu0 0
        %4219 = vmatpush.bf16.msra.mxu0 0
        %4220 = vmatpush.bf16.msra.mxu0 0
        %4221 = vmatpush.bf16.msra.mxu0 0
        %4222 = vmatpush.bf16.msra.mxu0 0
        %4223 = vmatpush.bf16.msra.mxu0 0
        %4224 = vmatpush.bf16.msra.mxu0 %v4211
        %4225 = vmatmul.bf16.gmra.mxu0 %v4215
        %v4226 = vpop.f32.mrf.mxu0
        %v4227 = vadd.f32 0.0, %v4226
        %v4228 = vpop.f32.mrf.mxu0
        %4229 = vdwg.mxu0
        %v4230 = vadd.f32 %v4203, %v4227
        %s4231 = scalar_lea.vmem %s4, 8
        %v4232 = vld [vmem:[%s4231] sm:$0xf]
        %v4233 = vld [vmem:[%s4231 + $0x4] sm:$0xf]
        %v4234 = vshrl.u32 %v4204, 16
        %v4238 = vunpack.c.l.b16 %v4232
        %v4239 = vunpack.c.l.b16 %v4233
        %v4240 = vpack.c.b16 %v4239, %v4238
        %v4243 = vsel %vm4213, %v4234, 0
        %4245 = vmatpush.bf16.msra.mxu0 0
        %4246 = vmatpush.bf16.msra.mxu0 0
        %4247 = vmatpush.bf16.msra.mxu0 0
        %4248 = vmatpush.bf16.msra.mxu0 0
        %4249 = vmatpush.bf16.msra.mxu0 0
        %4250 = vmatpush.bf16.msra.mxu0 0
        %4251 = vmatpush.bf16.msra.mxu0 0
        %4252 = vmatpush.bf16.msra.mxu0 %v4240
        %4253 = vmatmul.bf16.gmra.mxu0 %v4243
        %v4254 = vpop.f32.mrf.mxu0
        %v4255 = vadd.f32 0.0, %v4254
        %v4256 = vpop.f32.mrf.mxu0
        %4257 = vdwg.mxu0
        %v4258 = vadd.f32 %v4230, %v4255
        %s4259 = scalar_lea.vmem %s4, 16
        %v4260 = vld [vmem:[%s4259] sm:$0xf]
        %v4261 = vld [vmem:[%s4259 + $0x4] sm:$0xf]
        %v4263 = vrot.slane %v4204, 1
        %v4266 = vunpack.c.l.b16 %v4260
        %v4267 = vunpack.c.l.b16 %v4261
        %v4268 = vpack.c.b16 %v4267, %v4266
        %v4271 = vsel %vm4213, %v4263, 0
        %4273 = vmatpush.bf16.msra.mxu0 0
        %4274 = vmatpush.bf16.msra.mxu0 0
        %4275 = vmatpush.bf16.msra.mxu0 0
        %4276 = vmatpush.bf16.msra.mxu0 0
        %4277 = vmatpush.bf16.msra.mxu0 0
        %4278 = vmatpush.bf16.msra.mxu0 0
        %4279 = vmatpush.bf16.msra.mxu0 0
        %4280 = vmatpush.bf16.msra.mxu0 %v4268
        %4281 = vmatmul.bf16.gmra.mxu0 %v4271
        %v4282 = vpop.f32.mrf.mxu0
        %v4283 = vadd.f32 0.0, %v4282
        %v4284 = vpop.f32.mrf.mxu0
        %4285 = vdwg.mxu0
        %v4286 = vadd.f32 %v4258, %v4283
        %s4287 = scalar_lea.vmem %s4, 24
        %v4288 = vld [vmem:[%s4287] sm:$0xf]
        %v4289 = vld [vmem:[%s4287 + $0x4] sm:$0xf]
        %v4290 = vrot.slane %v4234, 1
        %v4293 = vunpack.c.l.b16 %v4288
        %v4294 = vunpack.c.l.b16 %v4289
        %v4295 = vpack.c.b16 %v4294, %v4293
        %v4298 = vsel %vm4213, %v4290, 0
        %4300 = vmatpush.bf16.msra.mxu0 0
        %4301 = vmatpush.bf16.msra.mxu0 0
        %4302 = vmatpush.bf16.msra.mxu0 0
        %4303 = vmatpush.bf16.msra.mxu0 0
        %4304 = vmatpush.bf16.msra.mxu0 0
        %4305 = vmatpush.bf16.msra.mxu0 0
        %4306 = vmatpush.bf16.msra.mxu0 0
        %4307 = vmatpush.bf16.msra.mxu0 %v4295
        %4308 = vmatmul.bf16.gmra.mxu0 %v4298
        %v4309 = vpop.f32.mrf.mxu0
        %v4310 = vadd.f32 0.0, %v4309
        %v4311 = vpop.f32.mrf.mxu0
        %4312 = vdwg.mxu0
        %v4313 = vadd.f32 %v4286, %v4310
        %v4314 = vpack.c.bf16 %v3428, %v3428
        %s4315 = scalar_lea.vmem %s4, 32
        %v4316 = vld [vmem:[%s4315] sm:$0xf]
        %v4317 = vld [vmem:[%s4315 + $0x4] sm:$0xf]
        %v4320 = vunpack.c.l.b16 %v4316
        %v4321 = vunpack.c.l.b16 %v4317
        %v4322 = vpack.c.b16 %v4321, %v4320
        %v4325 = vsel %vm4213, %v4314, 0
        %4327 = vmatpush.bf16.msra.mxu0 0
        %4328 = vmatpush.bf16.msra.mxu0 0
        %4329 = vmatpush.bf16.msra.mxu0 0
        %4330 = vmatpush.bf16.msra.mxu0 0
        %4331 = vmatpush.bf16.msra.mxu0 0
        %4332 = vmatpush.bf16.msra.mxu0 0
        %4333 = vmatpush.bf16.msra.mxu0 0
        %4334 = vmatpush.bf16.msra.mxu0 %v4322
        %4335 = vmatmul.bf16.gmra.mxu0 %v4325
        %v4336 = vpop.f32.mrf.mxu0
        %v4337 = vadd.f32 0.0, %v4336
        %v4338 = vpop.f32.mrf.mxu0
        %4339 = vdwg.mxu0
        %v4340 = vadd.f32 %v4313, %v4337
        %s4341 = scalar_lea.vmem %s4, 40
        %v4342 = vld [vmem:[%s4341] sm:$0xf]
        %v4343 = vld [vmem:[%s4341 + $0x4] sm:$0xf]
        %v4344 = vshrl.u32 %v4314, 16
        %v4348 = vunpack.c.l.b16 %v4342
        %v4349 = vunpack.c.l.b16 %v4343
        %v4350 = vpack.c.b16 %v4349, %v4348
        %v4353 = vsel %vm4213, %v4344, 0
        %4355 = vmatpush.bf16.msra.mxu0 0
        %4356 = vmatpush.bf16.msra.mxu0 0
        %4357 = vmatpush.bf16.msra.mxu0 0
        %4358 = vmatpush.bf16.msra.mxu0 0
        %4359 = vmatpush.bf16.msra.mxu0 0
        %4360 = vmatpush.bf16.msra.mxu0 0
        %4361 = vmatpush.bf16.msra.mxu0 0
        %4362 = vmatpush.bf16.msra.mxu0 %v4350
        %4363 = vmatmul.bf16.gmra.mxu0 %v4353
        %v4364 = vpop.f32.mrf.mxu0
        %v4365 = vadd.f32 0.0, %v4364
        %v4366 = vpop.f32.mrf.mxu0
        %4367 = vdwg.mxu0
        %v4368 = vadd.f32 %v4340, %v4365
        %s4369 = scalar_lea.vmem %s4, 48
        %v4370 = vld [vmem:[%s4369] sm:$0xf]
        %v4371 = vld [vmem:[%s4369 + $0x4] sm:$0xf]
        %v4373 = vrot.slane %v4314, 1
        %v4376 = vunpack.c.l.b16 %v4370
        %v4377 = vunpack.c.l.b16 %v4371
        %v4378 = vpack.c.b16 %v4377, %v4376
        %v4381 = vsel %vm4213, %v4373, 0
        %4383 = vmatpush.bf16.msra.mxu0 0
        %4384 = vmatpush.bf16.msra.mxu0 0
        %4385 = vmatpush.bf16.msra.mxu0 0
        %4386 = vmatpush.bf16.msra.mxu0 0
        %4387 = vmatpush.bf16.msra.mxu0 0
        %4388 = vmatpush.bf16.msra.mxu0 0
        %4389 = vmatpush.bf16.msra.mxu0 0
        %4390 = vmatpush.bf16.msra.mxu0 %v4378
        %4391 = vmatmul.bf16.gmra.mxu0 %v4381
        %v4392 = vpop.f32.mrf.mxu0
        %v4393 = vadd.f32 0.0, %v4392
        %v4394 = vpop.f32.mrf.mxu0
        %4395 = vdwg.mxu0
        %v4396 = vadd.f32 %v4368, %v4393
        %s4397 = scalar_lea.vmem %s4, 56
        %v4398 = vld [vmem:[%s4397] sm:$0xf]
        %v4399 = vld [vmem:[%s4397 + $0x4] sm:$0xf]
        %v4400 = vrot.slane %v4344, 1
        %v4403 = vunpack.c.l.b16 %v4398
        %v4404 = vunpack.c.l.b16 %v4399
        %v4405 = vpack.c.b16 %v4404, %v4403
        %v4408 = vsel %vm4213, %v4400, 0
        %4410 = vmatpush.bf16.msra.mxu0 0
        %4411 = vmatpush.bf16.msra.mxu0 0
        %4412 = vmatpush.bf16.msra.mxu0 0
        %4413 = vmatpush.bf16.msra.mxu0 0
        %4414 = vmatpush.bf16.msra.mxu0 0
        %4415 = vmatpush.bf16.msra.mxu0 0
        %4416 = vmatpush.bf16.msra.mxu0 0
        %4417 = vmatpush.bf16.msra.mxu0 %v4405
        %4418 = vmatmul.bf16.gmra.mxu0 %v4408
        %v4419 = vpop.f32.mrf.mxu0
        %v4420 = vadd.f32 0.0, %v4419
        %v4421 = vpop.f32.mrf.mxu0
        %4422 = vdwg.mxu0
        %v4423 = vadd.f32 %v4396, %v4420
        %v4424 = vpack.c.bf16 %v3815, %v3815
        %s4425 = scalar_lea.vmem %s4, 64
        %v4426 = vld [vmem:[%s4425] sm:$0xf]
        %v4427 = vld [vmem:[%s4425 + $0x4] sm:$0xf]
        %v4430 = vunpack.c.l.b16 %v4426
        %v4431 = vunpack.c.l.b16 %v4427
        %v4432 = vpack.c.b16 %v4431, %v4430
        %v4435 = vsel %vm4213, %v4424, 0
        %4437 = vmatpush.bf16.msra.mxu0 0
        %4438 = vmatpush.bf16.msra.mxu0 0
        %4439 = vmatpush.bf16.msra.mxu0 0
        %4440 = vmatpush.bf16.msra.mxu0 0
        %4441 = vmatpush.bf16.msra.mxu0 0
        %4442 = vmatpush.bf16.msra.mxu0 0
        %4443 = vmatpush.bf16.msra.mxu0 0
        %4444 = vmatpush.bf16.msra.mxu0 %v4432
        %4445 = vmatmul.bf16.gmra.mxu0 %v4435
        %v4446 = vpop.f32.mrf.mxu0
        %v4447 = vadd.f32 0.0, %v4446
        %v4448 = vpop.f32.mrf.mxu0
        %4449 = vdwg.mxu0
        %v4450 = vadd.f32 %v4423, %v4447
        %s4451 = scalar_lea.vmem %s4, 72
        %v4452 = vld [vmem:[%s4451] sm:$0xf]
        %v4453 = vld [vmem:[%s4451 + $0x4] sm:$0xf]
        %v4454 = vshrl.u32 %v4424, 16
        %v4458 = vunpack.c.l.b16 %v4452
        %v4459 = vunpack.c.l.b16 %v4453
        %v4460 = vpack.c.b16 %v4459, %v4458
        %v4463 = vsel %vm4213, %v4454, 0
        %4465 = vmatpush.bf16.msra.mxu0 0
        %4466 = vmatpush.bf16.msra.mxu0 0
        %4467 = vmatpush.bf16.msra.mxu0 0
        %4468 = vmatpush.bf16.msra.mxu0 0
        %4469 = vmatpush.bf16.msra.mxu0 0
        %4470 = vmatpush.bf16.msra.mxu0 0
        %4471 = vmatpush.bf16.msra.mxu0 0
        %4472 = vmatpush.bf16.msra.mxu0 %v4460
        %4473 = vmatmul.bf16.gmra.mxu0 %v4463
        %v4474 = vpop.f32.mrf.mxu0
        %v4475 = vadd.f32 0.0, %v4474
        %v4476 = vpop.f32.mrf.mxu0
        %4477 = vdwg.mxu0
        %v4478 = vadd.f32 %v4450, %v4475
        %s4479 = scalar_lea.vmem %s4, 80
        %v4480 = vld [vmem:[%s4479] sm:$0xf]
        %v4481 = vld [vmem:[%s4479 + $0x4] sm:$0xf]
        %v4483 = vrot.slane %v4424, 1
        %v4486 = vunpack.c.l.b16 %v4480
        %v4487 = vunpack.c.l.b16 %v4481
        %v4488 = vpack.c.b16 %v4487, %v4486
        %v4491 = vsel %vm4213, %v4483, 0
        %4493 = vmatpush.bf16.msra.mxu0 0
        %4494 = vmatpush.bf16.msra.mxu0 0
        %4495 = vmatpush.bf16.msra.mxu0 0
        %4496 = vmatpush.bf16.msra.mxu0 0
        %4497 = vmatpush.bf16.msra.mxu0 0
        %4498 = vmatpush.bf16.msra.mxu0 0
        %4499 = vmatpush.bf16.msra.mxu0 0
        %4500 = vmatpush.bf16.msra.mxu0 %v4488
        %4501 = vmatmul.bf16.gmra.mxu0 %v4491
        %v4502 = vpop.f32.mrf.mxu0
        %v4503 = vadd.f32 0.0, %v4502
        %v4504 = vpop.f32.mrf.mxu0
        %4505 = vdwg.mxu0
        %v4506 = vadd.f32 %v4478, %v4503
        %s4507 = scalar_lea.vmem %s4, 88
        %v4508 = vld [vmem:[%s4507] sm:$0xf]
        %v4509 = vld [vmem:[%s4507 + $0x4] sm:$0xf]
        %v4510 = vrot.slane %v4454, 1
        %v4513 = vunpack.c.l.b16 %v4508
        %v4514 = vunpack.c.l.b16 %v4509
        %v4515 = vpack.c.b16 %v4514, %v4513
        %v4518 = vsel %vm4213, %v4510, 0
        %4520 = vmatpush.bf16.msra.mxu0 0
        %4521 = vmatpush.bf16.msra.mxu0 0
        %4522 = vmatpush.bf16.msra.mxu0 0
        %4523 = vmatpush.bf16.msra.mxu0 0
        %4524 = vmatpush.bf16.msra.mxu0 0
        %4525 = vmatpush.bf16.msra.mxu0 0
        %4526 = vmatpush.bf16.msra.mxu0 0
        %4527 = vmatpush.bf16.msra.mxu0 %v4515
        %4528 = vmatmul.bf16.gmra.mxu0 %v4518
        %v4529 = vpop.f32.mrf.mxu0
        %v4530 = vadd.f32 0.0, %v4529
        %v4531 = vpop.f32.mrf.mxu0
        %4532 = vdwg.mxu0
        %v4533 = vadd.f32 %v4506, %v4530
        %v4534 = vpack.c.bf16 %v4202, %v4202
        %s4535 = scalar_lea.vmem %s4, 96
        %v4536 = vld [vmem:[%s4535] sm:$0xf]
        %v4537 = vld [vmem:[%s4535 + $0x4] sm:$0xf]
        %v4540 = vunpack.c.l.b16 %v4536
        %v4541 = vunpack.c.l.b16 %v4537
        %v4542 = vpack.c.b16 %v4541, %v4540
        %v4545 = vsel %vm4213, %v4534, 0
        %4547 = vmatpush.bf16.msra.mxu0 0
        %4548 = vmatpush.bf16.msra.mxu0 0
        %4549 = vmatpush.bf16.msra.mxu0 0
        %4550 = vmatpush.bf16.msra.mxu0 0
        %4551 = vmatpush.bf16.msra.mxu0 0
        %4552 = vmatpush.bf16.msra.mxu0 0
        %4553 = vmatpush.bf16.msra.mxu0 0
        %4554 = vmatpush.bf16.msra.mxu0 %v4542
        %4555 = vmatmul.bf16.gmra.mxu0 %v4545
        %v4556 = vpop.f32.mrf.mxu0
        %v4557 = vadd.f32 0.0, %v4556
        %v4558 = vpop.f32.mrf.mxu0
        %4559 = vdwg.mxu0
        %v4560 = vadd.f32 %v4533, %v4557
        %s4561 = scalar_lea.vmem %s4, 104
        %v4562 = vld [vmem:[%s4561] sm:$0xf]
        %v4563 = vld [vmem:[%s4561 + $0x4] sm:$0xf]
        %v4564 = vshrl.u32 %v4534, 16
        %v4568 = vunpack.c.l.b16 %v4562
        %v4569 = vunpack.c.l.b16 %v4563
        %v4570 = vpack.c.b16 %v4569, %v4568
        %v4573 = vsel %vm4213, %v4564, 0
        %4575 = vmatpush.bf16.msra.mxu0 0
        %4576 = vmatpush.bf16.msra.mxu0 0
        %4577 = vmatpush.bf16.msra.mxu0 0
        %4578 = vmatpush.bf16.msra.mxu0 0
        %4579 = vmatpush.bf16.msra.mxu0 0
        %4580 = vmatpush.bf16.msra.mxu0 0
        %4581 = vmatpush.bf16.msra.mxu0 0
        %4582 = vmatpush.bf16.msra.mxu0 %v4570
        %4583 = vmatmul.bf16.gmra.mxu0 %v4573
        %v4584 = vpop.f32.mrf.mxu0
        %v4585 = vadd.f32 0.0, %v4584
        %v4586 = vpop.f32.mrf.mxu0
        %4587 = vdwg.mxu0
        %v4588 = vadd.f32 %v4560, %v4585
        %s4589 = scalar_lea.vmem %s4, 112
        %v4590 = vld [vmem:[%s4589] sm:$0xf]
        %v4591 = vld [vmem:[%s4589 + $0x4] sm:$0xf]
        %v4593 = vrot.slane %v4534, 1
        %v4596 = vunpack.c.l.b16 %v4590
        %v4597 = vunpack.c.l.b16 %v4591
        %v4598 = vpack.c.b16 %v4597, %v4596
        %v4601 = vsel %vm4213, %v4593, 0
        %4603 = vmatpush.bf16.msra.mxu0 0
        %4604 = vmatpush.bf16.msra.mxu0 0
        %4605 = vmatpush.bf16.msra.mxu0 0
        %4606 = vmatpush.bf16.msra.mxu0 0
        %4607 = vmatpush.bf16.msra.mxu0 0
        %4608 = vmatpush.bf16.msra.mxu0 0
        %4609 = vmatpush.bf16.msra.mxu0 0
        %4610 = vmatpush.bf16.msra.mxu0 %v4598
        %4611 = vmatmul.bf16.gmra.mxu0 %v4601
        %v4612 = vpop.f32.mrf.mxu0
        %v4613 = vadd.f32 0.0, %v4612
        %v4614 = vpop.f32.mrf.mxu0
        %4615 = vdwg.mxu0
        %v4616 = vadd.f32 %v4588, %v4613
        %s4617 = scalar_lea.vmem %s4, 120
        %v4618 = vld [vmem:[%s4617] sm:$0xf]
        %v4619 = vld [vmem:[%s4617 + $0x4] sm:$0xf]
        %v4620 = vrot.slane %v4564, 1
        %v4623 = vunpack.c.l.b16 %v4618
        %v4624 = vunpack.c.l.b16 %v4619
        %v4625 = vpack.c.b16 %v4624, %v4623
        %v4628 = vsel %vm4213, %v4620, 0
        %4630 = vmatpush.bf16.msra.mxu0 0
        %4631 = vmatpush.bf16.msra.mxu0 0
        %4632 = vmatpush.bf16.msra.mxu0 0
        %4633 = vmatpush.bf16.msra.mxu0 0
        %4634 = vmatpush.bf16.msra.mxu0 0
        %4635 = vmatpush.bf16.msra.mxu0 0
        %4636 = vmatpush.bf16.msra.mxu0 0
        %4637 = vmatpush.bf16.msra.mxu0 %v4625
        %4638 = vmatmul.bf16.gmra.mxu0 %v4628
        %v4639 = vpop.f32.mrf.mxu0
        %v4640 = vadd.f32 0.0, %v4639
        %v4641 = vpop.f32.mrf.mxu0
        %4642 = vdwg.mxu0
        %v4643 = vadd.f32 %v4616, %v4640
        %vm4644 = vcmp.ge.f32.partialorder %v4643, 0.0
        %v4645 = vmul.f32 %v4643, 0.01
        %v4646 = vsel %vm4644, %v4643, %v4645
        %v4647 = vpack.c.bf16 %v4646, %v4646
        %v4648 = vld [vmem:[%s6] sm:$0xf]
        %v4649 = vld [vmem:[%s6 + $0x4] sm:$0xf]
        %v4650 = vld [vmem:[%s6 + $0x8] sm:$0xf]
        %v4651 = vld [vmem:[%s6 + $0xc] sm:$0xf]
        %v4652 = vld [vmem:[%s6 + $0x10] sm:$0xf]
        %v4653 = vld [vmem:[%s6 + $0x14] sm:$0xf]
        %v4654 = vld [vmem:[%s6 + $0x18] sm:$0xf]
        %v4655 = vld [vmem:[%s6 + $0x1c] sm:$0xf]
        %v4656 = vld [vmem:[%s7] sm:$0x1]
        %v4665 = vunpack.c.l.b16 %v4648
        %v4666 = vunpack.c.l.b16 %v4649
        %v4667 = vunpack.c.l.b16 %v4650
        %v4668 = vunpack.c.l.b16 %v4651
        %v4669 = vunpack.c.l.b16 %v4652
        %v4670 = vunpack.c.l.b16 %v4653
        %v4671 = vunpack.c.l.b16 %v4654
        %v4672 = vunpack.c.l.b16 %v4655
        %v4673 = vpack.c.b16 %v4666, %v4665
        %v4674 = vpack.c.b16 %v4668, %v4667
        %v4675 = vpack.c.b16 %v4670, %v4669
        %v4676 = vpack.c.b16 %v4672, %v4671
        %vm4681 = vcmask 523264
        %v4683 = vsel %vm4681, %v4647, 0
        %4685 = vmatpush.bf16.msra.mxu0 0
        %4686 = vmatpush.bf16.msra.mxu0 0
        %4687 = vmatpush.bf16.msra.mxu0 0
        %4688 = vmatpush.bf16.msra.mxu0 0
        %4689 = vmatpush.bf16.msra.mxu0 %v4676
        %4690 = vmatpush.bf16.msra.mxu0 %v4675
        %4691 = vmatpush.bf16.msra.mxu0 %v4674
        %4692 = vmatpush.bf16.msra.mxu0 %v4673
        %4693 = vmatmul.bf16.gmra.mxu0 %v4683
        %v4694 = vpop.f32.mrf.mxu0
        %v4695 = vadd.f32 %v4656, %v4694
        %v4696 = vpop.f32.mrf.mxu0
        %4697 = vdwg.mxu0
        %4698 = vst [vmem:[%s351] sm:$0x1] %v4695
        %s4699 = sand.u32 %s247, 1
        %s4700 = scalar_lea.sflag [#allocation3], %s4699
        %s4701 = sand.u32 %s247, 1
        %s4702 = scalar_lea.vmem [#allocation2], %s4701
        // Predicated region
        $region61: #{cnn_small_forward.1} parent=59 // pred_check
          %p4703 = pneg %p257
        $region62: #{cnn_small_forward.1} parent=59 // pred_check_branch
          %4705 = sbr.rel (%p4703) target = $region64
        $region63: #{cnn_small_forward.1} parent=59 // pred_region
          %4707 = vsyncadd %s4700, 0
          %s4708 = scalar_lea.hbm %s10, %s24
          %s4710 = sshll.u32 %s4702, 4
          %s4711 = int_to_ptr.vmem [resolvable:$true] %s4710
          %s4712 = sshll.u32 %s4708, 4
          %s4713 = int_to_ptr.hbm [resolvable:$true] %s4712
          %4715 = dma.vmem_to_hbm [thread:$0]  %s4711, 16, %s4713, %s4700
        $region64: #{cnn_small_forward.1} parent=59 // pred_fallthru
          _
      $region60: #{cnn_small_forward.1} parent=5 // pred_fallthru
        _
      %p4716 = scmp.le.s32.totalorder 2, %s19
      // Predicated region
      $region65: #{cnn_small_forward.1} parent=5 // pred_check
        %p4717 = pneg %p4716
      $region66: #{cnn_small_forward.1} parent=5 // pred_check_branch
        %4719 = sbr.rel (%p4717) target = $region68
      $region67: #{cnn_small_forward.1} parent=5 // pred_region
        %s4720 = ssub.s32 %s19, 2
        // Predicated region
        $region69: #{cnn_small_forward.1} parent=67 // pred_check
          %p4721 = pneg %p263
        $region70: #{cnn_small_forward.1} parent=67 // pred_check_branch
          %4723 = sbr.rel (%p4721) target = $region72
        $region71: #{cnn_small_forward.1} parent=67 // pred_region
          %s4724 = sand.u32 %s248, 1
          %s4725 = scalar_lea.sflag [#allocation3], %s4724
          %s4726 = sand.u32 %s248, 1
          %s4727 = scalar_lea.vmem [#allocation2], %s4726
          %4729 = dma.done %s4725, 16
        $region72: #{cnn_small_forward.1} parent=67 // pred_fallthru
          _
      $region68: #{cnn_small_forward.1} parent=5 // pred_fallthru
        _
    $region6: #{cnn_small_forward.1} parent=1 // loop_footer
      %s23 = sadd.s32 1, %s19
    $region7: #{cnn_small_forward.1} parent=1 // loop_footer_branch
      %18 = sbr.rel target = $region3
    $region8: #{cnn_small_forward.1} parent=1 // loop_exit
      _
    %4730 = vsyncpa [#allocation3], 1
    %s4731 = scalar_lea.sflag [#allocation3], 1
    %4732 = vsyncpa %s4731, 1

</llo_original>
